<compile_context>
chip_gen: v7x
topology: tpu7x:2x2x1
jax: 0.10.0
libtpu: 0.0.40
codegen_flags: <defaults>
</compile_context>

<pallas_src>
import functools

import jax
import jax.numpy as jnp
from jax.experimental import pallas as pl
from jax.experimental.pallas import tpu as pltpu

OUT_PAD = 128  # lane-dense padding of the final (N=1) layer


def _leaky_relu(v, slope=0.2):
    return jnp.where(v > 0, v, slope * v)


def _wdisc_kernel(x_ref,
                  w1_ref, b1_ref,
                  w2_ref, b2_ref,
                  w3_ref, b3_ref,
                  w4_ref, b4_ref,
                  o_ref):
    # MXU operands in bf16, accumulation + elementwise (bias, leaky_relu) in f32.
    h = jnp.dot(x_ref[...].astype(jnp.bfloat16), w1_ref[...],
                preferred_element_type=jnp.float32)
    h = _leaky_relu(h + b1_ref[...])

    h = jnp.dot(h.astype(jnp.bfloat16), w2_ref[...],
                preferred_element_type=jnp.float32)
    h = _leaky_relu(h + b2_ref[...])

    h = jnp.dot(h.astype(jnp.bfloat16), w3_ref[...],
                preferred_element_type=jnp.float32)
    h = _leaky_relu(h + b3_ref[...])

    # Final layer uses a zero-padded [256, 128] weight so the store is a full
    # lane-dense (block_b, 128) slab; only column 0 carries the real output.
    h = jnp.dot(h.astype(jnp.bfloat16), w4_ref[...],
                preferred_element_type=jnp.float32)
    h = _leaky_relu(h + b4_ref[...])

    o_ref[...] = h.astype(o_ref.dtype)


@functools.partial(jax.jit, static_argnames=("block_b",))
def wdiscriminator_forward(x, params, block_b=128):
    """4-layer WGAN critic MLP in one Pallas kernel.

    x:      [B, D] float32 (any B; padded internally to a multiple of block_b).
    params: dict with w1..w4 ([in, out], float32) and b1..b4 ([1, out], float32).
    Returns [B, 1] float32.
    """
    B, D = x.shape

    # Pad the batch to a multiple of block_b (padded rows are discarded).
    B_pad = ((B + block_b - 1) // block_b) * block_b
    if B_pad != B:
        x = jnp.pad(x, ((0, B_pad - B), (0, 0)))

    # bf16 weights (MXU operands); biases stay f32 (added to the f32 accumulator).
    w1 = params["w1"].astype(jnp.bfloat16)
    w2 = params["w2"].astype(jnp.bfloat16)
    w3 = params["w3"].astype(jnp.bfloat16)
    b1, b2, b3 = params["b1"], params["b2"], params["b3"]

    # Pad the final N=1 layer to OUT_PAD lanes (zeros beyond column 0).
    w4 = params["w4"].astype(jnp.bfloat16)
    b4 = params["b4"]
    w4p = jnp.zeros((w4.shape[0], OUT_PAD), jnp.bfloat16).at[:, :1].set(w4)
    b4p = jnp.zeros((1, OUT_PAD), jnp.float32).at[:, :1].set(b4)

    grid = (B_pad // block_b,)

    def full_spec(shape):
        return pl.BlockSpec(shape, lambda i: (0,) * len(shape))

    out_full = pl.pallas_call(
        _wdisc_kernel,
        out_shape=jax.ShapeDtypeStruct((B_pad, OUT_PAD), jnp.float32),
        grid_spec=pltpu.PrefetchScalarGridSpec(
            num_scalar_prefetch=0,
            grid=grid,
            in_specs=[
                pl.BlockSpec((block_b, D), lambda i: (i, 0)),   # x tile
                full_spec(w1.shape), full_spec(b1.shape),
                full_spec(w2.shape), full_spec(b2.shape),
                full_spec(w3.shape), full_spec(b3.shape),
                full_spec(w4p.shape), full_spec(b4p.shape),
            ],
            out_specs=pl.BlockSpec((block_b, OUT_PAD), lambda i: (i, 0)),
        ),
        compiler_params=pltpu.CompilerParams(
            dimension_semantics=("parallel",),
            vmem_limit_bytes=32 << 20,
        ),
    )(x, w1, b1, w2, b2, w3, b3, w4p, b4p)

    # Slice back to the real batch and the single real output column.
    return out_full[:B, :1]


def init_params(key, d_input_dim):
    """PyTorch nn.Linear default init: U(-1/sqrt(fan_in), 1/sqrt(fan_in))."""
    dims = [d_input_dim, 1024, 512, 256, 1]
    params = {}
    for layer in range(4):
        fan_in, fan_out = dims[layer], dims[layer + 1]
        key, kw, kb = jax.random.split(key, 3)
        bound = 1.0 / jnp.sqrt(fan_in)
        params[f"w{layer + 1}"] = jax.random.uniform(
            kw, (fan_in, fan_out), jnp.float32, -bound, bound)
        params[f"b{layer + 1}"] = jax.random.uniform(
            kb, (1, fan_out), jnp.float32, -bound, bound)
    return params


def reference_forward(x, params, matmul_dtype=jnp.float32):
    """Pure-JAX reference; matmul_dtype=bfloat16 mirrors the kernel's MXU precision."""
    h = x
    for layer in range(1, 5):
        w = params[f"w{layer}"].astype(matmul_dtype)
        h = jnp.dot(h.astype(matmul_dtype), w,
                    preferred_element_type=jnp.float32)
        h = h + params[f"b{layer}"]
        h = jnp.where(h > 0, h, 0.2 * h)
    return h


if __name__ == "__main__":
    key = jax.random.PRNGKey(0)
    d_input_dim = 64
    batch = 16

    k_params, k_x = jax.random.split(key)
    params = init_params(k_params, d_input_dim)
    x = jax.random.normal(k_x, (batch, d_input_dim), jnp.float32)

    out = wdiscriminator_forward(x, params)   # block_b=128, batch padded inside
    out = jax.block_until_ready(out)
    assert out.shape == (batch, 1), out.shape

    # Tight check vs a reference using the same bf16 MXU operand precision.
    ref_bf16 = reference_forward(x, params, matmul_dtype=jnp.bfloat16)
    assert jnp.allclose(out, ref_bf16, atol=1e-3, rtol=1e-3), "mismatch vs bf16 reference"

    # Loose sanity check vs the full-f32 PyTorch-equivalent forward.
    ref_f32 = reference_forward(x, params, matmul_dtype=jnp.float32)
    assert jnp.allclose(out, ref_f32, atol=5e-2, rtol=5e-2), "mismatch vs f32 reference"

    print("KERNEL_OK")
</pallas_src>

<mosaic_0001>
module attributes {stable_mosaic.version = 11 : i64} {
  func.func @_wdisc_kernel(%arg0: i32, %arg1: memref<128x64xf32, #tpu.memory_space<vmem>>, %arg2: memref<64x1024xbf16, #tpu.memory_space<vmem>>, %arg3: memref<1x1024xf32, #tpu.memory_space<vmem>>, %arg4: memref<1024x512xbf16, #tpu.memory_space<vmem>>, %arg5: memref<1x512xf32, #tpu.memory_space<vmem>>, %arg6: memref<512x256xbf16, #tpu.memory_space<vmem>>, %arg7: memref<1x256xf32, #tpu.memory_space<vmem>>, %arg8: memref<256x128xbf16, #tpu.memory_space<vmem>>, %arg9: memref<1x128xf32, #tpu.memory_space<vmem>>, %arg10: memref<128x128xf32, #tpu.memory_space<vmem>>) attributes {dimension_semantics = [#tpu.dimension_semantics<parallel>], iteration_bounds = array<i64: 1>, scalar_prefetch = 0 : i64, scratch_operands = 0 : i64, tpu.core_type = #tpu.core_type<tc>, window_params = [{transform_indices = @transform_0, window_bounds = array<i64: 128, 64>}, {pipeline_mode = #tpu.pipeline_mode<synchronous>, transform_indices = @transform_1, window_bounds = array<i64: 64, 1024>}, {pipeline_mode = #tpu.pipeline_mode<synchronous>, transform_indices = @transform_2, window_bounds = array<i64: 1, 1024>}, {pipeline_mode = #tpu.pipeline_mode<synchronous>, transform_indices = @transform_3, window_bounds = array<i64: 1024, 512>}, {pipeline_mode = #tpu.pipeline_mode<synchronous>, transform_indices = @transform_4, window_bounds = array<i64: 1, 512>}, {pipeline_mode = #tpu.pipeline_mode<synchronous>, transform_indices = @transform_5, window_bounds = array<i64: 512, 256>}, {pipeline_mode = #tpu.pipeline_mode<synchronous>, transform_indices = @transform_6, window_bounds = array<i64: 1, 256>}, {pipeline_mode = #tpu.pipeline_mode<synchronous>, transform_indices = @transform_7, window_bounds = array<i64: 256, 128>}, {pipeline_mode = #tpu.pipeline_mode<synchronous>, transform_indices = @transform_8, window_bounds = array<i64: 1, 128>}, {transform_indices = @transform_9, window_bounds = array<i64: 128, 128>}]} {
    %c0 = arith.constant 0 : index
    %c0_0 = arith.constant 0 : index
    %0 = vector.load %arg1[%c0, %c0_0] : memref<128x64xf32, #tpu.memory_space<vmem>>, vector<128x64xf32>
    %1 = arith.truncf %0 : vector<128x64xf32> to vector<128x64xbf16>
    %c0_1 = arith.constant 0 : index
    %c0_2 = arith.constant 0 : index
    %2 = vector.load %arg2[%c0_1, %c0_2] : memref<64x1024xbf16, #tpu.memory_space<vmem>>, vector<64x1024xbf16>
    %cst = arith.constant dense<0.000000e+00> : vector<128x1024xf32>
    %3 = tpu.matmul %1, %2, %cst {dimension_numbers = #tpu.dot_dimension_numbers<[1], [0], [0], [1], [0, 0, 1, 1], [], []>} : vector<128x64xbf16>, vector<64x1024xbf16>, vector<128x1024xf32> -> vector<128x1024xf32>
    %c0_3 = arith.constant 0 : index
    %c0_4 = arith.constant 0 : index
    %4 = vector.load %arg3[%c0_3, %c0_4] : memref<1x1024xf32, #tpu.memory_space<vmem>>, vector<1x1024xf32>
    %5 = vector.broadcast %4 : vector<1x1024xf32> to vector<128x1024xf32>
    %6 = arith.addf %3, %5 : vector<128x1024xf32>
    %cst_5 = arith.constant 0.000000e+00 : f32
    %7 = vector.broadcast %cst_5 : f32 to vector<128x1024xf32>
    %8 = arith.cmpf ogt, %6, %7 : vector<128x1024xf32>
    %cst_6 = arith.constant 2.000000e-01 : f32
    %9 = vector.broadcast %cst_6 : f32 to vector<128x1024xf32>
    %10 = arith.mulf %9, %6 : vector<128x1024xf32>
    %11 = arith.select %8, %6, %10 : vector<128x1024xi1>, vector<128x1024xf32>
    %12 = arith.truncf %11 : vector<128x1024xf32> to vector<128x1024xbf16>
    %c0_7 = arith.constant 0 : index
    %c0_8 = arith.constant 0 : index
    %13 = vector.load %arg4[%c0_7, %c0_8] : memref<1024x512xbf16, #tpu.memory_space<vmem>>, vector<1024x512xbf16>
    %cst_9 = arith.constant dense<0.000000e+00> : vector<128x512xf32>
    %14 = tpu.matmul %12, %13, %cst_9 {dimension_numbers = #tpu.dot_dimension_numbers<[1], [0], [0], [1], [0, 0, 1, 1], [], []>} : vector<128x1024xbf16>, vector<1024x512xbf16>, vector<128x512xf32> -> vector<128x512xf32>
    %c0_10 = arith.constant 0 : index
    %c0_11 = arith.constant 0 : index
    %15 = vector.load %arg5[%c0_10, %c0_11] : memref<1x512xf32, #tpu.memory_space<vmem>>, vector<1x512xf32>
    %16 = vector.broadcast %15 : vector<1x512xf32> to vector<128x512xf32>
    %17 = arith.addf %14, %16 : vector<128x512xf32>
    %cst_12 = arith.constant 0.000000e+00 : f32
    %18 = vector.broadcast %cst_12 : f32 to vector<128x512xf32>
    %19 = arith.cmpf ogt, %17, %18 : vector<128x512xf32>
    %cst_13 = arith.constant 2.000000e-01 : f32
    %20 = vector.broadcast %cst_13 : f32 to vector<128x512xf32>
    %21 = arith.mulf %20, %17 : vector<128x512xf32>
    %22 = arith.select %19, %17, %21 : vector<128x512xi1>, vector<128x512xf32>
    %23 = arith.truncf %22 : vector<128x512xf32> to vector<128x512xbf16>
    %c0_14 = arith.constant 0 : index
    %c0_15 = arith.constant 0 : index
    %24 = vector.load %arg6[%c0_14, %c0_15] : memref<512x256xbf16, #tpu.memory_space<vmem>>, vector<512x256xbf16>
    %cst_16 = arith.constant dense<0.000000e+00> : vector<128x256xf32>
    %25 = tpu.matmul %23, %24, %cst_16 {dimension_numbers = #tpu.dot_dimension_numbers<[1], [0], [0], [1], [0, 0, 1, 1], [], []>} : vector<128x512xbf16>, vector<512x256xbf16>, vector<128x256xf32> -> vector<128x256xf32>
    %c0_17 = arith.constant 0 : index
    %c0_18 = arith.constant 0 : index
    %26 = vector.load %arg7[%c0_17, %c0_18] : memref<1x256xf32, #tpu.memory_space<vmem>>, vector<1x256xf32>
    %27 = vector.broadcast %26 : vector<1x256xf32> to vector<128x256xf32>
    %28 = arith.addf %25, %27 : vector<128x256xf32>
    %cst_19 = arith.constant 0.000000e+00 : f32
    %29 = vector.broadcast %cst_19 : f32 to vector<128x256xf32>
    %30 = arith.cmpf ogt, %28, %29 : vector<128x256xf32>
    %cst_20 = arith.constant 2.000000e-01 : f32
    %31 = vector.broadcast %cst_20 : f32 to vector<128x256xf32>
    %32 = arith.mulf %31, %28 : vector<128x256xf32>
    %33 = arith.select %30, %28, %32 : vector<128x256xi1>, vector<128x256xf32>
    %34 = arith.truncf %33 : vector<128x256xf32> to vector<128x256xbf16>
    %c0_21 = arith.constant 0 : index
    %c0_22 = arith.constant 0 : index
    %35 = vector.load %arg8[%c0_21, %c0_22] : memref<256x128xbf16, #tpu.memory_space<vmem>>, vector<256x128xbf16>
    %cst_23 = arith.constant dense<0.000000e+00> : vector<128x128xf32>
    %36 = tpu.matmul %34, %35, %cst_23 {dimension_numbers = #tpu.dot_dimension_numbers<[1], [0], [0], [1], [0, 0, 1, 1], [], []>} : vector<128x256xbf16>, vector<256x128xbf16>, vector<128x128xf32> -> vector<128x128xf32>
    %c0_24 = arith.constant 0 : index
    %c0_25 = arith.constant 0 : index
    %37 = vector.load %arg9[%c0_24, %c0_25] : memref<1x128xf32, #tpu.memory_space<vmem>>, vector<1x128xf32>
    %38 = vector.broadcast %37 : vector<1x128xf32> to vector<128x128xf32>
    %39 = arith.addf %36, %38 : vector<128x128xf32>
    %cst_26 = arith.constant 0.000000e+00 : f32
    %40 = vector.broadcast %cst_26 : f32 to vector<128x128xf32>
    %41 = arith.cmpf ogt, %39, %40 : vector<128x128xf32>
    %cst_27 = arith.constant 2.000000e-01 : f32
    %42 = vector.broadcast %cst_27 : f32 to vector<128x128xf32>
    %43 = arith.mulf %42, %39 : vector<128x128xf32>
    %44 = arith.select %41, %39, %43 : vector<128x128xi1>, vector<128x128xf32>
    %c0_28 = arith.constant 0 : index
    %c0_29 = arith.constant 0 : index
    %45 = vector.load %arg10[%c0_28, %c0_29] : memref<128x128xf32, #tpu.memory_space<vmem>>, vector<128x128xf32>
    tpu.vector_store %arg10[%c0_28, %c0_29], %44 {strides = array<i32>} : memref<128x128xf32, #tpu.memory_space<vmem>>, vector<128x128xf32>,
    return
  }
  func.func @transform_0(%arg0: i32) -> (i32, i32) {
    %c0_i32 = arith.constant 0 : i32
    %c0_i32_0 = arith.constant 0 : i32
    return %arg0, %c0_i32 : i32, i32
  }
  func.func @transform_1(%arg0: i32) -> (i32, i32) {
    %c0_i32 = arith.constant 0 : i32
    %c0_i32_0 = arith.constant 0 : i32
    %c0_i32_1 = arith.constant 0 : i32
    return %c0_i32, %c0_i32_0 : i32, i32
  }
  func.func @transform_2(%arg0: i32) -> (i32, i32) {
    %c0_i32 = arith.constant 0 : i32
    %c0_i32_0 = arith.constant 0 : i32
    %c0_i32_1 = arith.constant 0 : i32
    return %c0_i32, %c0_i32_0 : i32, i32
  }
  func.func @transform_3(%arg0: i32) -> (i32, i32) {
    %c0_i32 = arith.constant 0 : i32
    %c0_i32_0 = arith.constant 0 : i32
    %c0_i32_1 = arith.constant 0 : i32
    return %c0_i32, %c0_i32_0 : i32, i32
  }
  func.func @transform_4(%arg0: i32) -> (i32, i32) {
    %c0_i32 = arith.constant 0 : i32
    %c0_i32_0 = arith.constant 0 : i32
    %c0_i32_1 = arith.constant 0 : i32
    return %c0_i32, %c0_i32_0 : i32, i32
  }
  func.func @transform_5(%arg0: i32) -> (i32, i32) {
    %c0_i32 = arith.constant 0 : i32
    %c0_i32_0 = arith.constant 0 : i32
    %c0_i32_1 = arith.constant 0 : i32
    return %c0_i32, %c0_i32_0 : i32, i32
  }
  func.func @transform_6(%arg0: i32) -> (i32, i32) {
    %c0_i32 = arith.constant 0 : i32
    %c0_i32_0 = arith.constant 0 : i32
    %c0_i32_1 = arith.constant 0 : i32
    return %c0_i32, %c0_i32_0 : i32, i32
  }
  func.func @transform_7(%arg0: i32) -> (i32, i32) {
    %c0_i32 = arith.constant 0 : i32
    %c0_i32_0 = arith.constant 0 : i32
    %c0_i32_1 = arith.constant 0 : i32
    return %c0_i32, %c0_i32_0 : i32, i32
  }
  func.func @transform_8(%arg0: i32) -> (i32, i32) {
    %c0_i32 = arith.constant 0 : i32
    %c0_i32_0 = arith.constant 0 : i32
    %c0_i32_1 = arith.constant 0 : i32
    return %c0_i32, %c0_i32_0 : i32, i32
  }
  func.func @transform_9(%arg0: i32) -> (i32, i32) {
    %c0_i32 = arith.constant 0 : i32
    %c0_i32_0 = arith.constant 0 : i32
    return %arg0, %c0_i32 : i32, i32
  }
}

</mosaic_0001>

<llo_original>
// kernel: wdiscriminator_forward.1
$region0: #{wdiscriminator_forward.1}
  #allocation0 [shape = 'u32[]', space=smem, size = 0x4, offset = 0x4, fixed_abs, tag = 'smem constant byte address 0x4 - core index']
  #allocation1 [shape = 'u32[144,128]{1,0:T(1,128)}', space=vmem, size = 0x12000, scoped, tag = 'internal scratch']
  %s0 = inlined_call_operand.vmem [shape: f32[128,64], index: 0, kind: input, shape index: {}]
  %s1 = inlined_call_operand.vmem [shape: bf16[64,1024], index: 1, kind: input, shape index: {}]
  %s2 = inlined_call_operand.vmem [shape: f32[1,1024], index: 2, kind: input, shape index: {}]
  %s3 = inlined_call_operand.vmem [shape: bf16[1024,512], index: 3, kind: input, shape index: {}]
  %s4 = inlined_call_operand.vmem [shape: f32[1,512], index: 4, kind: input, shape index: {}]
  %s5 = inlined_call_operand.vmem [shape: bf16[512,256], index: 5, kind: input, shape index: {}]
  %s6 = inlined_call_operand.vmem [shape: f32[1,256], index: 6, kind: input, shape index: {}]
  %s7 = inlined_call_operand.vmem [shape: bf16[256,128], index: 7, kind: input, shape index: {}]
  %s8 = inlined_call_operand.vmem [shape: f32[1,128], index: 8, kind: input, shape index: {}]
  %s9 = inlined_call_operand.vmem [shape: f32[128,128], index: 9, kind: output, shape index: {}]
  %s10 = sld [smem:[#allocation0]]
  $region46: #{wdiscriminator_forward.1} parent=0
    _
  %s12 = ssub.s32 1, %s10
  %s13 = scalar_select 0, %s12, %s10
  // Predicated region
  $region2: #{wdiscriminator_forward.1} parent=0 // pred_check
    _
  $region3: #{wdiscriminator_forward.1} parent=0 // pred_check_branch
    %15 = sbr.rel (0) target = $region5
  $region4: #{wdiscriminator_forward.1} parent=0 // pred_region
    _
  $region5: #{wdiscriminator_forward.1} parent=0 // pred_fallthru
    _
  // Predicated region
  $region6: #{wdiscriminator_forward.1} parent=0 // pred_check
    _
  $region7: #{wdiscriminator_forward.1} parent=0 // pred_check_branch
    %17 = sbr.rel (0) target = $region9
  $region8: #{wdiscriminator_forward.1} parent=0 // pred_region
    _
  $region9: #{wdiscriminator_forward.1} parent=0 // pred_fallthru
    _
  // Predicated region
  $region10: #{wdiscriminator_forward.1} parent=0 // pred_check
    _
  $region11: #{wdiscriminator_forward.1} parent=0 // pred_check_branch
    %19 = sbr.rel (0) target = $region13
  $region12: #{wdiscriminator_forward.1} parent=0 // pred_region
    _
  $region13: #{wdiscriminator_forward.1} parent=0 // pred_fallthru
    _
  // Predicated region
  $region14: #{wdiscriminator_forward.1} parent=0 // pred_check
    _
  $region15: #{wdiscriminator_forward.1} parent=0 // pred_check_branch
    %21 = sbr.rel (0) target = $region17
  $region16: #{wdiscriminator_forward.1} parent=0 // pred_region
    _
  $region17: #{wdiscriminator_forward.1} parent=0 // pred_fallthru
    _
  // Predicated region
  $region18: #{wdiscriminator_forward.1} parent=0 // pred_check
    _
  $region19: #{wdiscriminator_forward.1} parent=0 // pred_check_branch
    %23 = sbr.rel (0) target = $region21
  $region20: #{wdiscriminator_forward.1} parent=0 // pred_region
    _
  $region21: #{wdiscriminator_forward.1} parent=0 // pred_fallthru
    _
  // Predicated region
  $region22: #{wdiscriminator_forward.1} parent=0 // pred_check
    _
  $region23: #{wdiscriminator_forward.1} parent=0 // pred_check_branch
    %25 = sbr.rel (0) target = $region25
  $region24: #{wdiscriminator_forward.1} parent=0 // pred_region
    _
  $region25: #{wdiscriminator_forward.1} parent=0 // pred_fallthru
    _
  // Predicated region
  $region26: #{wdiscriminator_forward.1} parent=0 // pred_check
    _
  $region27: #{wdiscriminator_forward.1} parent=0 // pred_check_branch
    %27 = sbr.rel (0) target = $region29
  $region28: #{wdiscriminator_forward.1} parent=0 // pred_region
    _
  $region29: #{wdiscriminator_forward.1} parent=0 // pred_fallthru
    _
  // Predicated region
  $region30: #{wdiscriminator_forward.1} parent=0 // pred_check
    _
  $region31: #{wdiscriminator_forward.1} parent=0 // pred_check_branch
    %29 = sbr.rel (0) target = $region33
  $region32: #{wdiscriminator_forward.1} parent=0 // pred_region
    _
  $region33: #{wdiscriminator_forward.1} parent=0 // pred_fallthru
    _
  // Predicated region
  $region34: #{wdiscriminator_forward.1} parent=0 // pred_check
    _
  $region35: #{wdiscriminator_forward.1} parent=0 // pred_check_branch
    %31 = sbr.rel (0) target = $region37
  $region36: #{wdiscriminator_forward.1} parent=0 // pred_region
    _
  $region37: #{wdiscriminator_forward.1} parent=0 // pred_fallthru
    _
  %v33 = vld [vmem:[%s0] sm:$0xff]
  %v34 = vld [vmem:[%s0 + $0x8] sm:$0xff]
  %v35 = vld [vmem:[%s0 + $0x10] sm:$0xff]
  %v36 = vld [vmem:[%s0 + $0x18] sm:$0xff]
  %v37 = vld [vmem:[%s0 + $0x20] sm:$0xff]
  %v38 = vld [vmem:[%s0 + $0x28] sm:$0xff]
  %v39 = vld [vmem:[%s0 + $0x30] sm:$0xff]
  %v40 = vld [vmem:[%s0 + $0x38] sm:$0xff]
  %v41 = vld [vmem:[%s0 + $0x40] sm:$0xff]
  %v42 = vld [vmem:[%s0 + $0x48] sm:$0xff]
  %v43 = vld [vmem:[%s0 + $0x50] sm:$0xff]
  %v44 = vld [vmem:[%s0 + $0x58] sm:$0xff]
  %v45 = vld [vmem:[%s0 + $0x60] sm:$0xff]
  %v46 = vld [vmem:[%s0 + $0x68] sm:$0xff]
  %v47 = vld [vmem:[%s0 + $0x70] sm:$0xff]
  %v48 = vld [vmem:[%s0 + $0x78] sm:$0xff]
  %v49 = vpack.c.bf16 %v34, %v33
  %v50 = vpack.c.bf16 %v36, %v35
  %v51 = vpack.c.bf16 %v38, %v37
  %v52 = vpack.c.bf16 %v40, %v39
  %v53 = vpack.c.bf16 %v42, %v41
  %v54 = vpack.c.bf16 %v44, %v43
  %v55 = vpack.c.bf16 %v46, %v45
  %v56 = vpack.c.bf16 %v48, %v47
  %v57 = vld [vmem:[%s1] sm:$0xff]
  %v58 = vld [vmem:[%s1 + $0x8] sm:$0xff]
  %v59 = vld [vmem:[%s1 + $0x10] sm:$0xff]
  %v60 = vld [vmem:[%s1 + $0x18] sm:$0xff]
  %v61 = vld [vmem:[%s1 + $0x20] sm:$0xff]
  %v62 = vld [vmem:[%s1 + $0x28] sm:$0xff]
  %v63 = vld [vmem:[%s1 + $0x30] sm:$0xff]
  %v64 = vld [vmem:[%s1 + $0x38] sm:$0xff]
  %v65 = vld [vmem:[%s1 + $0x40] sm:$0xff]
  %v66 = vld [vmem:[%s1 + $0x48] sm:$0xff]
  %v67 = vld [vmem:[%s1 + $0x50] sm:$0xff]
  %v68 = vld [vmem:[%s1 + $0x58] sm:$0xff]
  %v69 = vld [vmem:[%s1 + $0x60] sm:$0xff]
  %v70 = vld [vmem:[%s1 + $0x68] sm:$0xff]
  %v71 = vld [vmem:[%s1 + $0x70] sm:$0xff]
  %v72 = vld [vmem:[%s1 + $0x78] sm:$0xff]
  %v73 = vld [vmem:[%s1 + $0x80] sm:$0xff]
  %v74 = vld [vmem:[%s1 + $0x88] sm:$0xff]
  %v75 = vld [vmem:[%s1 + $0x90] sm:$0xff]
  %v76 = vld [vmem:[%s1 + $0x98] sm:$0xff]
  %v77 = vld [vmem:[%s1 + $0xa0] sm:$0xff]
  %v78 = vld [vmem:[%s1 + $0xa8] sm:$0xff]
  %v79 = vld [vmem:[%s1 + $0xb0] sm:$0xff]
  %v80 = vld [vmem:[%s1 + $0xb8] sm:$0xff]
  %v81 = vld [vmem:[%s1 + $0xc0] sm:$0xff]
  %v82 = vld [vmem:[%s1 + $0xc8] sm:$0xff]
  %v83 = vld [vmem:[%s1 + $0xd0] sm:$0xff]
  %v84 = vld [vmem:[%s1 + $0xd8] sm:$0xff]
  %v85 = vld [vmem:[%s1 + $0xe0] sm:$0xff]
  %v86 = vld [vmem:[%s1 + $0xe8] sm:$0xff]
  %v87 = vld [vmem:[%s1 + $0xf0] sm:$0xff]
  %v88 = vld [vmem:[%s1 + $0xf8] sm:$0xff]
  %v89 = vld [vmem:[%s2] sm:$0xff]
  %v91 = vlaneseq
  %v92 = vshrl.u32 %v91, 7
  %v93 = vsub.s32 0, %v92
  %v94 = vrot.slane %v89, %v93
  %v95 = vlaneseq
  %v96 = vshrl.u32 %v95, 7
  %v97 = vsub.s32 1, %v96
  %v98 = vrot.slane %v89, %v97
  %v99 = vlaneseq
  %v100 = vshrl.u32 %v99, 7
  %v101 = vsub.s32 2, %v100
  %v102 = vrot.slane %v89, %v101
  %v103 = vlaneseq
  %v104 = vshrl.u32 %v103, 7
  %v105 = vsub.s32 3, %v104
  %v106 = vrot.slane %v89, %v105
  %v107 = vlaneseq
  %v108 = vshrl.u32 %v107, 7
  %v109 = vsub.s32 4, %v108
  %v110 = vrot.slane %v89, %v109
  %v111 = vlaneseq
  %v112 = vshrl.u32 %v111, 7
  %v113 = vsub.s32 5, %v112
  %v114 = vrot.slane %v89, %v113
  %v115 = vlaneseq
  %v116 = vshrl.u32 %v115, 7
  %v117 = vsub.s32 6, %v116
  %v118 = vrot.slane %v89, %v117
  %v119 = vlaneseq
  %v120 = vshrl.u32 %v119, 7
  %v121 = vsub.s32 7, %v120
  %v122 = vrot.slane %v89, %v121
  %v163 = vunpack.c.l.b16 %v57
  %v164 = vunpack.c.h.b16 %v57
  %v165 = vunpack.c.l.b16 %v58
  %v166 = vunpack.c.h.b16 %v58
  %v167 = vunpack.c.l.b16 %v59
  %v168 = vunpack.c.h.b16 %v59
  %v169 = vunpack.c.l.b16 %v60
  %v170 = vunpack.c.h.b16 %v60
  %v171 = vunpack.c.l.b16 %v61
  %v172 = vunpack.c.h.b16 %v61
  %v173 = vunpack.c.l.b16 %v62
  %v174 = vunpack.c.h.b16 %v62
  %v175 = vunpack.c.l.b16 %v63
  %v176 = vunpack.c.h.b16 %v63
  %v177 = vunpack.c.l.b16 %v64
  %v178 = vunpack.c.h.b16 %v64
  %v179 = vunpack.c.l.b16 %v65
  %v180 = vunpack.c.h.b16 %v65
  %v181 = vunpack.c.l.b16 %v66
  %v182 = vunpack.c.h.b16 %v66
  %v183 = vunpack.c.l.b16 %v67
  %v184 = vunpack.c.h.b16 %v67
  %v185 = vunpack.c.l.b16 %v68
  %v186 = vunpack.c.h.b16 %v68
  %v187 = vunpack.c.l.b16 %v69
  %v188 = vunpack.c.h.b16 %v69
  %v189 = vunpack.c.l.b16 %v70
  %v190 = vunpack.c.h.b16 %v70
  %v191 = vunpack.c.l.b16 %v71
  %v192 = vunpack.c.h.b16 %v71
  %v193 = vunpack.c.l.b16 %v72
  %v194 = vunpack.c.h.b16 %v72
  %v195 = vunpack.c.l.b16 %v73
  %v196 = vunpack.c.h.b16 %v73
  %v197 = vunpack.c.l.b16 %v74
  %v198 = vunpack.c.h.b16 %v74
  %v199 = vunpack.c.l.b16 %v75
  %v200 = vunpack.c.h.b16 %v75
  %v201 = vunpack.c.l.b16 %v76
  %v202 = vunpack.c.h.b16 %v76
  %v203 = vunpack.c.l.b16 %v77
  %v204 = vunpack.c.h.b16 %v77
  %v205 = vunpack.c.l.b16 %v78
  %v206 = vunpack.c.h.b16 %v78
  %v207 = vunpack.c.l.b16 %v79
  %v208 = vunpack.c.h.b16 %v79
  %v209 = vunpack.c.l.b16 %v80
  %v210 = vunpack.c.h.b16 %v80
  %v211 = vunpack.c.l.b16 %v81
  %v212 = vunpack.c.h.b16 %v81
  %v213 = vunpack.c.l.b16 %v82
  %v214 = vunpack.c.h.b16 %v82
  %v215 = vunpack.c.l.b16 %v83
  %v216 = vunpack.c.h.b16 %v83
  %v217 = vunpack.c.l.b16 %v84
  %v218 = vunpack.c.h.b16 %v84
  %v219 = vunpack.c.l.b16 %v85
  %v220 = vunpack.c.h.b16 %v85
  %v221 = vunpack.c.l.b16 %v86
  %v222 = vunpack.c.h.b16 %v86
  %v223 = vunpack.c.l.b16 %v87
  %v224 = vunpack.c.h.b16 %v87
  %v225 = vunpack.c.l.b16 %v88
  %v226 = vunpack.c.h.b16 %v88
  %v227 = vpack.c.b16 %v171, %v163
  %v228 = vpack.c.b16 %v172, %v164
  %v229 = vpack.c.b16 %v173, %v165
  %v230 = vpack.c.b16 %v174, %v166
  %v231 = vpack.c.b16 %v175, %v167
  %v232 = vpack.c.b16 %v176, %v168
  %v233 = vpack.c.b16 %v177, %v169
  %v234 = vpack.c.b16 %v178, %v170
  %v235 = vpack.c.b16 %v187, %v179
  %v236 = vpack.c.b16 %v188, %v180
  %v237 = vpack.c.b16 %v189, %v181
  %v238 = vpack.c.b16 %v190, %v182
  %v239 = vpack.c.b16 %v191, %v183
  %v240 = vpack.c.b16 %v192, %v184
  %v241 = vpack.c.b16 %v193, %v185
  %v242 = vpack.c.b16 %v194, %v186
  %v243 = vpack.c.b16 %v203, %v195
  %v244 = vpack.c.b16 %v204, %v196
  %v245 = vpack.c.b16 %v205, %v197
  %v246 = vpack.c.b16 %v206, %v198
  %v247 = vpack.c.b16 %v207, %v199
  %v248 = vpack.c.b16 %v208, %v200
  %v249 = vpack.c.b16 %v209, %v201
  %v250 = vpack.c.b16 %v210, %v202
  %v251 = vpack.c.b16 %v219, %v211
  %v252 = vpack.c.b16 %v220, %v212
  %v253 = vpack.c.b16 %v221, %v213
  %v254 = vpack.c.b16 %v222, %v214
  %v255 = vpack.c.b16 %v223, %v215
  %v256 = vpack.c.b16 %v224, %v216
  %v257 = vpack.c.b16 %v225, %v217
  %v258 = vpack.c.b16 %v226, %v218
  %vm291 = vcmask 523264
  %v293 = vsel %vm291, %v49, 0
  %v296 = vsel %vm291, %v50, 0
  %v299 = vsel %vm291, %v51, 0
  %v302 = vsel %vm291, %v52, 0
  %v305 = vsel %vm291, %v53, 0
  %v308 = vsel %vm291, %v54, 0
  %v311 = vsel %vm291, %v55, 0
  %v314 = vsel %vm291, %v56, 0
  %316 = vmatprep.subr.bf16.mxu0 %v228
  %317 = vmatpush1.bf16.msra.mxu0 %v227
  %318 = vmatprep.subr.bf16.mxu0 %v236
  %319 = vmatpush1.bf16.msra.mxu0 %v235
  %320 = vmatprep.subr.bf16.mxu0 %v244
  %321 = vmatpush1.bf16.msra.mxu0 %v243
  %322 = vmatprep.subr.bf16.mxu0 %v252
  %323 = vmatpush1.bf16.msra.mxu0 %v251
  %324 = vmatprep.subr.bf16.mxu0 0
  %325 = vmatpush1.bf16.msra.mxu0 0
  %326 = vmatprep.subr.bf16.mxu0 0
  %327 = vmatpush1.bf16.msra.mxu0 0
  %328 = vmatprep.subr.bf16.mxu0 0
  %329 = vmatpush1.bf16.msra.mxu0 0
  %330 = vmatprep.subr.bf16.mxu0 0
  %331 = vmatpush1.bf16.msra.mxu0 0
  %332 = vmatprep.subr.bf16.mxu0 0
  %333 = vmatpush1.bf16.msra.mxu0 0
  %334 = vmatprep.subr.bf16.mxu0 0
  %335 = vmatpush1.bf16.msra.mxu0 0
  %336 = vmatprep.subr.bf16.mxu0 0
  %337 = vmatpush1.bf16.msra.mxu0 0
  %338 = vmatprep.subr.bf16.mxu0 0
  %339 = vmatpush1.bf16.msra.mxu0 0
  %340 = vmatprep.subr.bf16.mxu0 0
  %341 = vmatpush1.bf16.msra.mxu0 0
  %342 = vmatprep.subr.bf16.mxu0 0
  %343 = vmatpush1.bf16.msra.mxu0 0
  %344 = vmatprep.subr.bf16.mxu0 0
  %345 = vmatpush1.bf16.msra.mxu0 0
  %346 = vmatprep.subr.bf16.mxu0 0
  %347 = vmatpush1.bf16.msra.mxu0 0
  %348 = vmatprep.mubr.bf16.mxu0 0
  %349 = vmatmul.mubr.bf16.gmra.mrb[0].mxu0 %v293
  %v350 = vpop.f32.mrb[0].mxu0
  %v351 = vadd.f32 %v94, %v350
  %v352 = vpop.f32.mrb[0].mxu0
  %v353 = vadd.f32 %v98, %v352
  %v354 = vpop.f32.mrb[0].mxu0
  %v355 = vadd.f32 %v94, %v354
  %v356 = vpop.f32.mrb[0].mxu0
  %v357 = vadd.f32 %v98, %v356
  %358 = vmatprep.mubr.bf16.mxu0 0
  %359 = vmatmul.mubr.bf16.gmra.mrb[0].mxu0 %v296
  %v360 = vpop.f32.mrb[0].mxu0
  %v361 = vadd.f32 %v94, %v360
  %v362 = vpop.f32.mrb[0].mxu0
  %v363 = vadd.f32 %v98, %v362
  %v364 = vpop.f32.mrb[0].mxu0
  %v365 = vadd.f32 %v94, %v364
  %v366 = vpop.f32.mrb[0].mxu0
  %v367 = vadd.f32 %v98, %v366
  %368 = vmatprep.mubr.bf16.mxu0 0
  %369 = vmatmul.mubr.bf16.gmra.mrb[0].mxu0 %v299
  %v370 = vpop.f32.mrb[0].mxu0
  %v371 = vadd.f32 %v94, %v370
  %v372 = vpop.f32.mrb[0].mxu0
  %v373 = vadd.f32 %v98, %v372
  %v374 = vpop.f32.mrb[0].mxu0
  %v375 = vadd.f32 %v94, %v374
  %v376 = vpop.f32.mrb[0].mxu0
  %v377 = vadd.f32 %v98, %v376
  %378 = vmatprep.mubr.bf16.mxu0 0
  %379 = vmatmul.mubr.bf16.gmra.mrb[0].mxu0 %v302
  %v380 = vpop.f32.mrb[0].mxu0
  %v381 = vadd.f32 %v94, %v380
  %v382 = vpop.f32.mrb[0].mxu0
  %v383 = vadd.f32 %v98, %v382
  %v384 = vpop.f32.mrb[0].mxu0
  %v385 = vadd.f32 %v94, %v384
  %v386 = vpop.f32.mrb[0].mxu0
  %v387 = vadd.f32 %v98, %v386
  %388 = vmatprep.mubr.bf16.mxu0 0
  %389 = vmatmul.mubr.bf16.gmra.mrb[0].mxu0 %v305
  %v390 = vpop.f32.mrb[0].mxu0
  %v391 = vadd.f32 %v94, %v390
  %v392 = vpop.f32.mrb[0].mxu0
  %v393 = vadd.f32 %v98, %v392
  %v394 = vpop.f32.mrb[0].mxu0
  %v395 = vadd.f32 %v94, %v394
  %v396 = vpop.f32.mrb[0].mxu0
  %v397 = vadd.f32 %v98, %v396
  %398 = vmatprep.mubr.bf16.mxu0 0
  %399 = vmatmul.mubr.bf16.gmra.mrb[0].mxu0 %v308
  %v400 = vpop.f32.mrb[0].mxu0
  %v401 = vadd.f32 %v94, %v400
  %v402 = vpop.f32.mrb[0].mxu0
  %v403 = vadd.f32 %v98, %v402
  %v404 = vpop.f32.mrb[0].mxu0
  %v405 = vadd.f32 %v94, %v404
  %v406 = vpop.f32.mrb[0].mxu0
  %v407 = vadd.f32 %v98, %v406
  %408 = vmatprep.mubr.bf16.mxu0 0
  %409 = vmatmul.mubr.bf16.gmra.mrb[0].mxu0 %v311
  %v410 = vpop.f32.mrb[0].mxu0
  %v411 = vadd.f32 %v94, %v410
  %v412 = vpop.f32.mrb[0].mxu0
  %v413 = vadd.f32 %v98, %v412
  %v414 = vpop.f32.mrb[0].mxu0
  %v415 = vadd.f32 %v94, %v414
  %v416 = vpop.f32.mrb[0].mxu0
  %v417 = vadd.f32 %v98, %v416
  %418 = vmatprep.mubr.bf16.mxu0 0
  %419 = vmatmul.mubr.bf16.gmra.mrb[0].mxu0 %v314
  %v420 = vpop.f32.mrb[0].mxu0
  %v421 = vadd.f32 %v94, %v420
  %v422 = vpop.f32.mrb[0].mxu0
  %v423 = vadd.f32 %v98, %v422
  %v424 = vpop.f32.mrb[0].mxu0
  %v425 = vadd.f32 %v94, %v424
  %v426 = vpop.f32.mrb[0].mxu0
  %v427 = vadd.f32 %v98, %v426
  %428 = vdwg.mxu0
  %429 = vmatprep.subr.bf16.mxu0 %v230
  %430 = vmatpush1.bf16.msra.mxu0 %v229
  %431 = vmatprep.subr.bf16.mxu0 %v238
  %432 = vmatpush1.bf16.msra.mxu0 %v237
  %433 = vmatprep.subr.bf16.mxu0 %v246
  %434 = vmatpush1.bf16.msra.mxu0 %v245
  %435 = vmatprep.subr.bf16.mxu0 %v254
  %436 = vmatpush1.bf16.msra.mxu0 %v253
  %437 = vmatprep.subr.bf16.mxu0 0
  %438 = vmatpush1.bf16.msra.mxu0 0
  %439 = vmatprep.subr.bf16.mxu0 0
  %440 = vmatpush1.bf16.msra.mxu0 0
  %441 = vmatprep.subr.bf16.mxu0 0
  %442 = vmatpush1.bf16.msra.mxu0 0
  %443 = vmatprep.subr.bf16.mxu0 0
  %444 = vmatpush1.bf16.msra.mxu0 0
  %445 = vmatprep.subr.bf16.mxu0 0
  %446 = vmatpush1.bf16.msra.mxu0 0
  %447 = vmatprep.subr.bf16.mxu0 0
  %448 = vmatpush1.bf16.msra.mxu0 0
  %449 = vmatprep.subr.bf16.mxu0 0
  %450 = vmatpush1.bf16.msra.mxu0 0
  %451 = vmatprep.subr.bf16.mxu0 0
  %452 = vmatpush1.bf16.msra.mxu0 0
  %453 = vmatprep.subr.bf16.mxu0 0
  %454 = vmatpush1.bf16.msra.mxu0 0
  %455 = vmatprep.subr.bf16.mxu0 0
  %456 = vmatpush1.bf16.msra.mxu0 0
  %457 = vmatprep.subr.bf16.mxu0 0
  %458 = vmatpush1.bf16.msra.mxu0 0
  %459 = vmatprep.subr.bf16.mxu0 0
  %460 = vmatpush1.bf16.msra.mxu0 0
  %461 = vmatprep.mubr.bf16.mxu0 0
  %462 = vmatmul.mubr.bf16.gmra.mrb[0].mxu0 %v293
  %v463 = vpop.f32.mrb[0].mxu0
  %v464 = vadd.f32 %v102, %v463
  %v465 = vpop.f32.mrb[0].mxu0
  %v466 = vadd.f32 %v106, %v465
  %v467 = vpop.f32.mrb[0].mxu0
  %v468 = vadd.f32 %v102, %v467
  %v469 = vpop.f32.mrb[0].mxu0
  %v470 = vadd.f32 %v106, %v469
  %471 = vmatprep.mubr.bf16.mxu0 0
  %472 = vmatmul.mubr.bf16.gmra.mrb[0].mxu0 %v296
  %v473 = vpop.f32.mrb[0].mxu0
  %v474 = vadd.f32 %v102, %v473
  %v475 = vpop.f32.mrb[0].mxu0
  %v476 = vadd.f32 %v106, %v475
  %v477 = vpop.f32.mrb[0].mxu0
  %v478 = vadd.f32 %v102, %v477
  %v479 = vpop.f32.mrb[0].mxu0
  %v480 = vadd.f32 %v106, %v479
  %481 = vmatprep.mubr.bf16.mxu0 0
  %482 = vmatmul.mubr.bf16.gmra.mrb[0].mxu0 %v299
  %v483 = vpop.f32.mrb[0].mxu0
  %v484 = vadd.f32 %v102, %v483
  %v485 = vpop.f32.mrb[0].mxu0
  %v486 = vadd.f32 %v106, %v485
  %v487 = vpop.f32.mrb[0].mxu0
  %v488 = vadd.f32 %v102, %v487
  %v489 = vpop.f32.mrb[0].mxu0
  %v490 = vadd.f32 %v106, %v489
  %491 = vmatprep.mubr.bf16.mxu0 0
  %492 = vmatmul.mubr.bf16.gmra.mrb[0].mxu0 %v302
  %v493 = vpop.f32.mrb[0].mxu0
  %v494 = vadd.f32 %v102, %v493
  %v495 = vpop.f32.mrb[0].mxu0
  %v496 = vadd.f32 %v106, %v495
  %v497 = vpop.f32.mrb[0].mxu0
  %v498 = vadd.f32 %v102, %v497
  %v499 = vpop.f32.mrb[0].mxu0
  %v500 = vadd.f32 %v106, %v499
  %501 = vmatprep.mubr.bf16.mxu0 0
  %502 = vmatmul.mubr.bf16.gmra.mrb[0].mxu0 %v305
  %v503 = vpop.f32.mrb[0].mxu0
  %v504 = vadd.f32 %v102, %v503
  %v505 = vpop.f32.mrb[0].mxu0
  %v506 = vadd.f32 %v106, %v505
  %v507 = vpop.f32.mrb[0].mxu0
  %v508 = vadd.f32 %v102, %v507
  %v509 = vpop.f32.mrb[0].mxu0
  %v510 = vadd.f32 %v106, %v509
  %511 = vmatprep.mubr.bf16.mxu0 0
  %512 = vmatmul.mubr.bf16.gmra.mrb[0].mxu0 %v308
  %v513 = vpop.f32.mrb[0].mxu0
  %v514 = vadd.f32 %v102, %v513
  %v515 = vpop.f32.mrb[0].mxu0
  %v516 = vadd.f32 %v106, %v515
  %v517 = vpop.f32.mrb[0].mxu0
  %v518 = vadd.f32 %v102, %v517
  %v519 = vpop.f32.mrb[0].mxu0
  %v520 = vadd.f32 %v106, %v519
  %521 = vmatprep.mubr.bf16.mxu0 0
  %522 = vmatmul.mubr.bf16.gmra.mrb[0].mxu0 %v311
  %v523 = vpop.f32.mrb[0].mxu0
  %v524 = vadd.f32 %v102, %v523
  %v525 = vpop.f32.mrb[0].mxu0
  %v526 = vadd.f32 %v106, %v525
  %v527 = vpop.f32.mrb[0].mxu0
  %v528 = vadd.f32 %v102, %v527
  %v529 = vpop.f32.mrb[0].mxu0
  %v530 = vadd.f32 %v106, %v529
  %531 = vmatprep.mubr.bf16.mxu0 0
  %532 = vmatmul.mubr.bf16.gmra.mrb[0].mxu0 %v314
  %v533 = vpop.f32.mrb[0].mxu0
  %v534 = vadd.f32 %v102, %v533
  %v535 = vpop.f32.mrb[0].mxu0
  %v536 = vadd.f32 %v106, %v535
  %v537 = vpop.f32.mrb[0].mxu0
  %v538 = vadd.f32 %v102, %v537
  %v539 = vpop.f32.mrb[0].mxu0
  %v540 = vadd.f32 %v106, %v539
  %541 = vdwg.mxu0
  %542 = vmatprep.subr.bf16.mxu0 %v232
  %543 = vmatpush1.bf16.msra.mxu0 %v231
  %544 = vmatprep.subr.bf16.mxu0 %v240
  %545 = vmatpush1.bf16.msra.mxu0 %v239
  %546 = vmatprep.subr.bf16.mxu0 %v248
  %547 = vmatpush1.bf16.msra.mxu0 %v247
  %548 = vmatprep.subr.bf16.mxu0 %v256
  %549 = vmatpush1.bf16.msra.mxu0 %v255
  %550 = vmatprep.subr.bf16.mxu0 0
  %551 = vmatpush1.bf16.msra.mxu0 0
  %552 = vmatprep.subr.bf16.mxu0 0
  %553 = vmatpush1.bf16.msra.mxu0 0
  %554 = vmatprep.subr.bf16.mxu0 0
  %555 = vmatpush1.bf16.msra.mxu0 0
  %556 = vmatprep.subr.bf16.mxu0 0
  %557 = vmatpush1.bf16.msra.mxu0 0
  %558 = vmatprep.subr.bf16.mxu0 0
  %559 = vmatpush1.bf16.msra.mxu0 0
  %560 = vmatprep.subr.bf16.mxu0 0
  %561 = vmatpush1.bf16.msra.mxu0 0
  %562 = vmatprep.subr.bf16.mxu0 0
  %563 = vmatpush1.bf16.msra.mxu0 0
  %564 = vmatprep.subr.bf16.mxu0 0
  %565 = vmatpush1.bf16.msra.mxu0 0
  %566 = vmatprep.subr.bf16.mxu0 0
  %567 = vmatpush1.bf16.msra.mxu0 0
  %568 = vmatprep.subr.bf16.mxu0 0
  %569 = vmatpush1.bf16.msra.mxu0 0
  %570 = vmatprep.subr.bf16.mxu0 0
  %571 = vmatpush1.bf16.msra.mxu0 0
  %572 = vmatprep.subr.bf16.mxu0 0
  %573 = vmatpush1.bf16.msra.mxu0 0
  %574 = vmatprep.mubr.bf16.mxu0 0
  %575 = vmatmul.mubr.bf16.gmra.mrb[0].mxu0 %v293
  %v576 = vpop.f32.mrb[0].mxu0
  %v577 = vadd.f32 %v110, %v576
  %v578 = vpop.f32.mrb[0].mxu0
  %v579 = vadd.f32 %v114, %v578
  %v580 = vpop.f32.mrb[0].mxu0
  %v581 = vadd.f32 %v110, %v580
  %v582 = vpop.f32.mrb[0].mxu0
  %v583 = vadd.f32 %v114, %v582
  %584 = vmatprep.mubr.bf16.mxu0 0
  %585 = vmatmul.mubr.bf16.gmra.mrb[0].mxu0 %v296
  %v586 = vpop.f32.mrb[0].mxu0
  %v587 = vadd.f32 %v110, %v586
  %v588 = vpop.f32.mrb[0].mxu0
  %v589 = vadd.f32 %v114, %v588
  %v590 = vpop.f32.mrb[0].mxu0
  %v591 = vadd.f32 %v110, %v590
  %v592 = vpop.f32.mrb[0].mxu0
  %v593 = vadd.f32 %v114, %v592
  %594 = vmatprep.mubr.bf16.mxu0 0
  %595 = vmatmul.mubr.bf16.gmra.mrb[0].mxu0 %v299
  %v596 = vpop.f32.mrb[0].mxu0
  %v597 = vadd.f32 %v110, %v596
  %v598 = vpop.f32.mrb[0].mxu0
  %v599 = vadd.f32 %v114, %v598
  %v600 = vpop.f32.mrb[0].mxu0
  %v601 = vadd.f32 %v110, %v600
  %v602 = vpop.f32.mrb[0].mxu0
  %v603 = vadd.f32 %v114, %v602
  %604 = vmatprep.mubr.bf16.mxu0 0
  %605 = vmatmul.mubr.bf16.gmra.mrb[0].mxu0 %v302
  %v606 = vpop.f32.mrb[0].mxu0
  %v607 = vadd.f32 %v110, %v606
  %v608 = vpop.f32.mrb[0].mxu0
  %v609 = vadd.f32 %v114, %v608
  %v610 = vpop.f32.mrb[0].mxu0
  %v611 = vadd.f32 %v110, %v610
  %v612 = vpop.f32.mrb[0].mxu0
  %v613 = vadd.f32 %v114, %v612
  %614 = vmatprep.mubr.bf16.mxu0 0
  %615 = vmatmul.mubr.bf16.gmra.mrb[0].mxu0 %v305
  %v616 = vpop.f32.mrb[0].mxu0
  %v617 = vadd.f32 %v110, %v616
  %v618 = vpop.f32.mrb[0].mxu0
  %v619 = vadd.f32 %v114, %v618
  %v620 = vpop.f32.mrb[0].mxu0
  %v621 = vadd.f32 %v110, %v620
  %v622 = vpop.f32.mrb[0].mxu0
  %v623 = vadd.f32 %v114, %v622
  %624 = vmatprep.mubr.bf16.mxu0 0
  %625 = vmatmul.mubr.bf16.gmra.mrb[0].mxu0 %v308
  %v626 = vpop.f32.mrb[0].mxu0
  %v627 = vadd.f32 %v110, %v626
  %v628 = vpop.f32.mrb[0].mxu0
  %v629 = vadd.f32 %v114, %v628
  %v630 = vpop.f32.mrb[0].mxu0
  %v631 = vadd.f32 %v110, %v630
  %v632 = vpop.f32.mrb[0].mxu0
  %v633 = vadd.f32 %v114, %v632
  %634 = vmatprep.mubr.bf16.mxu0 0
  %635 = vmatmul.mubr.bf16.gmra.mrb[0].mxu0 %v311
  %v636 = vpop.f32.mrb[0].mxu0
  %v637 = vadd.f32 %v110, %v636
  %v638 = vpop.f32.mrb[0].mxu0
  %v639 = vadd.f32 %v114, %v638
  %v640 = vpop.f32.mrb[0].mxu0
  %v641 = vadd.f32 %v110, %v640
  %v642 = vpop.f32.mrb[0].mxu0
  %v643 = vadd.f32 %v114, %v642
  %644 = vmatprep.mubr.bf16.mxu0 0
  %645 = vmatmul.mubr.bf16.gmra.mrb[0].mxu0 %v314
  %v646 = vpop.f32.mrb[0].mxu0
  %v647 = vadd.f32 %v110, %v646
  %v648 = vpop.f32.mrb[0].mxu0
  %v649 = vadd.f32 %v114, %v648
  %v650 = vpop.f32.mrb[0].mxu0
  %v651 = vadd.f32 %v110, %v650
  %v652 = vpop.f32.mrb[0].mxu0
  %v653 = vadd.f32 %v114, %v652
  %654 = vdwg.mxu0
  %655 = vmatprep.subr.bf16.mxu0 %v234
  %656 = vmatpush1.bf16.msra.mxu0 %v233
  %657 = vmatprep.subr.bf16.mxu0 %v242
  %658 = vmatpush1.bf16.msra.mxu0 %v241
  %659 = vmatprep.subr.bf16.mxu0 %v250
  %660 = vmatpush1.bf16.msra.mxu0 %v249
  %661 = vmatprep.subr.bf16.mxu0 %v258
  %662 = vmatpush1.bf16.msra.mxu0 %v257
  %663 = vmatprep.subr.bf16.mxu0 0
  %664 = vmatpush1.bf16.msra.mxu0 0
  %665 = vmatprep.subr.bf16.mxu0 0
  %666 = vmatpush1.bf16.msra.mxu0 0
  %667 = vmatprep.subr.bf16.mxu0 0
  %668 = vmatpush1.bf16.msra.mxu0 0
  %669 = vmatprep.subr.bf16.mxu0 0
  %670 = vmatpush1.bf16.msra.mxu0 0
  %671 = vmatprep.subr.bf16.mxu0 0
  %672 = vmatpush1.bf16.msra.mxu0 0
  %673 = vmatprep.subr.bf16.mxu0 0
  %674 = vmatpush1.bf16.msra.mxu0 0
  %675 = vmatprep.subr.bf16.mxu0 0
  %676 = vmatpush1.bf16.msra.mxu0 0
  %677 = vmatprep.subr.bf16.mxu0 0
  %678 = vmatpush1.bf16.msra.mxu0 0
  %679 = vmatprep.subr.bf16.mxu0 0
  %680 = vmatpush1.bf16.msra.mxu0 0
  %681 = vmatprep.subr.bf16.mxu0 0
  %682 = vmatpush1.bf16.msra.mxu0 0
  %683 = vmatprep.subr.bf16.mxu0 0
  %684 = vmatpush1.bf16.msra.mxu0 0
  %685 = vmatprep.subr.bf16.mxu0 0
  %686 = vmatpush1.bf16.msra.mxu0 0
  %687 = vmatprep.mubr.bf16.mxu0 0
  %688 = vmatmul.mubr.bf16.gmra.mrb[0].mxu0 %v293
  %v689 = vpop.f32.mrb[0].mxu0
  %v690 = vadd.f32 %v118, %v689
  %v691 = vpop.f32.mrb[0].mxu0
  %v692 = vadd.f32 %v122, %v691
  %v693 = vpop.f32.mrb[0].mxu0
  %v694 = vadd.f32 %v118, %v693
  %v695 = vpop.f32.mrb[0].mxu0
  %v696 = vadd.f32 %v122, %v695
  %697 = vmatprep.mubr.bf16.mxu0 0
  %698 = vmatmul.mubr.bf16.gmra.mrb[0].mxu0 %v296
  %v699 = vpop.f32.mrb[0].mxu0
  %v700 = vadd.f32 %v118, %v699
  %v701 = vpop.f32.mrb[0].mxu0
  %v702 = vadd.f32 %v122, %v701
  %v703 = vpop.f32.mrb[0].mxu0
  %v704 = vadd.f32 %v118, %v703
  %v705 = vpop.f32.mrb[0].mxu0
  %v706 = vadd.f32 %v122, %v705
  %707 = vmatprep.mubr.bf16.mxu0 0
  %708 = vmatmul.mubr.bf16.gmra.mrb[0].mxu0 %v299
  %v709 = vpop.f32.mrb[0].mxu0
  %v710 = vadd.f32 %v118, %v709
  %v711 = vpop.f32.mrb[0].mxu0
  %v712 = vadd.f32 %v122, %v711
  %v713 = vpop.f32.mrb[0].mxu0
  %v714 = vadd.f32 %v118, %v713
  %v715 = vpop.f32.mrb[0].mxu0
  %v716 = vadd.f32 %v122, %v715
  %717 = vmatprep.mubr.bf16.mxu0 0
  %718 = vmatmul.mubr.bf16.gmra.mrb[0].mxu0 %v302
  %v719 = vpop.f32.mrb[0].mxu0
  %v720 = vadd.f32 %v118, %v719
  %v721 = vpop.f32.mrb[0].mxu0
  %v722 = vadd.f32 %v122, %v721
  %v723 = vpop.f32.mrb[0].mxu0
  %v724 = vadd.f32 %v118, %v723
  %v725 = vpop.f32.mrb[0].mxu0
  %v726 = vadd.f32 %v122, %v725
  %727 = vmatprep.mubr.bf16.mxu0 0
  %728 = vmatmul.mubr.bf16.gmra.mrb[0].mxu0 %v305
  %v729 = vpop.f32.mrb[0].mxu0
  %v730 = vadd.f32 %v118, %v729
  %v731 = vpop.f32.mrb[0].mxu0
  %v732 = vadd.f32 %v122, %v731
  %v733 = vpop.f32.mrb[0].mxu0
  %v734 = vadd.f32 %v118, %v733
  %v735 = vpop.f32.mrb[0].mxu0
  %v736 = vadd.f32 %v122, %v735
  %737 = vmatprep.mubr.bf16.mxu0 0
  %738 = vmatmul.mubr.bf16.gmra.mrb[0].mxu0 %v308
  %v739 = vpop.f32.mrb[0].mxu0
  %v740 = vadd.f32 %v118, %v739
  %v741 = vpop.f32.mrb[0].mxu0
  %v742 = vadd.f32 %v122, %v741
  %v743 = vpop.f32.mrb[0].mxu0
  %v744 = vadd.f32 %v118, %v743
  %v745 = vpop.f32.mrb[0].mxu0
  %v746 = vadd.f32 %v122, %v745
  %747 = vmatprep.mubr.bf16.mxu0 0
  %748 = vmatmul.mubr.bf16.gmra.mrb[0].mxu0 %v311
  %v749 = vpop.f32.mrb[0].mxu0
  %v750 = vadd.f32 %v118, %v749
  %v751 = vpop.f32.mrb[0].mxu0
  %v752 = vadd.f32 %v122, %v751
  %v753 = vpop.f32.mrb[0].mxu0
  %v754 = vadd.f32 %v118, %v753
  %v755 = vpop.f32.mrb[0].mxu0
  %v756 = vadd.f32 %v122, %v755
  %757 = vmatprep.mubr.bf16.mxu0 0
  %758 = vmatmul.mubr.bf16.gmra.mrb[0].mxu0 %v314
  %v759 = vpop.f32.mrb[0].mxu0
  %v760 = vadd.f32 %v118, %v759
  %v761 = vpop.f32.mrb[0].mxu0
  %v762 = vadd.f32 %v122, %v761
  %v763 = vpop.f32.mrb[0].mxu0
  %v764 = vadd.f32 %v118, %v763
  %v765 = vpop.f32.mrb[0].mxu0
  %v766 = vadd.f32 %v122, %v765
  %767 = vdwg.mxu0
  %vm768 = vcmp.gt.f32.partialorder %v351, 0.0
  %vm769 = vcmp.gt.f32.partialorder %v353, 0.0
  %vm770 = vcmp.gt.f32.partialorder %v464, 0.0
  %vm771 = vcmp.gt.f32.partialorder %v466, 0.0
  %vm772 = vcmp.gt.f32.partialorder %v577, 0.0
  %vm773 = vcmp.gt.f32.partialorder %v579, 0.0
  %vm774 = vcmp.gt.f32.partialorder %v690, 0.0
  %vm775 = vcmp.gt.f32.partialorder %v692, 0.0
  %vm776 = vcmp.gt.f32.partialorder %v355, 0.0
  %vm777 = vcmp.gt.f32.partialorder %v357, 0.0
  %vm778 = vcmp.gt.f32.partialorder %v468, 0.0
  %vm779 = vcmp.gt.f32.partialorder %v470, 0.0
  %vm780 = vcmp.gt.f32.partialorder %v581, 0.0
  %vm781 = vcmp.gt.f32.partialorder %v583, 0.0
  %vm782 = vcmp.gt.f32.partialorder %v694, 0.0
  %vm783 = vcmp.gt.f32.partialorder %v696, 0.0
  %vm784 = vcmp.gt.f32.partialorder %v361, 0.0
  %vm785 = vcmp.gt.f32.partialorder %v363, 0.0
  %vm786 = vcmp.gt.f32.partialorder %v474, 0.0
  %vm787 = vcmp.gt.f32.partialorder %v476, 0.0
  %vm788 = vcmp.gt.f32.partialorder %v587, 0.0
  %vm789 = vcmp.gt.f32.partialorder %v589, 0.0
  %vm790 = vcmp.gt.f32.partialorder %v700, 0.0
  %vm791 = vcmp.gt.f32.partialorder %v702, 0.0
  %vm792 = vcmp.gt.f32.partialorder %v365, 0.0
  %vm793 = vcmp.gt.f32.partialorder %v367, 0.0
  %vm794 = vcmp.gt.f32.partialorder %v478, 0.0
  %vm795 = vcmp.gt.f32.partialorder %v480, 0.0
  %vm796 = vcmp.gt.f32.partialorder %v591, 0.0
  %vm797 = vcmp.gt.f32.partialorder %v593, 0.0
  %vm798 = vcmp.gt.f32.partialorder %v704, 0.0
  %vm799 = vcmp.gt.f32.partialorder %v706, 0.0
  %vm800 = vcmp.gt.f32.partialorder %v371, 0.0
  %vm801 = vcmp.gt.f32.partialorder %v373, 0.0
  %vm802 = vcmp.gt.f32.partialorder %v484, 0.0
  %vm803 = vcmp.gt.f32.partialorder %v486, 0.0
  %vm804 = vcmp.gt.f32.partialorder %v597, 0.0
  %vm805 = vcmp.gt.f32.partialorder %v599, 0.0
  %vm806 = vcmp.gt.f32.partialorder %v710, 0.0
  %vm807 = vcmp.gt.f32.partialorder %v712, 0.0
  %vm808 = vcmp.gt.f32.partialorder %v375, 0.0
  %vm809 = vcmp.gt.f32.partialorder %v377, 0.0
  %vm810 = vcmp.gt.f32.partialorder %v488, 0.0
  %vm811 = vcmp.gt.f32.partialorder %v490, 0.0
  %vm812 = vcmp.gt.f32.partialorder %v601, 0.0
  %vm813 = vcmp.gt.f32.partialorder %v603, 0.0
  %vm814 = vcmp.gt.f32.partialorder %v714, 0.0
  %vm815 = vcmp.gt.f32.partialorder %v716, 0.0
  %vm816 = vcmp.gt.f32.partialorder %v381, 0.0
  %vm817 = vcmp.gt.f32.partialorder %v383, 0.0
  %vm818 = vcmp.gt.f32.partialorder %v494, 0.0
  %vm819 = vcmp.gt.f32.partialorder %v496, 0.0
  %vm820 = vcmp.gt.f32.partialorder %v607, 0.0
  %vm821 = vcmp.gt.f32.partialorder %v609, 0.0
  %vm822 = vcmp.gt.f32.partialorder %v720, 0.0
  %vm823 = vcmp.gt.f32.partialorder %v722, 0.0
  %vm824 = vcmp.gt.f32.partialorder %v385, 0.0
  %vm825 = vcmp.gt.f32.partialorder %v387, 0.0
  %vm826 = vcmp.gt.f32.partialorder %v498, 0.0
  %vm827 = vcmp.gt.f32.partialorder %v500, 0.0
  %vm828 = vcmp.gt.f32.partialorder %v611, 0.0
  %vm829 = vcmp.gt.f32.partialorder %v613, 0.0
  %vm830 = vcmp.gt.f32.partialorder %v724, 0.0
  %vm831 = vcmp.gt.f32.partialorder %v726, 0.0
  %vm832 = vcmp.gt.f32.partialorder %v391, 0.0
  %vm833 = vcmp.gt.f32.partialorder %v393, 0.0
  %vm834 = vcmp.gt.f32.partialorder %v504, 0.0
  %vm835 = vcmp.gt.f32.partialorder %v506, 0.0
  %vm836 = vcmp.gt.f32.partialorder %v617, 0.0
  %vm837 = vcmp.gt.f32.partialorder %v619, 0.0
  %vm838 = vcmp.gt.f32.partialorder %v730, 0.0
  %vm839 = vcmp.gt.f32.partialorder %v732, 0.0
  %vm840 = vcmp.gt.f32.partialorder %v395, 0.0
  %vm841 = vcmp.gt.f32.partialorder %v397, 0.0
  %vm842 = vcmp.gt.f32.partialorder %v508, 0.0
  %vm843 = vcmp.gt.f32.partialorder %v510, 0.0
  %vm844 = vcmp.gt.f32.partialorder %v621, 0.0
  %vm845 = vcmp.gt.f32.partialorder %v623, 0.0
  %vm846 = vcmp.gt.f32.partialorder %v734, 0.0
  %vm847 = vcmp.gt.f32.partialorder %v736, 0.0
  %vm848 = vcmp.gt.f32.partialorder %v401, 0.0
  %vm849 = vcmp.gt.f32.partialorder %v403, 0.0
  %vm850 = vcmp.gt.f32.partialorder %v514, 0.0
  %vm851 = vcmp.gt.f32.partialorder %v516, 0.0
  %vm852 = vcmp.gt.f32.partialorder %v627, 0.0
  %vm853 = vcmp.gt.f32.partialorder %v629, 0.0
  %vm854 = vcmp.gt.f32.partialorder %v740, 0.0
  %vm855 = vcmp.gt.f32.partialorder %v742, 0.0
  %vm856 = vcmp.gt.f32.partialorder %v405, 0.0
  %vm857 = vcmp.gt.f32.partialorder %v407, 0.0
  %vm858 = vcmp.gt.f32.partialorder %v518, 0.0
  %vm859 = vcmp.gt.f32.partialorder %v520, 0.0
  %vm860 = vcmp.gt.f32.partialorder %v631, 0.0
  %vm861 = vcmp.gt.f32.partialorder %v633, 0.0
  %vm862 = vcmp.gt.f32.partialorder %v744, 0.0
  %vm863 = vcmp.gt.f32.partialorder %v746, 0.0
  %vm864 = vcmp.gt.f32.partialorder %v411, 0.0
  %vm865 = vcmp.gt.f32.partialorder %v413, 0.0
  %vm866 = vcmp.gt.f32.partialorder %v524, 0.0
  %vm867 = vcmp.gt.f32.partialorder %v526, 0.0
  %vm868 = vcmp.gt.f32.partialorder %v637, 0.0
  %vm869 = vcmp.gt.f32.partialorder %v639, 0.0
  %vm870 = vcmp.gt.f32.partialorder %v750, 0.0
  %vm871 = vcmp.gt.f32.partialorder %v752, 0.0
  %vm872 = vcmp.gt.f32.partialorder %v415, 0.0
  %vm873 = vcmp.gt.f32.partialorder %v417, 0.0
  %vm874 = vcmp.gt.f32.partialorder %v528, 0.0
  %vm875 = vcmp.gt.f32.partialorder %v530, 0.0
  %vm876 = vcmp.gt.f32.partialorder %v641, 0.0
  %vm877 = vcmp.gt.f32.partialorder %v643, 0.0
  %vm878 = vcmp.gt.f32.partialorder %v754, 0.0
  %vm879 = vcmp.gt.f32.partialorder %v756, 0.0
  %vm880 = vcmp.gt.f32.partialorder %v421, 0.0
  %vm881 = vcmp.gt.f32.partialorder %v423, 0.0
  %vm882 = vcmp.gt.f32.partialorder %v534, 0.0
  %vm883 = vcmp.gt.f32.partialorder %v536, 0.0
  %vm884 = vcmp.gt.f32.partialorder %v647, 0.0
  %vm885 = vcmp.gt.f32.partialorder %v649, 0.0
  %vm886 = vcmp.gt.f32.partialorder %v760, 0.0
  %vm887 = vcmp.gt.f32.partialorder %v762, 0.0
  %vm888 = vcmp.gt.f32.partialorder %v425, 0.0
  %vm889 = vcmp.gt.f32.partialorder %v427, 0.0
  %vm890 = vcmp.gt.f32.partialorder %v538, 0.0
  %vm891 = vcmp.gt.f32.partialorder %v540, 0.0
  %vm892 = vcmp.gt.f32.partialorder %v651, 0.0
  %vm893 = vcmp.gt.f32.partialorder %v653, 0.0
  %vm894 = vcmp.gt.f32.partialorder %v764, 0.0
  %vm895 = vcmp.gt.f32.partialorder %v766, 0.0
  %v896 = vmul.f32 %v351, 0.2
  %v897 = vmul.f32 %v353, 0.2
  %v898 = vmul.f32 %v464, 0.2
  %v899 = vmul.f32 %v466, 0.2
  %v900 = vmul.f32 %v577, 0.2
  %v901 = vmul.f32 %v579, 0.2
  %v902 = vmul.f32 %v690, 0.2
  %v903 = vmul.f32 %v692, 0.2
  %v904 = vmul.f32 %v355, 0.2
  %v905 = vmul.f32 %v357, 0.2
  %v906 = vmul.f32 %v468, 0.2
  %v907 = vmul.f32 %v470, 0.2
  %v908 = vmul.f32 %v581, 0.2
  %v909 = vmul.f32 %v583, 0.2
  %v910 = vmul.f32 %v694, 0.2
  %v911 = vmul.f32 %v696, 0.2
  %v912 = vmul.f32 %v361, 0.2
  %v913 = vmul.f32 %v363, 0.2
  %v914 = vmul.f32 %v474, 0.2
  %v915 = vmul.f32 %v476, 0.2
  %v916 = vmul.f32 %v587, 0.2
  %v917 = vmul.f32 %v589, 0.2
  %v918 = vmul.f32 %v700, 0.2
  %v919 = vmul.f32 %v702, 0.2
  %v920 = vmul.f32 %v365, 0.2
  %v921 = vmul.f32 %v367, 0.2
  %v922 = vmul.f32 %v478, 0.2
  %v923 = vmul.f32 %v480, 0.2
  %v924 = vmul.f32 %v591, 0.2
  %v925 = vmul.f32 %v593, 0.2
  %v926 = vmul.f32 %v704, 0.2
  %v927 = vmul.f32 %v706, 0.2
  %v928 = vmul.f32 %v371, 0.2
  %v929 = vmul.f32 %v373, 0.2
  %v930 = vmul.f32 %v484, 0.2
  %v931 = vmul.f32 %v486, 0.2
  %v932 = vmul.f32 %v597, 0.2
  %v933 = vmul.f32 %v599, 0.2
  %v934 = vmul.f32 %v710, 0.2
  %v935 = vmul.f32 %v712, 0.2
  %v936 = vmul.f32 %v375, 0.2
  %v937 = vmul.f32 %v377, 0.2
  %v938 = vmul.f32 %v488, 0.2
  %v939 = vmul.f32 %v490, 0.2
  %v940 = vmul.f32 %v601, 0.2
  %v941 = vmul.f32 %v603, 0.2
  %v942 = vmul.f32 %v714, 0.2
  %v943 = vmul.f32 %v716, 0.2
  %v944 = vmul.f32 %v381, 0.2
  %v945 = vmul.f32 %v383, 0.2
  %v946 = vmul.f32 %v494, 0.2
  %v947 = vmul.f32 %v496, 0.2
  %v948 = vmul.f32 %v607, 0.2
  %v949 = vmul.f32 %v609, 0.2
  %v950 = vmul.f32 %v720, 0.2
  %v951 = vmul.f32 %v722, 0.2
  %v952 = vmul.f32 %v385, 0.2
  %v953 = vmul.f32 %v387, 0.2
  %v954 = vmul.f32 %v498, 0.2
  %v955 = vmul.f32 %v500, 0.2
  %v956 = vmul.f32 %v611, 0.2
  %v957 = vmul.f32 %v613, 0.2
  %v958 = vmul.f32 %v724, 0.2
  %v959 = vmul.f32 %v726, 0.2
  %v960 = vmul.f32 %v391, 0.2
  %v961 = vmul.f32 %v393, 0.2
  %v962 = vmul.f32 %v504, 0.2
  %v963 = vmul.f32 %v506, 0.2
  %v964 = vmul.f32 %v617, 0.2
  %v965 = vmul.f32 %v619, 0.2
  %v966 = vmul.f32 %v730, 0.2
  %v967 = vmul.f32 %v732, 0.2
  %v968 = vmul.f32 %v395, 0.2
  %v969 = vmul.f32 %v397, 0.2
  %v970 = vmul.f32 %v508, 0.2
  %v971 = vmul.f32 %v510, 0.2
  %v972 = vmul.f32 %v621, 0.2
  %v973 = vmul.f32 %v623, 0.2
  %v974 = vmul.f32 %v734, 0.2
  %v975 = vmul.f32 %v736, 0.2
  %v976 = vmul.f32 %v401, 0.2
  %v977 = vmul.f32 %v403, 0.2
  %v978 = vmul.f32 %v514, 0.2
  %v979 = vmul.f32 %v516, 0.2
  %v980 = vmul.f32 %v627, 0.2
  %v981 = vmul.f32 %v629, 0.2
  %v982 = vmul.f32 %v740, 0.2
  %v983 = vmul.f32 %v742, 0.2
  %v984 = vmul.f32 %v405, 0.2
  %v985 = vmul.f32 %v407, 0.2
  %v986 = vmul.f32 %v518, 0.2
  %v987 = vmul.f32 %v520, 0.2
  %v988 = vmul.f32 %v631, 0.2
  %v989 = vmul.f32 %v633, 0.2
  %v990 = vmul.f32 %v744, 0.2
  %v991 = vmul.f32 %v746, 0.2
  %v992 = vmul.f32 %v411, 0.2
  %v993 = vmul.f32 %v413, 0.2
  %v994 = vmul.f32 %v524, 0.2
  %v995 = vmul.f32 %v526, 0.2
  %v996 = vmul.f32 %v637, 0.2
  %v997 = vmul.f32 %v639, 0.2
  %v998 = vmul.f32 %v750, 0.2
  %v999 = vmul.f32 %v752, 0.2
  %v1000 = vmul.f32 %v415, 0.2
  %v1001 = vmul.f32 %v417, 0.2
  %v1002 = vmul.f32 %v528, 0.2
  %v1003 = vmul.f32 %v530, 0.2
  %v1004 = vmul.f32 %v641, 0.2
  %v1005 = vmul.f32 %v643, 0.2
  %v1006 = vmul.f32 %v754, 0.2
  %v1007 = vmul.f32 %v756, 0.2
  %v1008 = vmul.f32 %v421, 0.2
  %v1009 = vmul.f32 %v423, 0.2
  %v1010 = vmul.f32 %v534, 0.2
  %v1011 = vmul.f32 %v536, 0.2
  %v1012 = vmul.f32 %v647, 0.2
  %v1013 = vmul.f32 %v649, 0.2
  %v1014 = vmul.f32 %v760, 0.2
  %v1015 = vmul.f32 %v762, 0.2
  %v1016 = vmul.f32 %v425, 0.2
  %v1017 = vmul.f32 %v427, 0.2
  %v1018 = vmul.f32 %v538, 0.2
  %v1019 = vmul.f32 %v540, 0.2
  %v1020 = vmul.f32 %v651, 0.2
  %v1021 = vmul.f32 %v653, 0.2
  %v1022 = vmul.f32 %v764, 0.2
  %v1023 = vmul.f32 %v766, 0.2
  %v1024 = vsel %vm768, %v351, %v896
  %v1025 = vsel %vm769, %v353, %v897
  %v1026 = vsel %vm770, %v464, %v898
  %v1027 = vsel %vm771, %v466, %v899
  %v1028 = vsel %vm772, %v577, %v900
  %v1029 = vsel %vm773, %v579, %v901
  %v1030 = vsel %vm774, %v690, %v902
  %v1031 = vsel %vm775, %v692, %v903
  %v1032 = vsel %vm776, %v355, %v904
  %v1033 = vsel %vm777, %v357, %v905
  %v1034 = vsel %vm778, %v468, %v906
  %v1035 = vsel %vm779, %v470, %v907
  %v1036 = vsel %vm780, %v581, %v908
  %v1037 = vsel %vm781, %v583, %v909
  %v1038 = vsel %vm782, %v694, %v910
  %v1039 = vsel %vm783, %v696, %v911
  %v1040 = vsel %vm784, %v361, %v912
  %v1041 = vsel %vm785, %v363, %v913
  %v1042 = vsel %vm786, %v474, %v914
  %v1043 = vsel %vm787, %v476, %v915
  %v1044 = vsel %vm788, %v587, %v916
  %v1045 = vsel %vm789, %v589, %v917
  %v1046 = vsel %vm790, %v700, %v918
  %v1047 = vsel %vm791, %v702, %v919
  %v1048 = vsel %vm792, %v365, %v920
  %v1049 = vsel %vm793, %v367, %v921
  %v1050 = vsel %vm794, %v478, %v922
  %v1051 = vsel %vm795, %v480, %v923
  %v1052 = vsel %vm796, %v591, %v924
  %v1053 = vsel %vm797, %v593, %v925
  %v1054 = vsel %vm798, %v704, %v926
  %v1055 = vsel %vm799, %v706, %v927
  %v1056 = vsel %vm800, %v371, %v928
  %v1057 = vsel %vm801, %v373, %v929
  %v1058 = vsel %vm802, %v484, %v930
  %v1059 = vsel %vm803, %v486, %v931
  %v1060 = vsel %vm804, %v597, %v932
  %v1061 = vsel %vm805, %v599, %v933
  %v1062 = vsel %vm806, %v710, %v934
  %v1063 = vsel %vm807, %v712, %v935
  %v1064 = vsel %vm808, %v375, %v936
  %v1065 = vsel %vm809, %v377, %v937
  %v1066 = vsel %vm810, %v488, %v938
  %v1067 = vsel %vm811, %v490, %v939
  %v1068 = vsel %vm812, %v601, %v940
  %v1069 = vsel %vm813, %v603, %v941
  %v1070 = vsel %vm814, %v714, %v942
  %v1071 = vsel %vm815, %v716, %v943
  %v1072 = vsel %vm816, %v381, %v944
  %v1073 = vsel %vm817, %v383, %v945
  %v1074 = vsel %vm818, %v494, %v946
  %v1075 = vsel %vm819, %v496, %v947
  %v1076 = vsel %vm820, %v607, %v948
  %v1077 = vsel %vm821, %v609, %v949
  %v1078 = vsel %vm822, %v720, %v950
  %v1079 = vsel %vm823, %v722, %v951
  %v1080 = vsel %vm824, %v385, %v952
  %v1081 = vsel %vm825, %v387, %v953
  %v1082 = vsel %vm826, %v498, %v954
  %v1083 = vsel %vm827, %v500, %v955
  %v1084 = vsel %vm828, %v611, %v956
  %v1085 = vsel %vm829, %v613, %v957
  %v1086 = vsel %vm830, %v724, %v958
  %v1087 = vsel %vm831, %v726, %v959
  %v1088 = vsel %vm832, %v391, %v960
  %v1089 = vsel %vm833, %v393, %v961
  %v1090 = vsel %vm834, %v504, %v962
  %v1091 = vsel %vm835, %v506, %v963
  %v1092 = vsel %vm836, %v617, %v964
  %v1093 = vsel %vm837, %v619, %v965
  %v1094 = vsel %vm838, %v730, %v966
  %v1095 = vsel %vm839, %v732, %v967
  %v1096 = vsel %vm840, %v395, %v968
  %v1097 = vsel %vm841, %v397, %v969
  %v1098 = vsel %vm842, %v508, %v970
  %v1099 = vsel %vm843, %v510, %v971
  %v1100 = vsel %vm844, %v621, %v972
  %v1101 = vsel %vm845, %v623, %v973
  %v1102 = vsel %vm846, %v734, %v974
  %v1103 = vsel %vm847, %v736, %v975
  %v1104 = vsel %vm848, %v401, %v976
  %v1105 = vsel %vm849, %v403, %v977
  %v1106 = vsel %vm850, %v514, %v978
  %v1107 = vsel %vm851, %v516, %v979
  %v1108 = vsel %vm852, %v627, %v980
  %v1109 = vsel %vm853, %v629, %v981
  %v1110 = vsel %vm854, %v740, %v982
  %v1111 = vsel %vm855, %v742, %v983
  %v1112 = vsel %vm856, %v405, %v984
  %v1113 = vsel %vm857, %v407, %v985
  %v1114 = vsel %vm858, %v518, %v986
  %v1115 = vsel %vm859, %v520, %v987
  %v1116 = vsel %vm860, %v631, %v988
  %v1117 = vsel %vm861, %v633, %v989
  %v1118 = vsel %vm862, %v744, %v990
  %v1119 = vsel %vm863, %v746, %v991
  %v1120 = vsel %vm864, %v411, %v992
  %v1121 = vsel %vm865, %v413, %v993
  %v1122 = vsel %vm866, %v524, %v994
  %v1123 = vsel %vm867, %v526, %v995
  %v1124 = vsel %vm868, %v637, %v996
  %v1125 = vsel %vm869, %v639, %v997
  %v1126 = vsel %vm870, %v750, %v998
  %v1127 = vsel %vm871, %v752, %v999
  %v1128 = vsel %vm872, %v415, %v1000
  %v1129 = vsel %vm873, %v417, %v1001
  %v1130 = vsel %vm874, %v528, %v1002
  %v1131 = vsel %vm875, %v530, %v1003
  %v1132 = vsel %vm876, %v641, %v1004
  %v1133 = vsel %vm877, %v643, %v1005
  %v1134 = vsel %vm878, %v754, %v1006
  %v1135 = vsel %vm879, %v756, %v1007
  %v1136 = vsel %vm880, %v421, %v1008
  %v1137 = vsel %vm881, %v423, %v1009
  %v1138 = vsel %vm882, %v534, %v1010
  %v1139 = vsel %vm883, %v536, %v1011
  %v1140 = vsel %vm884, %v647, %v1012
  %v1141 = vsel %vm885, %v649, %v1013
  %v1142 = vsel %vm886, %v760, %v1014
  %v1143 = vsel %vm887, %v762, %v1015
  %v1144 = vsel %vm888, %v425, %v1016
  %v1145 = vsel %vm889, %v427, %v1017
  %v1146 = vsel %vm890, %v538, %v1018
  %v1147 = vsel %vm891, %v540, %v1019
  %v1148 = vsel %vm892, %v651, %v1020
  %v1149 = vsel %vm893, %v653, %v1021
  %v1150 = vsel %vm894, %v764, %v1022
  %v1151 = vsel %vm895, %v766, %v1023
  %v1152 = vpack.c.bf16 %v1032, %v1024
  %v1153 = vpack.c.bf16 %v1033, %v1025
  %v1154 = vpack.c.bf16 %v1034, %v1026
  %v1155 = vpack.c.bf16 %v1035, %v1027
  %v1156 = vpack.c.bf16 %v1036, %v1028
  %v1157 = vpack.c.bf16 %v1037, %v1029
  %v1158 = vpack.c.bf16 %v1038, %v1030
  %v1159 = vpack.c.bf16 %v1039, %v1031
  %v1160 = vpack.c.bf16 %v1048, %v1040
  %v1161 = vpack.c.bf16 %v1049, %v1041
  %v1162 = vpack.c.bf16 %v1050, %v1042
  %v1163 = vpack.c.bf16 %v1051, %v1043
  %v1164 = vpack.c.bf16 %v1052, %v1044
  %v1165 = vpack.c.bf16 %v1053, %v1045
  %v1166 = vpack.c.bf16 %v1054, %v1046
  %v1167 = vpack.c.bf16 %v1055, %v1047
  %v1168 = vpack.c.bf16 %v1064, %v1056
  %v1169 = vpack.c.bf16 %v1065, %v1057
  %v1170 = vpack.c.bf16 %v1066, %v1058
  %v1171 = vpack.c.bf16 %v1067, %v1059
  %v1172 = vpack.c.bf16 %v1068, %v1060
  %v1173 = vpack.c.bf16 %v1069, %v1061
  %v1174 = vpack.c.bf16 %v1070, %v1062
  %v1175 = vpack.c.bf16 %v1071, %v1063
  %v1176 = vpack.c.bf16 %v1080, %v1072
  %v1177 = vpack.c.bf16 %v1081, %v1073
  %v1178 = vpack.c.bf16 %v1082, %v1074
  %v1179 = vpack.c.bf16 %v1083, %v1075
  %v1180 = vpack.c.bf16 %v1084, %v1076
  %v1181 = vpack.c.bf16 %v1085, %v1077
  %v1182 = vpack.c.bf16 %v1086, %v1078
  %v1183 = vpack.c.bf16 %v1087, %v1079
  %v1184 = vpack.c.bf16 %v1096, %v1088
  %v1185 = vpack.c.bf16 %v1097, %v1089
  %v1186 = vpack.c.bf16 %v1098, %v1090
  %v1187 = vpack.c.bf16 %v1099, %v1091
  %v1188 = vpack.c.bf16 %v1100, %v1092
  %v1189 = vpack.c.bf16 %v1101, %v1093
  %v1190 = vpack.c.bf16 %v1102, %v1094
  %v1191 = vpack.c.bf16 %v1103, %v1095
  %v1192 = vpack.c.bf16 %v1112, %v1104
  %v1193 = vpack.c.bf16 %v1113, %v1105
  %v1194 = vpack.c.bf16 %v1114, %v1106
  %v1195 = vpack.c.bf16 %v1115, %v1107
  %v1196 = vpack.c.bf16 %v1116, %v1108
  %v1197 = vpack.c.bf16 %v1117, %v1109
  %v1198 = vpack.c.bf16 %v1118, %v1110
  %v1199 = vpack.c.bf16 %v1119, %v1111
  %v1200 = vpack.c.bf16 %v1128, %v1120
  %v1201 = vpack.c.bf16 %v1129, %v1121
  %v1202 = vpack.c.bf16 %v1130, %v1122
  %v1203 = vpack.c.bf16 %v1131, %v1123
  %v1204 = vpack.c.bf16 %v1132, %v1124
  %v1205 = vpack.c.bf16 %v1133, %v1125
  %v1206 = vpack.c.bf16 %v1134, %v1126
  %v1207 = vpack.c.bf16 %v1135, %v1127
  %v1208 = vpack.c.bf16 %v1144, %v1136
  %v1209 = vpack.c.bf16 %v1145, %v1137
  %v1210 = vpack.c.bf16 %v1146, %v1138
  %v1211 = vpack.c.bf16 %v1147, %v1139
  %v1212 = vpack.c.bf16 %v1148, %v1140
  %v1213 = vpack.c.bf16 %v1149, %v1141
  %v1214 = vpack.c.bf16 %v1150, %v1142
  %v1215 = vpack.c.bf16 %v1151, %v1143
  %v1216 = vld [vmem:[%s3] sm:$0xff]
  %v1217 = vld [vmem:[%s3 + $0x8] sm:$0xff]
  %v1218 = vld [vmem:[%s3 + $0x10] sm:$0xff]
  %v1219 = vld [vmem:[%s3 + $0x18] sm:$0xff]
  %v1220 = vld [vmem:[%s3 + $0x20] sm:$0xff]
  %v1221 = vld [vmem:[%s3 + $0x28] sm:$0xff]
  %v1222 = vld [vmem:[%s3 + $0x30] sm:$0xff]
  %v1223 = vld [vmem:[%s3 + $0x38] sm:$0xff]
  %v1224 = vld [vmem:[%s3 + $0x40] sm:$0xff]
  %v1225 = vld [vmem:[%s3 + $0x48] sm:$0xff]
  %v1226 = vld [vmem:[%s3 + $0x50] sm:$0xff]
  %v1227 = vld [vmem:[%s3 + $0x58] sm:$0xff]
  %v1228 = vld [vmem:[%s3 + $0x60] sm:$0xff]
  %v1229 = vld [vmem:[%s3 + $0x68] sm:$0xff]
  %v1230 = vld [vmem:[%s3 + $0x70] sm:$0xff]
  %v1231 = vld [vmem:[%s3 + $0x78] sm:$0xff]
  %v1232 = vld [vmem:[%s3 + $0x80] sm:$0xff]
  %v1233 = vld [vmem:[%s3 + $0x88] sm:$0xff]
  %v1234 = vld [vmem:[%s3 + $0x90] sm:$0xff]
  %v1235 = vld [vmem:[%s3 + $0x98] sm:$0xff]
  %v1236 = vld [vmem:[%s3 + $0xa0] sm:$0xff]
  %v1237 = vld [vmem:[%s3 + $0xa8] sm:$0xff]
  %v1238 = vld [vmem:[%s3 + $0xb0] sm:$0xff]
  %v1239 = vld [vmem:[%s3 + $0xb8] sm:$0xff]
  %v1240 = vld [vmem:[%s3 + $0xc0] sm:$0xff]
  %v1241 = vld [vmem:[%s3 + $0xc8] sm:$0xff]
  %v1242 = vld [vmem:[%s3 + $0xd0] sm:$0xff]
  %v1243 = vld [vmem:[%s3 + $0xd8] sm:$0xff]
  %v1244 = vld [vmem:[%s3 + $0xe0] sm:$0xff]
  %v1245 = vld [vmem:[%s3 + $0xe8] sm:$0xff]
  %v1246 = vld [vmem:[%s3 + $0xf0] sm:$0xff]
  %v1247 = vld [vmem:[%s3 + $0xf8] sm:$0xff]
  %v1248 = vld [vmem:[%s3 + $0x100] sm:$0xff]
  %v1249 = vld [vmem:[%s3 + $0x108] sm:$0xff]
  %v1250 = vld [vmem:[%s3 + $0x110] sm:$0xff]
  %v1251 = vld [vmem:[%s3 + $0x118] sm:$0xff]
  %v1252 = vld [vmem:[%s3 + $0x120] sm:$0xff]
  %v1253 = vld [vmem:[%s3 + $0x128] sm:$0xff]
  %v1254 = vld [vmem:[%s3 + $0x130] sm:$0xff]
  %v1255 = vld [vmem:[%s3 + $0x138] sm:$0xff]
  %v1256 = vld [vmem:[%s3 + $0x140] sm:$0xff]
  %v1257 = vld [vmem:[%s3 + $0x148] sm:$0xff]
  %v1258 = vld [vmem:[%s3 + $0x150] sm:$0xff]
  %v1259 = vld [vmem:[%s3 + $0x158] sm:$0xff]
  %v1260 = vld [vmem:[%s3 + $0x160] sm:$0xff]
  %v1261 = vld [vmem:[%s3 + $0x168] sm:$0xff]
  %v1262 = vld [vmem:[%s3 + $0x170] sm:$0xff]
  %v1263 = vld [vmem:[%s3 + $0x178] sm:$0xff]
  %v1264 = vld [vmem:[%s3 + $0x180] sm:$0xff]
  %v1265 = vld [vmem:[%s3 + $0x188] sm:$0xff]
  %v1266 = vld [vmem:[%s3 + $0x190] sm:$0xff]
  %v1267 = vld [vmem:[%s3 + $0x198] sm:$0xff]
  %v1268 = vld [vmem:[%s3 + $0x1a0] sm:$0xff]
  %v1269 = vld [vmem:[%s3 + $0x1a8] sm:$0xff]
  %v1270 = vld [vmem:[%s3 + $0x1b0] sm:$0xff]
  %v1271 = vld [vmem:[%s3 + $0x1b8] sm:$0xff]
  %v1272 = vld [vmem:[%s3 + $0x1c0] sm:$0xff]
  %v1273 = vld [vmem:[%s3 + $0x1c8] sm:$0xff]
  %v1274 = vld [vmem:[%s3 + $0x1d0] sm:$0xff]
  %v1275 = vld [vmem:[%s3 + $0x1d8] sm:$0xff]
  %v1276 = vld [vmem:[%s3 + $0x1e0] sm:$0xff]
  %v1277 = vld [vmem:[%s3 + $0x1e8] sm:$0xff]
  %v1278 = vld [vmem:[%s3 + $0x1f0] sm:$0xff]
  %v1279 = vld [vmem:[%s3 + $0x1f8] sm:$0xff]
  %v1280 = vld [vmem:[%s3 + $0x200] sm:$0xff]
  %v1281 = vld [vmem:[%s3 + $0x208] sm:$0xff]
  %v1282 = vld [vmem:[%s3 + $0x210] sm:$0xff]
  %v1283 = vld [vmem:[%s3 + $0x218] sm:$0xff]
  %v1284 = vld [vmem:[%s3 + $0x220] sm:$0xff]
  %v1285 = vld [vmem:[%s3 + $0x228] sm:$0xff]
  %v1286 = vld [vmem:[%s3 + $0x230] sm:$0xff]
  %v1287 = vld [vmem:[%s3 + $0x238] sm:$0xff]
  %v1288 = vld [vmem:[%s3 + $0x240] sm:$0xff]
  %v1289 = vld [vmem:[%s3 + $0x248] sm:$0xff]
  %v1290 = vld [vmem:[%s3 + $0x250] sm:$0xff]
  %v1291 = vld [vmem:[%s3 + $0x258] sm:$0xff]
  %v1292 = vld [vmem:[%s3 + $0x260] sm:$0xff]
  %v1293 = vld [vmem:[%s3 + $0x268] sm:$0xff]
  %v1294 = vld [vmem:[%s3 + $0x270] sm:$0xff]
  %v1295 = vld [vmem:[%s3 + $0x278] sm:$0xff]
  %v1296 = vld [vmem:[%s3 + $0x280] sm:$0xff]
  %v1297 = vld [vmem:[%s3 + $0x288] sm:$0xff]
  %v1298 = vld [vmem:[%s3 + $0x290] sm:$0xff]
  %v1299 = vld [vmem:[%s3 + $0x298] sm:$0xff]
  %v1300 = vld [vmem:[%s3 + $0x2a0] sm:$0xff]
  %v1301 = vld [vmem:[%s3 + $0x2a8] sm:$0xff]
  %v1302 = vld [vmem:[%s3 + $0x2b0] sm:$0xff]
  %v1303 = vld [vmem:[%s3 + $0x2b8] sm:$0xff]
  %v1304 = vld [vmem:[%s3 + $0x2c0] sm:$0xff]
  %v1305 = vld [vmem:[%s3 + $0x2c8] sm:$0xff]
  %v1306 = vld [vmem:[%s3 + $0x2d0] sm:$0xff]
  %v1307 = vld [vmem:[%s3 + $0x2d8] sm:$0xff]
  %v1308 = vld [vmem:[%s3 + $0x2e0] sm:$0xff]
  %v1309 = vld [vmem:[%s3 + $0x2e8] sm:$0xff]
  %v1310 = vld [vmem:[%s3 + $0x2f0] sm:$0xff]
  %v1311 = vld [vmem:[%s3 + $0x2f8] sm:$0xff]
  %v1312 = vld [vmem:[%s3 + $0x300] sm:$0xff]
  %v1313 = vld [vmem:[%s3 + $0x308] sm:$0xff]
  %v1314 = vld [vmem:[%s3 + $0x310] sm:$0xff]
  %v1315 = vld [vmem:[%s3 + $0x318] sm:$0xff]
  %v1316 = vld [vmem:[%s3 + $0x320] sm:$0xff]
  %v1317 = vld [vmem:[%s3 + $0x328] sm:$0xff]
  %v1318 = vld [vmem:[%s3 + $0x330] sm:$0xff]
  %v1319 = vld [vmem:[%s3 + $0x338] sm:$0xff]
  %v1320 = vld [vmem:[%s3 + $0x340] sm:$0xff]
  %v1321 = vld [vmem:[%s3 + $0x348] sm:$0xff]
  %v1322 = vld [vmem:[%s3 + $0x350] sm:$0xff]
  %v1323 = vld [vmem:[%s3 + $0x358] sm:$0xff]
  %v1324 = vld [vmem:[%s3 + $0x360] sm:$0xff]
  %v1325 = vld [vmem:[%s3 + $0x368] sm:$0xff]
  %v1326 = vld [vmem:[%s3 + $0x370] sm:$0xff]
  %v1327 = vld [vmem:[%s3 + $0x378] sm:$0xff]
  %v1328 = vld [vmem:[%s3 + $0x380] sm:$0xff]
  %v1329 = vld [vmem:[%s3 + $0x388] sm:$0xff]
  %v1330 = vld [vmem:[%s3 + $0x390] sm:$0xff]
  %v1331 = vld [vmem:[%s3 + $0x398] sm:$0xff]
  %v1332 = vld [vmem:[%s3 + $0x3a0] sm:$0xff]
  %v1333 = vld [vmem:[%s3 + $0x3a8] sm:$0xff]
  %v1334 = vld [vmem:[%s3 + $0x3b0] sm:$0xff]
  %v1335 = vld [vmem:[%s3 + $0x3b8] sm:$0xff]
  %v1336 = vld [vmem:[%s3 + $0x3c0] sm:$0xff]
  %v1337 = vld [vmem:[%s3 + $0x3c8] sm:$0xff]
  %v1338 = vld [vmem:[%s3 + $0x3d0] sm:$0xff]
  %v1339 = vld [vmem:[%s3 + $0x3d8] sm:$0xff]
  %v1340 = vld [vmem:[%s3 + $0x3e0] sm:$0xff]
  %v1341 = vld [vmem:[%s3 + $0x3e8] sm:$0xff]
  %v1342 = vld [vmem:[%s3 + $0x3f0] sm:$0xff]
  %v1343 = vld [vmem:[%s3 + $0x3f8] sm:$0xff]
  %v1344 = vld [vmem:[%s3 + $0x400] sm:$0xff]
  %v1345 = vld [vmem:[%s3 + $0x408] sm:$0xff]
  %v1346 = vld [vmem:[%s3 + $0x410] sm:$0xff]
  %v1347 = vld [vmem:[%s3 + $0x418] sm:$0xff]
  %v1348 = vld [vmem:[%s3 + $0x420] sm:$0xff]
  %v1349 = vld [vmem:[%s3 + $0x428] sm:$0xff]
  %v1350 = vld [vmem:[%s3 + $0x430] sm:$0xff]
  %v1351 = vld [vmem:[%s3 + $0x438] sm:$0xff]
  %v1352 = vld [vmem:[%s3 + $0x440] sm:$0xff]
  %v1353 = vld [vmem:[%s3 + $0x448] sm:$0xff]
  %v1354 = vld [vmem:[%s3 + $0x450] sm:$0xff]
  %v1355 = vld [vmem:[%s3 + $0x458] sm:$0xff]
  %v1356 = vld [vmem:[%s3 + $0x460] sm:$0xff]
  %v1357 = vld [vmem:[%s3 + $0x468] sm:$0xff]
  %v1358 = vld [vmem:[%s3 + $0x470] sm:$0xff]
  %v1359 = vld [vmem:[%s3 + $0x478] sm:$0xff]
  %v1360 = vld [vmem:[%s3 + $0x480] sm:$0xff]
  %v1361 = vld [vmem:[%s3 + $0x488] sm:$0xff]
  %v1362 = vld [vmem:[%s3 + $0x490] sm:$0xff]
  %v1363 = vld [vmem:[%s3 + $0x498] sm:$0xff]
  %v1364 = vld [vmem:[%s3 + $0x4a0] sm:$0xff]
  %v1365 = vld [vmem:[%s3 + $0x4a8] sm:$0xff]
  %v1366 = vld [vmem:[%s3 + $0x4b0] sm:$0xff]
  %v1367 = vld [vmem:[%s3 + $0x4b8] sm:$0xff]
  %v1368 = vld [vmem:[%s3 + $0x4c0] sm:$0xff]
  %v1369 = vld [vmem:[%s3 + $0x4c8] sm:$0xff]
  %v1370 = vld [vmem:[%s3 + $0x4d0] sm:$0xff]
  %v1371 = vld [vmem:[%s3 + $0x4d8] sm:$0xff]
  %v1372 = vld [vmem:[%s3 + $0x4e0] sm:$0xff]
  %v1373 = vld [vmem:[%s3 + $0x4e8] sm:$0xff]
  %v1374 = vld [vmem:[%s3 + $0x4f0] sm:$0xff]
  %v1375 = vld [vmem:[%s3 + $0x4f8] sm:$0xff]
  %v1376 = vld [vmem:[%s3 + $0x500] sm:$0xff]
  %v1377 = vld [vmem:[%s3 + $0x508] sm:$0xff]
  %v1378 = vld [vmem:[%s3 + $0x510] sm:$0xff]
  %v1379 = vld [vmem:[%s3 + $0x518] sm:$0xff]
  %v1380 = vld [vmem:[%s3 + $0x520] sm:$0xff]
  %v1381 = vld [vmem:[%s3 + $0x528] sm:$0xff]
  %v1382 = vld [vmem:[%s3 + $0x530] sm:$0xff]
  %v1383 = vld [vmem:[%s3 + $0x538] sm:$0xff]
  %v1384 = vld [vmem:[%s3 + $0x540] sm:$0xff]
  %v1385 = vld [vmem:[%s3 + $0x548] sm:$0xff]
  %v1386 = vld [vmem:[%s3 + $0x550] sm:$0xff]
  %v1387 = vld [vmem:[%s3 + $0x558] sm:$0xff]
  %v1388 = vld [vmem:[%s3 + $0x560] sm:$0xff]
  %v1389 = vld [vmem:[%s3 + $0x568] sm:$0xff]
  %v1390 = vld [vmem:[%s3 + $0x570] sm:$0xff]
  %v1391 = vld [vmem:[%s3 + $0x578] sm:$0xff]
  %v1392 = vld [vmem:[%s3 + $0x580] sm:$0xff]
  %v1393 = vld [vmem:[%s3 + $0x588] sm:$0xff]
  %v1394 = vld [vmem:[%s3 + $0x590] sm:$0xff]
  %v1395 = vld [vmem:[%s3 + $0x598] sm:$0xff]
  %v1396 = vld [vmem:[%s3 + $0x5a0] sm:$0xff]
  %v1397 = vld [vmem:[%s3 + $0x5a8] sm:$0xff]
  %v1398 = vld [vmem:[%s3 + $0x5b0] sm:$0xff]
  %v1399 = vld [vmem:[%s3 + $0x5b8] sm:$0xff]
  %v1400 = vld [vmem:[%s3 + $0x5c0] sm:$0xff]
  %v1401 = vld [vmem:[%s3 + $0x5c8] sm:$0xff]
  %v1402 = vld [vmem:[%s3 + $0x5d0] sm:$0xff]
  %v1403 = vld [vmem:[%s3 + $0x5d8] sm:$0xff]
  %v1404 = vld [vmem:[%s3 + $0x5e0] sm:$0xff]
  %v1405 = vld [vmem:[%s3 + $0x5e8] sm:$0xff]
  %v1406 = vld [vmem:[%s3 + $0x5f0] sm:$0xff]
  %v1407 = vld [vmem:[%s3 + $0x5f8] sm:$0xff]
  %v1408 = vld [vmem:[%s3 + $0x600] sm:$0xff]
  %v1409 = vld [vmem:[%s3 + $0x608] sm:$0xff]
  %v1410 = vld [vmem:[%s3 + $0x610] sm:$0xff]
  %v1411 = vld [vmem:[%s3 + $0x618] sm:$0xff]
  %v1412 = vld [vmem:[%s3 + $0x620] sm:$0xff]
  %v1413 = vld [vmem:[%s3 + $0x628] sm:$0xff]
  %v1414 = vld [vmem:[%s3 + $0x630] sm:$0xff]
  %v1415 = vld [vmem:[%s3 + $0x638] sm:$0xff]
  %v1416 = vld [vmem:[%s3 + $0x640] sm:$0xff]
  %v1417 = vld [vmem:[%s3 + $0x648] sm:$0xff]
  %v1418 = vld [vmem:[%s3 + $0x650] sm:$0xff]
  %v1419 = vld [vmem:[%s3 + $0x658] sm:$0xff]
  %v1420 = vld [vmem:[%s3 + $0x660] sm:$0xff]
  %v1421 = vld [vmem:[%s3 + $0x668] sm:$0xff]
  %v1422 = vld [vmem:[%s3 + $0x670] sm:$0xff]
  %v1423 = vld [vmem:[%s3 + $0x678] sm:$0xff]
  %v1424 = vld [vmem:[%s3 + $0x680] sm:$0xff]
  %v1425 = vld [vmem:[%s3 + $0x688] sm:$0xff]
  %v1426 = vld [vmem:[%s3 + $0x690] sm:$0xff]
  %v1427 = vld [vmem:[%s3 + $0x698] sm:$0xff]
  %v1428 = vld [vmem:[%s3 + $0x6a0] sm:$0xff]
  %v1429 = vld [vmem:[%s3 + $0x6a8] sm:$0xff]
  %v1430 = vld [vmem:[%s3 + $0x6b0] sm:$0xff]
  %v1431 = vld [vmem:[%s3 + $0x6b8] sm:$0xff]
  %v1432 = vld [vmem:[%s3 + $0x6c0] sm:$0xff]
  %v1433 = vld [vmem:[%s3 + $0x6c8] sm:$0xff]
  %v1434 = vld [vmem:[%s3 + $0x6d0] sm:$0xff]
  %v1435 = vld [vmem:[%s3 + $0x6d8] sm:$0xff]
  %v1436 = vld [vmem:[%s3 + $0x6e0] sm:$0xff]
  %v1437 = vld [vmem:[%s3 + $0x6e8] sm:$0xff]
  %v1438 = vld [vmem:[%s3 + $0x6f0] sm:$0xff]
  %v1439 = vld [vmem:[%s3 + $0x6f8] sm:$0xff]
  %v1440 = vld [vmem:[%s3 + $0x700] sm:$0xff]
  %v1441 = vld [vmem:[%s3 + $0x708] sm:$0xff]
  %v1442 = vld [vmem:[%s3 + $0x710] sm:$0xff]
  %v1443 = vld [vmem:[%s3 + $0x718] sm:$0xff]
  %v1444 = vld [vmem:[%s3 + $0x720] sm:$0xff]
  %v1445 = vld [vmem:[%s3 + $0x728] sm:$0xff]
  %v1446 = vld [vmem:[%s3 + $0x730] sm:$0xff]
  %v1447 = vld [vmem:[%s3 + $0x738] sm:$0xff]
  %v1448 = vld [vmem:[%s3 + $0x740] sm:$0xff]
  %v1449 = vld [vmem:[%s3 + $0x748] sm:$0xff]
  %v1450 = vld [vmem:[%s3 + $0x750] sm:$0xff]
  %v1451 = vld [vmem:[%s3 + $0x758] sm:$0xff]
  %v1452 = vld [vmem:[%s3 + $0x760] sm:$0xff]
  %v1453 = vld [vmem:[%s3 + $0x768] sm:$0xff]
  %v1454 = vld [vmem:[%s3 + $0x770] sm:$0xff]
  %v1455 = vld [vmem:[%s3 + $0x778] sm:$0xff]
  %v1456 = vld [vmem:[%s3 + $0x780] sm:$0xff]
  %v1457 = vld [vmem:[%s3 + $0x788] sm:$0xff]
  %v1458 = vld [vmem:[%s3 + $0x790] sm:$0xff]
  %v1459 = vld [vmem:[%s3 + $0x798] sm:$0xff]
  %v1460 = vld [vmem:[%s3 + $0x7a0] sm:$0xff]
  %v1461 = vld [vmem:[%s3 + $0x7a8] sm:$0xff]
  %v1462 = vld [vmem:[%s3 + $0x7b0] sm:$0xff]
  %v1463 = vld [vmem:[%s3 + $0x7b8] sm:$0xff]
  %v1464 = vld [vmem:[%s3 + $0x7c0] sm:$0xff]
  %v1465 = vld [vmem:[%s3 + $0x7c8] sm:$0xff]
  %v1466 = vld [vmem:[%s3 + $0x7d0] sm:$0xff]
  %v1467 = vld [vmem:[%s3 + $0x7d8] sm:$0xff]
  %v1468 = vld [vmem:[%s3 + $0x7e0] sm:$0xff]
  %v1469 = vld [vmem:[%s3 + $0x7e8] sm:$0xff]
  %v1470 = vld [vmem:[%s3 + $0x7f0] sm:$0xff]
  %v1471 = vld [vmem:[%s3 + $0x7f8] sm:$0xff]
  %v1472 = vld [vmem:[%s4] sm:$0xf]
  %v1474 = vlaneseq
  %v1475 = vshrl.u32 %v1474, 7
  %v1476 = vsub.s32 0, %v1475
  %v1477 = vrot.slane %v1472, %v1476
  %v1478 = vlaneseq
  %v1479 = vshrl.u32 %v1478, 7
  %v1480 = vsub.s32 1, %v1479
  %v1481 = vrot.slane %v1472, %v1480
  %v1482 = vlaneseq
  %v1483 = vshrl.u32 %v1482, 7
  %v1484 = vsub.s32 2, %v1483
  %v1485 = vrot.slane %v1472, %v1484
  %v1486 = vlaneseq
  %v1487 = vshrl.u32 %v1486, 7
  %v1488 = vsub.s32 3, %v1487
  %v1489 = vrot.slane %v1472, %v1488
  %v1750 = vunpack.c.l.b16 %v1216
  %v1751 = vunpack.c.h.b16 %v1216
  %v1752 = vunpack.c.l.b16 %v1217
  %v1753 = vunpack.c.h.b16 %v1217
  %v1754 = vunpack.c.l.b16 %v1218
  %v1755 = vunpack.c.h.b16 %v1218
  %v1756 = vunpack.c.l.b16 %v1219
  %v1757 = vunpack.c.h.b16 %v1219
  %v1758 = vunpack.c.l.b16 %v1220
  %v1759 = vunpack.c.h.b16 %v1220
  %v1760 = vunpack.c.l.b16 %v1221
  %v1761 = vunpack.c.h.b16 %v1221
  %v1762 = vunpack.c.l.b16 %v1222
  %v1763 = vunpack.c.h.b16 %v1222
  %v1764 = vunpack.c.l.b16 %v1223
  %v1765 = vunpack.c.h.b16 %v1223
  %v1766 = vunpack.c.l.b16 %v1224
  %v1767 = vunpack.c.h.b16 %v1224
  %v1768 = vunpack.c.l.b16 %v1225
  %v1769 = vunpack.c.h.b16 %v1225
  %v1770 = vunpack.c.l.b16 %v1226
  %v1771 = vunpack.c.h.b16 %v1226
  %v1772 = vunpack.c.l.b16 %v1227
  %v1773 = vunpack.c.h.b16 %v1227
  %v1774 = vunpack.c.l.b16 %v1228
  %v1775 = vunpack.c.h.b16 %v1228
  %v1776 = vunpack.c.l.b16 %v1229
  %v1777 = vunpack.c.h.b16 %v1229
  %v1778 = vunpack.c.l.b16 %v1230
  %v1779 = vunpack.c.h.b16 %v1230
  %v1780 = vunpack.c.l.b16 %v1231
  %v1781 = vunpack.c.h.b16 %v1231
  %v1782 = vunpack.c.l.b16 %v1232
  %v1783 = vunpack.c.h.b16 %v1232
  %v1784 = vunpack.c.l.b16 %v1233
  %v1785 = vunpack.c.h.b16 %v1233
  %v1786 = vunpack.c.l.b16 %v1234
  %v1787 = vunpack.c.h.b16 %v1234
  %v1788 = vunpack.c.l.b16 %v1235
  %v1789 = vunpack.c.h.b16 %v1235
  %v1790 = vunpack.c.l.b16 %v1236
  %v1791 = vunpack.c.h.b16 %v1236
  %v1792 = vunpack.c.l.b16 %v1237
  %v1793 = vunpack.c.h.b16 %v1237
  %v1794 = vunpack.c.l.b16 %v1238
  %v1795 = vunpack.c.h.b16 %v1238
  %v1796 = vunpack.c.l.b16 %v1239
  %v1797 = vunpack.c.h.b16 %v1239
  %v1798 = vunpack.c.l.b16 %v1240
  %v1799 = vunpack.c.h.b16 %v1240
  %v1800 = vunpack.c.l.b16 %v1241
  %v1801 = vunpack.c.h.b16 %v1241
  %v1802 = vunpack.c.l.b16 %v1242
  %v1803 = vunpack.c.h.b16 %v1242
  %v1804 = vunpack.c.l.b16 %v1243
  %v1805 = vunpack.c.h.b16 %v1243
  %v1806 = vunpack.c.l.b16 %v1244
  %v1807 = vunpack.c.h.b16 %v1244
  %v1808 = vunpack.c.l.b16 %v1245
  %v1809 = vunpack.c.h.b16 %v1245
  %v1810 = vunpack.c.l.b16 %v1246
  %v1811 = vunpack.c.h.b16 %v1246
  %v1812 = vunpack.c.l.b16 %v1247
  %v1813 = vunpack.c.h.b16 %v1247
  %v1814 = vunpack.c.l.b16 %v1248
  %v1815 = vunpack.c.h.b16 %v1248
  %v1816 = vunpack.c.l.b16 %v1249
  %v1817 = vunpack.c.h.b16 %v1249
  %v1818 = vunpack.c.l.b16 %v1250
  %v1819 = vunpack.c.h.b16 %v1250
  %v1820 = vunpack.c.l.b16 %v1251
  %v1821 = vunpack.c.h.b16 %v1251
  %v1822 = vunpack.c.l.b16 %v1252
  %v1823 = vunpack.c.h.b16 %v1252
  %v1824 = vunpack.c.l.b16 %v1253
  %v1825 = vunpack.c.h.b16 %v1253
  %v1826 = vunpack.c.l.b16 %v1254
  %v1827 = vunpack.c.h.b16 %v1254
  %v1828 = vunpack.c.l.b16 %v1255
  %v1829 = vunpack.c.h.b16 %v1255
  %v1830 = vunpack.c.l.b16 %v1256
  %v1831 = vunpack.c.h.b16 %v1256
  %v1832 = vunpack.c.l.b16 %v1257
  %v1833 = vunpack.c.h.b16 %v1257
  %v1834 = vunpack.c.l.b16 %v1258
  %v1835 = vunpack.c.h.b16 %v1258
  %v1836 = vunpack.c.l.b16 %v1259
  %v1837 = vunpack.c.h.b16 %v1259
  %v1838 = vunpack.c.l.b16 %v1260
  %v1839 = vunpack.c.h.b16 %v1260
  %v1840 = vunpack.c.l.b16 %v1261
  %v1841 = vunpack.c.h.b16 %v1261
  %v1842 = vunpack.c.l.b16 %v1262
  %v1843 = vunpack.c.h.b16 %v1262
  %v1844 = vunpack.c.l.b16 %v1263
  %v1845 = vunpack.c.h.b16 %v1263
  %v1846 = vunpack.c.l.b16 %v1264
  %v1847 = vunpack.c.h.b16 %v1264
  %v1848 = vunpack.c.l.b16 %v1265
  %v1849 = vunpack.c.h.b16 %v1265
  %v1850 = vunpack.c.l.b16 %v1266
  %v1851 = vunpack.c.h.b16 %v1266
  %v1852 = vunpack.c.l.b16 %v1267
  %v1853 = vunpack.c.h.b16 %v1267
  %v1854 = vunpack.c.l.b16 %v1268
  %v1855 = vunpack.c.h.b16 %v1268
  %v1856 = vunpack.c.l.b16 %v1269
  %v1857 = vunpack.c.h.b16 %v1269
  %v1858 = vunpack.c.l.b16 %v1270
  %v1859 = vunpack.c.h.b16 %v1270
  %v1860 = vunpack.c.l.b16 %v1271
  %v1861 = vunpack.c.h.b16 %v1271
  %v1862 = vunpack.c.l.b16 %v1272
  %v1863 = vunpack.c.h.b16 %v1272
  %v1864 = vunpack.c.l.b16 %v1273
  %v1865 = vunpack.c.h.b16 %v1273
  %v1866 = vunpack.c.l.b16 %v1274
  %v1867 = vunpack.c.h.b16 %v1274
  %v1868 = vunpack.c.l.b16 %v1275
  %v1869 = vunpack.c.h.b16 %v1275
  %v1870 = vunpack.c.l.b16 %v1276
  %v1871 = vunpack.c.h.b16 %v1276
  %v1872 = vunpack.c.l.b16 %v1277
  %v1873 = vunpack.c.h.b16 %v1277
  %v1874 = vunpack.c.l.b16 %v1278
  %v1875 = vunpack.c.h.b16 %v1278
  %v1876 = vunpack.c.l.b16 %v1279
  %v1877 = vunpack.c.h.b16 %v1279
  %v1878 = vunpack.c.l.b16 %v1280
  %v1879 = vunpack.c.h.b16 %v1280
  %v1880 = vunpack.c.l.b16 %v1281
  %v1881 = vunpack.c.h.b16 %v1281
  %v1882 = vunpack.c.l.b16 %v1282
  %v1883 = vunpack.c.h.b16 %v1282
  %v1884 = vunpack.c.l.b16 %v1283
  %v1885 = vunpack.c.h.b16 %v1283
  %v1886 = vunpack.c.l.b16 %v1284
  %v1887 = vunpack.c.h.b16 %v1284
  %v1888 = vunpack.c.l.b16 %v1285
  %v1889 = vunpack.c.h.b16 %v1285
  %v1890 = vunpack.c.l.b16 %v1286
  %v1891 = vunpack.c.h.b16 %v1286
  %v1892 = vunpack.c.l.b16 %v1287
  %v1893 = vunpack.c.h.b16 %v1287
  %v1894 = vunpack.c.l.b16 %v1288
  %v1895 = vunpack.c.h.b16 %v1288
  %v1896 = vunpack.c.l.b16 %v1289
  %v1897 = vunpack.c.h.b16 %v1289
  %v1898 = vunpack.c.l.b16 %v1290
  %v1899 = vunpack.c.h.b16 %v1290
  %v1900 = vunpack.c.l.b16 %v1291
  %v1901 = vunpack.c.h.b16 %v1291
  %v1902 = vunpack.c.l.b16 %v1292
  %v1903 = vunpack.c.h.b16 %v1292
  %v1904 = vunpack.c.l.b16 %v1293
  %v1905 = vunpack.c.h.b16 %v1293
  %v1906 = vunpack.c.l.b16 %v1294
  %v1907 = vunpack.c.h.b16 %v1294
  %v1908 = vunpack.c.l.b16 %v1295
  %v1909 = vunpack.c.h.b16 %v1295
  %v1910 = vunpack.c.l.b16 %v1296
  %v1911 = vunpack.c.h.b16 %v1296
  %v1912 = vunpack.c.l.b16 %v1297
  %v1913 = vunpack.c.h.b16 %v1297
  %v1914 = vunpack.c.l.b16 %v1298
  %v1915 = vunpack.c.h.b16 %v1298
  %v1916 = vunpack.c.l.b16 %v1299
  %v1917 = vunpack.c.h.b16 %v1299
  %v1918 = vunpack.c.l.b16 %v1300
  %v1919 = vunpack.c.h.b16 %v1300
  %v1920 = vunpack.c.l.b16 %v1301
  %v1921 = vunpack.c.h.b16 %v1301
  %v1922 = vunpack.c.l.b16 %v1302
  %v1923 = vunpack.c.h.b16 %v1302
  %v1924 = vunpack.c.l.b16 %v1303
  %v1925 = vunpack.c.h.b16 %v1303
  %v1926 = vunpack.c.l.b16 %v1304
  %v1927 = vunpack.c.h.b16 %v1304
  %v1928 = vunpack.c.l.b16 %v1305
  %v1929 = vunpack.c.h.b16 %v1305
  %v1930 = vunpack.c.l.b16 %v1306
  %v1931 = vunpack.c.h.b16 %v1306
  %v1932 = vunpack.c.l.b16 %v1307
  %v1933 = vunpack.c.h.b16 %v1307
  %v1934 = vunpack.c.l.b16 %v1308
  %v1935 = vunpack.c.h.b16 %v1308
  %v1936 = vunpack.c.l.b16 %v1309
  %v1937 = vunpack.c.h.b16 %v1309
  %v1938 = vunpack.c.l.b16 %v1310
  %v1939 = vunpack.c.h.b16 %v1310
  %v1940 = vunpack.c.l.b16 %v1311
  %v1941 = vunpack.c.h.b16 %v1311
  %v1942 = vunpack.c.l.b16 %v1312
  %v1943 = vunpack.c.h.b16 %v1312
  %v1944 = vunpack.c.l.b16 %v1313
  %v1945 = vunpack.c.h.b16 %v1313
  %v1946 = vunpack.c.l.b16 %v1314
  %v1947 = vunpack.c.h.b16 %v1314
  %v1948 = vunpack.c.l.b16 %v1315
  %v1949 = vunpack.c.h.b16 %v1315
  %v1950 = vunpack.c.l.b16 %v1316
  %v1951 = vunpack.c.h.b16 %v1316
  %v1952 = vunpack.c.l.b16 %v1317
  %v1953 = vunpack.c.h.b16 %v1317
  %v1954 = vunpack.c.l.b16 %v1318
  %v1955 = vunpack.c.h.b16 %v1318
  %v1956 = vunpack.c.l.b16 %v1319
  %v1957 = vunpack.c.h.b16 %v1319
  %v1958 = vunpack.c.l.b16 %v1320
  %v1959 = vunpack.c.h.b16 %v1320
  %v1960 = vunpack.c.l.b16 %v1321
  %v1961 = vunpack.c.h.b16 %v1321
  %v1962 = vunpack.c.l.b16 %v1322
  %v1963 = vunpack.c.h.b16 %v1322
  %v1964 = vunpack.c.l.b16 %v1323
  %v1965 = vunpack.c.h.b16 %v1323
  %v1966 = vunpack.c.l.b16 %v1324
  %v1967 = vunpack.c.h.b16 %v1324
  %v1968 = vunpack.c.l.b16 %v1325
  %v1969 = vunpack.c.h.b16 %v1325
  %v1970 = vunpack.c.l.b16 %v1326
  %v1971 = vunpack.c.h.b16 %v1326
  %v1972 = vunpack.c.l.b16 %v1327
  %v1973 = vunpack.c.h.b16 %v1327
  %v1974 = vunpack.c.l.b16 %v1328
  %v1975 = vunpack.c.h.b16 %v1328
  %v1976 = vunpack.c.l.b16 %v1329
  %v1977 = vunpack.c.h.b16 %v1329
  %v1978 = vunpack.c.l.b16 %v1330
  %v1979 = vunpack.c.h.b16 %v1330
  %v1980 = vunpack.c.l.b16 %v1331
  %v1981 = vunpack.c.h.b16 %v1331
  %v1982 = vunpack.c.l.b16 %v1332
  %v1983 = vunpack.c.h.b16 %v1332
  %v1984 = vunpack.c.l.b16 %v1333
  %v1985 = vunpack.c.h.b16 %v1333
  %v1986 = vunpack.c.l.b16 %v1334
  %v1987 = vunpack.c.h.b16 %v1334
  %v1988 = vunpack.c.l.b16 %v1335
  %v1989 = vunpack.c.h.b16 %v1335
  %v1990 = vunpack.c.l.b16 %v1336
  %v1991 = vunpack.c.h.b16 %v1336
  %v1992 = vunpack.c.l.b16 %v1337
  %v1993 = vunpack.c.h.b16 %v1337
  %v1994 = vunpack.c.l.b16 %v1338
  %v1995 = vunpack.c.h.b16 %v1338
  %v1996 = vunpack.c.l.b16 %v1339
  %v1997 = vunpack.c.h.b16 %v1339
  %v1998 = vunpack.c.l.b16 %v1340
  %v1999 = vunpack.c.h.b16 %v1340
  %v2000 = vunpack.c.l.b16 %v1341
  %v2001 = vunpack.c.h.b16 %v1341
  %v2002 = vunpack.c.l.b16 %v1342
  %v2003 = vunpack.c.h.b16 %v1342
  %v2004 = vunpack.c.l.b16 %v1343
  %v2005 = vunpack.c.h.b16 %v1343
  %v2006 = vunpack.c.l.b16 %v1344
  %v2007 = vunpack.c.h.b16 %v1344
  %v2008 = vunpack.c.l.b16 %v1345
  %v2009 = vunpack.c.h.b16 %v1345
  %v2010 = vunpack.c.l.b16 %v1346
  %v2011 = vunpack.c.h.b16 %v1346
  %v2012 = vunpack.c.l.b16 %v1347
  %v2013 = vunpack.c.h.b16 %v1347
  %v2014 = vunpack.c.l.b16 %v1348
  %v2015 = vunpack.c.h.b16 %v1348
  %v2016 = vunpack.c.l.b16 %v1349
  %v2017 = vunpack.c.h.b16 %v1349
  %v2018 = vunpack.c.l.b16 %v1350
  %v2019 = vunpack.c.h.b16 %v1350
  %v2020 = vunpack.c.l.b16 %v1351
  %v2021 = vunpack.c.h.b16 %v1351
  %v2022 = vunpack.c.l.b16 %v1352
  %v2023 = vunpack.c.h.b16 %v1352
  %v2024 = vunpack.c.l.b16 %v1353
  %v2025 = vunpack.c.h.b16 %v1353
  %v2026 = vunpack.c.l.b16 %v1354
  %v2027 = vunpack.c.h.b16 %v1354
  %v2028 = vunpack.c.l.b16 %v1355
  %v2029 = vunpack.c.h.b16 %v1355
  %v2030 = vunpack.c.l.b16 %v1356
  %v2031 = vunpack.c.h.b16 %v1356
  %v2032 = vunpack.c.l.b16 %v1357
  %v2033 = vunpack.c.h.b16 %v1357
  %v2034 = vunpack.c.l.b16 %v1358
  %v2035 = vunpack.c.h.b16 %v1358
  %v2036 = vunpack.c.l.b16 %v1359
  %v2037 = vunpack.c.h.b16 %v1359
  %v2038 = vunpack.c.l.b16 %v1360
  %v2039 = vunpack.c.h.b16 %v1360
  %v2040 = vunpack.c.l.b16 %v1361
  %v2041 = vunpack.c.h.b16 %v1361
  %v2042 = vunpack.c.l.b16 %v1362
  %v2043 = vunpack.c.h.b16 %v1362
  %v2044 = vunpack.c.l.b16 %v1363
  %v2045 = vunpack.c.h.b16 %v1363
  %v2046 = vunpack.c.l.b16 %v1364
  %v2047 = vunpack.c.h.b16 %v1364
  %v2048 = vunpack.c.l.b16 %v1365
  %v2049 = vunpack.c.h.b16 %v1365
  %v2050 = vunpack.c.l.b16 %v1366
  %v2051 = vunpack.c.h.b16 %v1366
  %v2052 = vunpack.c.l.b16 %v1367
  %v2053 = vunpack.c.h.b16 %v1367
  %v2054 = vunpack.c.l.b16 %v1368
  %v2055 = vunpack.c.h.b16 %v1368
  %v2056 = vunpack.c.l.b16 %v1369
  %v2057 = vunpack.c.h.b16 %v1369
  %v2058 = vunpack.c.l.b16 %v1370
  %v2059 = vunpack.c.h.b16 %v1370
  %v2060 = vunpack.c.l.b16 %v1371
  %v2061 = vunpack.c.h.b16 %v1371
  %v2062 = vunpack.c.l.b16 %v1372
  %v2063 = vunpack.c.h.b16 %v1372
  %v2064 = vunpack.c.l.b16 %v1373
  %v2065 = vunpack.c.h.b16 %v1373
  %v2066 = vunpack.c.l.b16 %v1374
  %v2067 = vunpack.c.h.b16 %v1374
  %v2068 = vunpack.c.l.b16 %v1375
  %v2069 = vunpack.c.h.b16 %v1375
  %v2070 = vunpack.c.l.b16 %v1376
  %v2071 = vunpack.c.h.b16 %v1376
  %v2072 = vunpack.c.l.b16 %v1377
  %v2073 = vunpack.c.h.b16 %v1377
  %v2074 = vunpack.c.l.b16 %v1378
  %v2075 = vunpack.c.h.b16 %v1378
  %v2076 = vunpack.c.l.b16 %v1379
  %v2077 = vunpack.c.h.b16 %v1379
  %v2078 = vunpack.c.l.b16 %v1380
  %v2079 = vunpack.c.h.b16 %v1380
  %v2080 = vunpack.c.l.b16 %v1381
  %v2081 = vunpack.c.h.b16 %v1381
  %v2082 = vunpack.c.l.b16 %v1382
  %v2083 = vunpack.c.h.b16 %v1382
  %v2084 = vunpack.c.l.b16 %v1383
  %v2085 = vunpack.c.h.b16 %v1383
  %v2086 = vunpack.c.l.b16 %v1384
  %v2087 = vunpack.c.h.b16 %v1384
  %v2088 = vunpack.c.l.b16 %v1385
  %v2089 = vunpack.c.h.b16 %v1385
  %v2090 = vunpack.c.l.b16 %v1386
  %v2091 = vunpack.c.h.b16 %v1386
  %v2092 = vunpack.c.l.b16 %v1387
  %v2093 = vunpack.c.h.b16 %v1387
  %v2094 = vunpack.c.l.b16 %v1388
  %v2095 = vunpack.c.h.b16 %v1388
  %v2096 = vunpack.c.l.b16 %v1389
  %v2097 = vunpack.c.h.b16 %v1389
  %v2098 = vunpack.c.l.b16 %v1390
  %v2099 = vunpack.c.h.b16 %v1390
  %v2100 = vunpack.c.l.b16 %v1391
  %v2101 = vunpack.c.h.b16 %v1391
  %v2102 = vunpack.c.l.b16 %v1392
  %v2103 = vunpack.c.h.b16 %v1392
  %v2104 = vunpack.c.l.b16 %v1393
  %v2105 = vunpack.c.h.b16 %v1393
  %v2106 = vunpack.c.l.b16 %v1394
  %v2107 = vunpack.c.h.b16 %v1394
  %v2108 = vunpack.c.l.b16 %v1395
  %v2109 = vunpack.c.h.b16 %v1395
  %v2110 = vunpack.c.l.b16 %v1396
  %v2111 = vunpack.c.h.b16 %v1396
  %v2112 = vunpack.c.l.b16 %v1397
  %v2113 = vunpack.c.h.b16 %v1397
  %v2114 = vunpack.c.l.b16 %v1398
  %v2115 = vunpack.c.h.b16 %v1398
  %v2116 = vunpack.c.l.b16 %v1399
  %v2117 = vunpack.c.h.b16 %v1399
  %v2118 = vunpack.c.l.b16 %v1400
  %v2119 = vunpack.c.h.b16 %v1400
  %v2120 = vunpack.c.l.b16 %v1401
  %v2121 = vunpack.c.h.b16 %v1401
  %v2122 = vunpack.c.l.b16 %v1402
  %v2123 = vunpack.c.h.b16 %v1402
  %v2124 = vunpack.c.l.b16 %v1403
  %v2125 = vunpack.c.h.b16 %v1403
  %v2126 = vunpack.c.l.b16 %v1404
  %v2127 = vunpack.c.h.b16 %v1404
  %v2128 = vunpack.c.l.b16 %v1405
  %v2129 = vunpack.c.h.b16 %v1405
  %v2130 = vunpack.c.l.b16 %v1406
  %v2131 = vunpack.c.h.b16 %v1406
  %v2132 = vunpack.c.l.b16 %v1407
  %v2133 = vunpack.c.h.b16 %v1407
  %v2134 = vunpack.c.l.b16 %v1408
  %v2135 = vunpack.c.h.b16 %v1408
  %v2136 = vunpack.c.l.b16 %v1409
  %v2137 = vunpack.c.h.b16 %v1409
  %v2138 = vunpack.c.l.b16 %v1410
  %v2139 = vunpack.c.h.b16 %v1410
  %v2140 = vunpack.c.l.b16 %v1411
  %v2141 = vunpack.c.h.b16 %v1411
  %v2142 = vunpack.c.l.b16 %v1412
  %v2143 = vunpack.c.h.b16 %v1412
  %v2144 = vunpack.c.l.b16 %v1413
  %v2145 = vunpack.c.h.b16 %v1413
  %v2146 = vunpack.c.l.b16 %v1414
  %v2147 = vunpack.c.h.b16 %v1414
  %v2148 = vunpack.c.l.b16 %v1415
  %v2149 = vunpack.c.h.b16 %v1415
  %v2150 = vunpack.c.l.b16 %v1416
  %v2151 = vunpack.c.h.b16 %v1416
  %v2152 = vunpack.c.l.b16 %v1417
  %v2153 = vunpack.c.h.b16 %v1417
  %v2154 = vunpack.c.l.b16 %v1418
  %v2155 = vunpack.c.h.b16 %v1418
  %v2156 = vunpack.c.l.b16 %v1419
  %v2157 = vunpack.c.h.b16 %v1419
  %v2158 = vunpack.c.l.b16 %v1420
  %v2159 = vunpack.c.h.b16 %v1420
  %v2160 = vunpack.c.l.b16 %v1421
  %v2161 = vunpack.c.h.b16 %v1421
  %v2162 = vunpack.c.l.b16 %v1422
  %v2163 = vunpack.c.h.b16 %v1422
  %v2164 = vunpack.c.l.b16 %v1423
  %v2165 = vunpack.c.h.b16 %v1423
  %v2166 = vunpack.c.l.b16 %v1424
  %v2167 = vunpack.c.h.b16 %v1424
  %v2168 = vunpack.c.l.b16 %v1425
  %v2169 = vunpack.c.h.b16 %v1425
  %v2170 = vunpack.c.l.b16 %v1426
  %v2171 = vunpack.c.h.b16 %v1426
  %v2172 = vunpack.c.l.b16 %v1427
  %v2173 = vunpack.c.h.b16 %v1427
  %v2174 = vunpack.c.l.b16 %v1428
  %v2175 = vunpack.c.h.b16 %v1428
  %v2176 = vunpack.c.l.b16 %v1429
  %v2177 = vunpack.c.h.b16 %v1429
  %v2178 = vunpack.c.l.b16 %v1430
  %v2179 = vunpack.c.h.b16 %v1430
  %v2180 = vunpack.c.l.b16 %v1431
  %v2181 = vunpack.c.h.b16 %v1431
  %v2182 = vunpack.c.l.b16 %v1432
  %v2183 = vunpack.c.h.b16 %v1432
  %v2184 = vunpack.c.l.b16 %v1433
  %v2185 = vunpack.c.h.b16 %v1433
  %v2186 = vunpack.c.l.b16 %v1434
  %v2187 = vunpack.c.h.b16 %v1434
  %v2188 = vunpack.c.l.b16 %v1435
  %v2189 = vunpack.c.h.b16 %v1435
  %v2190 = vunpack.c.l.b16 %v1436
  %v2191 = vunpack.c.h.b16 %v1436
  %v2192 = vunpack.c.l.b16 %v1437
  %v2193 = vunpack.c.h.b16 %v1437
  %v2194 = vunpack.c.l.b16 %v1438
  %v2195 = vunpack.c.h.b16 %v1438
  %v2196 = vunpack.c.l.b16 %v1439
  %v2197 = vunpack.c.h.b16 %v1439
  %v2198 = vunpack.c.l.b16 %v1440
  %v2199 = vunpack.c.h.b16 %v1440
  %v2200 = vunpack.c.l.b16 %v1441
  %v2201 = vunpack.c.h.b16 %v1441
  %v2202 = vunpack.c.l.b16 %v1442
  %v2203 = vunpack.c.h.b16 %v1442
  %v2204 = vunpack.c.l.b16 %v1443
  %v2205 = vunpack.c.h.b16 %v1443
  %v2206 = vunpack.c.l.b16 %v1444
  %v2207 = vunpack.c.h.b16 %v1444
  %v2208 = vunpack.c.l.b16 %v1445
  %v2209 = vunpack.c.h.b16 %v1445
  %v2210 = vunpack.c.l.b16 %v1446
  %v2211 = vunpack.c.h.b16 %v1446
  %v2212 = vunpack.c.l.b16 %v1447
  %v2213 = vunpack.c.h.b16 %v1447
  %v2214 = vunpack.c.l.b16 %v1448
  %v2215 = vunpack.c.h.b16 %v1448
  %v2216 = vunpack.c.l.b16 %v1449
  %v2217 = vunpack.c.h.b16 %v1449
  %v2218 = vunpack.c.l.b16 %v1450
  %v2219 = vunpack.c.h.b16 %v1450
  %v2220 = vunpack.c.l.b16 %v1451
  %v2221 = vunpack.c.h.b16 %v1451
  %v2222 = vunpack.c.l.b16 %v1452
  %v2223 = vunpack.c.h.b16 %v1452
  %v2224 = vunpack.c.l.b16 %v1453
  %v2225 = vunpack.c.h.b16 %v1453
  %v2226 = vunpack.c.l.b16 %v1454
  %v2227 = vunpack.c.h.b16 %v1454
  %v2228 = vunpack.c.l.b16 %v1455
  %v2229 = vunpack.c.h.b16 %v1455
  %v2230 = vunpack.c.l.b16 %v1456
  %v2231 = vunpack.c.h.b16 %v1456
  %v2232 = vunpack.c.l.b16 %v1457
  %v2233 = vunpack.c.h.b16 %v1457
  %v2234 = vunpack.c.l.b16 %v1458
  %v2235 = vunpack.c.h.b16 %v1458
  %v2236 = vunpack.c.l.b16 %v1459
  %v2237 = vunpack.c.h.b16 %v1459
  %v2238 = vunpack.c.l.b16 %v1460
  %v2239 = vunpack.c.h.b16 %v1460
  %v2240 = vunpack.c.l.b16 %v1461
  %v2241 = vunpack.c.h.b16 %v1461
  %v2242 = vunpack.c.l.b16 %v1462
  %v2243 = vunpack.c.h.b16 %v1462
  %v2244 = vunpack.c.l.b16 %v1463
  %v2245 = vunpack.c.h.b16 %v1463
  %v2246 = vunpack.c.l.b16 %v1464
  %v2247 = vunpack.c.h.b16 %v1464
  %v2248 = vunpack.c.l.b16 %v1465
  %v2249 = vunpack.c.h.b16 %v1465
  %v2250 = vunpack.c.l.b16 %v1466
  %v2251 = vunpack.c.h.b16 %v1466
  %v2252 = vunpack.c.l.b16 %v1467
  %v2253 = vunpack.c.h.b16 %v1467
  %v2254 = vunpack.c.l.b16 %v1468
  %v2255 = vunpack.c.h.b16 %v1468
  %v2256 = vunpack.c.l.b16 %v1469
  %v2257 = vunpack.c.h.b16 %v1469
  %v2258 = vunpack.c.l.b16 %v1470
  %v2259 = vunpack.c.h.b16 %v1470
  %v2260 = vunpack.c.l.b16 %v1471
  %v2261 = vunpack.c.h.b16 %v1471
  %v2262 = vpack.c.b16 %v1754, %v1750
  %v2263 = vpack.c.b16 %v1755, %v1751
  %v2264 = vpack.c.b16 %v1756, %v1752
  %v2265 = vpack.c.b16 %v1757, %v1753
  %v2266 = vpack.c.b16 %v1762, %v1758
  %v2267 = vpack.c.b16 %v1763, %v1759
  %v2268 = vpack.c.b16 %v1764, %v1760
  %v2269 = vpack.c.b16 %v1765, %v1761
  %v2270 = vpack.c.b16 %v1770, %v1766
  %v2271 = vpack.c.b16 %v1771, %v1767
  %v2272 = vpack.c.b16 %v1772, %v1768
  %v2273 = vpack.c.b16 %v1773, %v1769
  %v2274 = vpack.c.b16 %v1778, %v1774
  %v2275 = vpack.c.b16 %v1779, %v1775
  %v2276 = vpack.c.b16 %v1780, %v1776
  %v2277 = vpack.c.b16 %v1781, %v1777
  %v2278 = vpack.c.b16 %v1786, %v1782
  %v2279 = vpack.c.b16 %v1787, %v1783
  %v2280 = vpack.c.b16 %v1788, %v1784
  %v2281 = vpack.c.b16 %v1789, %v1785
  %v2282 = vpack.c.b16 %v1794, %v1790
  %v2283 = vpack.c.b16 %v1795, %v1791
  %v2284 = vpack.c.b16 %v1796, %v1792
  %v2285 = vpack.c.b16 %v1797, %v1793
  %v2286 = vpack.c.b16 %v1802, %v1798
  %v2287 = vpack.c.b16 %v1803, %v1799
  %v2288 = vpack.c.b16 %v1804, %v1800
  %v2289 = vpack.c.b16 %v1805, %v1801
  %v2290 = vpack.c.b16 %v1810, %v1806
  %v2291 = vpack.c.b16 %v1811, %v1807
  %v2292 = vpack.c.b16 %v1812, %v1808
  %v2293 = vpack.c.b16 %v1813, %v1809
  %v2294 = vpack.c.b16 %v1818, %v1814
  %v2295 = vpack.c.b16 %v1819, %v1815
  %v2296 = vpack.c.b16 %v1820, %v1816
  %v2297 = vpack.c.b16 %v1821, %v1817
  %v2298 = vpack.c.b16 %v1826, %v1822
  %v2299 = vpack.c.b16 %v1827, %v1823
  %v2300 = vpack.c.b16 %v1828, %v1824
  %v2301 = vpack.c.b16 %v1829, %v1825
  %v2302 = vpack.c.b16 %v1834, %v1830
  %v2303 = vpack.c.b16 %v1835, %v1831
  %v2304 = vpack.c.b16 %v1836, %v1832
  %v2305 = vpack.c.b16 %v1837, %v1833
  %v2306 = vpack.c.b16 %v1842, %v1838
  %v2307 = vpack.c.b16 %v1843, %v1839
  %v2308 = vpack.c.b16 %v1844, %v1840
  %v2309 = vpack.c.b16 %v1845, %v1841
  %v2310 = vpack.c.b16 %v1850, %v1846
  %v2311 = vpack.c.b16 %v1851, %v1847
  %v2312 = vpack.c.b16 %v1852, %v1848
  %v2313 = vpack.c.b16 %v1853, %v1849
  %v2314 = vpack.c.b16 %v1858, %v1854
  %v2315 = vpack.c.b16 %v1859, %v1855
  %v2316 = vpack.c.b16 %v1860, %v1856
  %v2317 = vpack.c.b16 %v1861, %v1857
  %v2318 = vpack.c.b16 %v1866, %v1862
  %v2319 = vpack.c.b16 %v1867, %v1863
  %v2320 = vpack.c.b16 %v1868, %v1864
  %v2321 = vpack.c.b16 %v1869, %v1865
  %v2322 = vpack.c.b16 %v1874, %v1870
  %v2323 = vpack.c.b16 %v1875, %v1871
  %v2324 = vpack.c.b16 %v1876, %v1872
  %v2325 = vpack.c.b16 %v1877, %v1873
  %v2326 = vpack.c.b16 %v1882, %v1878
  %v2327 = vpack.c.b16 %v1883, %v1879
  %v2328 = vpack.c.b16 %v1884, %v1880
  %v2329 = vpack.c.b16 %v1885, %v1881
  %v2330 = vpack.c.b16 %v1890, %v1886
  %v2331 = vpack.c.b16 %v1891, %v1887
  %v2332 = vpack.c.b16 %v1892, %v1888
  %v2333 = vpack.c.b16 %v1893, %v1889
  %v2334 = vpack.c.b16 %v1898, %v1894
  %v2335 = vpack.c.b16 %v1899, %v1895
  %v2336 = vpack.c.b16 %v1900, %v1896
  %v2337 = vpack.c.b16 %v1901, %v1897
  %v2338 = vpack.c.b16 %v1906, %v1902
  %v2339 = vpack.c.b16 %v1907, %v1903
  %v2340 = vpack.c.b16 %v1908, %v1904
  %v2341 = vpack.c.b16 %v1909, %v1905
  %v2342 = vpack.c.b16 %v1914, %v1910
  %v2343 = vpack.c.b16 %v1915, %v1911
  %v2344 = vpack.c.b16 %v1916, %v1912
  %v2345 = vpack.c.b16 %v1917, %v1913
  %v2346 = vpack.c.b16 %v1922, %v1918
  %v2347 = vpack.c.b16 %v1923, %v1919
  %v2348 = vpack.c.b16 %v1924, %v1920
  %v2349 = vpack.c.b16 %v1925, %v1921
  %v2350 = vpack.c.b16 %v1930, %v1926
  %v2351 = vpack.c.b16 %v1931, %v1927
  %v2352 = vpack.c.b16 %v1932, %v1928
  %v2353 = vpack.c.b16 %v1933, %v1929
  %v2354 = vpack.c.b16 %v1938, %v1934
  %v2355 = vpack.c.b16 %v1939, %v1935
  %v2356 = vpack.c.b16 %v1940, %v1936
  %v2357 = vpack.c.b16 %v1941, %v1937
  %v2358 = vpack.c.b16 %v1946, %v1942
  %v2359 = vpack.c.b16 %v1947, %v1943
  %v2360 = vpack.c.b16 %v1948, %v1944
  %v2361 = vpack.c.b16 %v1949, %v1945
  %v2362 = vpack.c.b16 %v1954, %v1950
  %v2363 = vpack.c.b16 %v1955, %v1951
  %v2364 = vpack.c.b16 %v1956, %v1952
  %v2365 = vpack.c.b16 %v1957, %v1953
  %v2366 = vpack.c.b16 %v1962, %v1958
  %v2367 = vpack.c.b16 %v1963, %v1959
  %v2368 = vpack.c.b16 %v1964, %v1960
  %v2369 = vpack.c.b16 %v1965, %v1961
  %v2370 = vpack.c.b16 %v1970, %v1966
  %v2371 = vpack.c.b16 %v1971, %v1967
  %v2372 = vpack.c.b16 %v1972, %v1968
  %v2373 = vpack.c.b16 %v1973, %v1969
  %v2374 = vpack.c.b16 %v1978, %v1974
  %v2375 = vpack.c.b16 %v1979, %v1975
  %v2376 = vpack.c.b16 %v1980, %v1976
  %v2377 = vpack.c.b16 %v1981, %v1977
  %v2378 = vpack.c.b16 %v1986, %v1982
  %v2379 = vpack.c.b16 %v1987, %v1983
  %v2380 = vpack.c.b16 %v1988, %v1984
  %v2381 = vpack.c.b16 %v1989, %v1985
  %v2382 = vpack.c.b16 %v1994, %v1990
  %v2383 = vpack.c.b16 %v1995, %v1991
  %v2384 = vpack.c.b16 %v1996, %v1992
  %v2385 = vpack.c.b16 %v1997, %v1993
  %v2386 = vpack.c.b16 %v2002, %v1998
  %v2387 = vpack.c.b16 %v2003, %v1999
  %v2388 = vpack.c.b16 %v2004, %v2000
  %v2389 = vpack.c.b16 %v2005, %v2001
  %v2390 = vpack.c.b16 %v2010, %v2006
  %v2391 = vpack.c.b16 %v2011, %v2007
  %v2392 = vpack.c.b16 %v2012, %v2008
  %v2393 = vpack.c.b16 %v2013, %v2009
  %v2394 = vpack.c.b16 %v2018, %v2014
  %v2395 = vpack.c.b16 %v2019, %v2015
  %v2396 = vpack.c.b16 %v2020, %v2016
  %v2397 = vpack.c.b16 %v2021, %v2017
  %v2398 = vpack.c.b16 %v2026, %v2022
  %v2399 = vpack.c.b16 %v2027, %v2023
  %v2400 = vpack.c.b16 %v2028, %v2024
  %v2401 = vpack.c.b16 %v2029, %v2025
  %v2402 = vpack.c.b16 %v2034, %v2030
  %v2403 = vpack.c.b16 %v2035, %v2031
  %v2404 = vpack.c.b16 %v2036, %v2032
  %v2405 = vpack.c.b16 %v2037, %v2033
  %v2406 = vpack.c.b16 %v2042, %v2038
  %v2407 = vpack.c.b16 %v2043, %v2039
  %v2408 = vpack.c.b16 %v2044, %v2040
  %v2409 = vpack.c.b16 %v2045, %v2041
  %v2410 = vpack.c.b16 %v2050, %v2046
  %v2411 = vpack.c.b16 %v2051, %v2047
  %v2412 = vpack.c.b16 %v2052, %v2048
  %v2413 = vpack.c.b16 %v2053, %v2049
  %v2414 = vpack.c.b16 %v2058, %v2054
  %v2415 = vpack.c.b16 %v2059, %v2055
  %v2416 = vpack.c.b16 %v2060, %v2056
  %v2417 = vpack.c.b16 %v2061, %v2057
  %v2418 = vpack.c.b16 %v2066, %v2062
  %v2419 = vpack.c.b16 %v2067, %v2063
  %v2420 = vpack.c.b16 %v2068, %v2064
  %v2421 = vpack.c.b16 %v2069, %v2065
  %v2422 = vpack.c.b16 %v2074, %v2070
  %v2423 = vpack.c.b16 %v2075, %v2071
  %v2424 = vpack.c.b16 %v2076, %v2072
  %v2425 = vpack.c.b16 %v2077, %v2073
  %v2426 = vpack.c.b16 %v2082, %v2078
  %v2427 = vpack.c.b16 %v2083, %v2079
  %v2428 = vpack.c.b16 %v2084, %v2080
  %v2429 = vpack.c.b16 %v2085, %v2081
  %v2430 = vpack.c.b16 %v2090, %v2086
  %v2431 = vpack.c.b16 %v2091, %v2087
  %v2432 = vpack.c.b16 %v2092, %v2088
  %v2433 = vpack.c.b16 %v2093, %v2089
  %v2434 = vpack.c.b16 %v2098, %v2094
  %v2435 = vpack.c.b16 %v2099, %v2095
  %v2436 = vpack.c.b16 %v2100, %v2096
  %v2437 = vpack.c.b16 %v2101, %v2097
  %v2438 = vpack.c.b16 %v2106, %v2102
  %v2439 = vpack.c.b16 %v2107, %v2103
  %v2440 = vpack.c.b16 %v2108, %v2104
  %v2441 = vpack.c.b16 %v2109, %v2105
  %v2442 = vpack.c.b16 %v2114, %v2110
  %v2443 = vpack.c.b16 %v2115, %v2111
  %v2444 = vpack.c.b16 %v2116, %v2112
  %v2445 = vpack.c.b16 %v2117, %v2113
  %v2446 = vpack.c.b16 %v2122, %v2118
  %v2447 = vpack.c.b16 %v2123, %v2119
  %v2448 = vpack.c.b16 %v2124, %v2120
  %v2449 = vpack.c.b16 %v2125, %v2121
  %v2450 = vpack.c.b16 %v2130, %v2126
  %v2451 = vpack.c.b16 %v2131, %v2127
  %v2452 = vpack.c.b16 %v2132, %v2128
  %v2453 = vpack.c.b16 %v2133, %v2129
  %v2454 = vpack.c.b16 %v2138, %v2134
  %v2455 = vpack.c.b16 %v2139, %v2135
  %v2456 = vpack.c.b16 %v2140, %v2136
  %v2457 = vpack.c.b16 %v2141, %v2137
  %v2458 = vpack.c.b16 %v2146, %v2142
  %v2459 = vpack.c.b16 %v2147, %v2143
  %v2460 = vpack.c.b16 %v2148, %v2144
  %v2461 = vpack.c.b16 %v2149, %v2145
  %v2462 = vpack.c.b16 %v2154, %v2150
  %v2463 = vpack.c.b16 %v2155, %v2151
  %v2464 = vpack.c.b16 %v2156, %v2152
  %v2465 = vpack.c.b16 %v2157, %v2153
  %v2466 = vpack.c.b16 %v2162, %v2158
  %v2467 = vpack.c.b16 %v2163, %v2159
  %v2468 = vpack.c.b16 %v2164, %v2160
  %v2469 = vpack.c.b16 %v2165, %v2161
  %v2470 = vpack.c.b16 %v2170, %v2166
  %v2471 = vpack.c.b16 %v2171, %v2167
  %v2472 = vpack.c.b16 %v2172, %v2168
  %v2473 = vpack.c.b16 %v2173, %v2169
  %v2474 = vpack.c.b16 %v2178, %v2174
  %v2475 = vpack.c.b16 %v2179, %v2175
  %v2476 = vpack.c.b16 %v2180, %v2176
  %v2477 = vpack.c.b16 %v2181, %v2177
  %v2478 = vpack.c.b16 %v2186, %v2182
  %v2479 = vpack.c.b16 %v2187, %v2183
  %v2480 = vpack.c.b16 %v2188, %v2184
  %v2481 = vpack.c.b16 %v2189, %v2185
  %v2482 = vpack.c.b16 %v2194, %v2190
  %v2483 = vpack.c.b16 %v2195, %v2191
  %v2484 = vpack.c.b16 %v2196, %v2192
  %v2485 = vpack.c.b16 %v2197, %v2193
  %v2486 = vpack.c.b16 %v2202, %v2198
  %v2487 = vpack.c.b16 %v2203, %v2199
  %v2488 = vpack.c.b16 %v2204, %v2200
  %v2489 = vpack.c.b16 %v2205, %v2201
  %v2490 = vpack.c.b16 %v2210, %v2206
  %v2491 = vpack.c.b16 %v2211, %v2207
  %v2492 = vpack.c.b16 %v2212, %v2208
  %v2493 = vpack.c.b16 %v2213, %v2209
  %v2494 = vpack.c.b16 %v2218, %v2214
  %v2495 = vpack.c.b16 %v2219, %v2215
  %v2496 = vpack.c.b16 %v2220, %v2216
  %v2497 = vpack.c.b16 %v2221, %v2217
  %v2498 = vpack.c.b16 %v2226, %v2222
  %v2499 = vpack.c.b16 %v2227, %v2223
  %v2500 = vpack.c.b16 %v2228, %v2224
  %v2501 = vpack.c.b16 %v2229, %v2225
  %v2502 = vpack.c.b16 %v2234, %v2230
  %v2503 = vpack.c.b16 %v2235, %v2231
  %v2504 = vpack.c.b16 %v2236, %v2232
  %v2505 = vpack.c.b16 %v2237, %v2233
  %v2506 = vpack.c.b16 %v2242, %v2238
  %v2507 = vpack.c.b16 %v2243, %v2239
  %v2508 = vpack.c.b16 %v2244, %v2240
  %v2509 = vpack.c.b16 %v2245, %v2241
  %v2510 = vpack.c.b16 %v2250, %v2246
  %v2511 = vpack.c.b16 %v2251, %v2247
  %v2512 = vpack.c.b16 %v2252, %v2248
  %v2513 = vpack.c.b16 %v2253, %v2249
  %v2514 = vpack.c.b16 %v2258, %v2254
  %v2515 = vpack.c.b16 %v2259, %v2255
  %v2516 = vpack.c.b16 %v2260, %v2256
  %v2517 = vpack.c.b16 %v2261, %v2257
  %2774 = vmatprep.subr.bf16.mxu0 %v2263
  %2775 = vmatpush1.bf16.msra.mxu0 %v2262
  %2776 = vmatprep.subr.bf16.mxu0 %v2267
  %2777 = vmatpush1.bf16.msra.mxu0 %v2266
  %2778 = vmatprep.subr.bf16.mxu0 %v2271
  %2779 = vmatpush1.bf16.msra.mxu0 %v2270
  %2780 = vmatprep.subr.bf16.mxu0 %v2275
  %2781 = vmatpush1.bf16.msra.mxu0 %v2274
  %2782 = vmatprep.subr.bf16.mxu0 %v2279
  %2783 = vmatpush1.bf16.msra.mxu0 %v2278
  %2784 = vmatprep.subr.bf16.mxu0 %v2283
  %2785 = vmatpush1.bf16.msra.mxu0 %v2282
  %2786 = vmatprep.subr.bf16.mxu0 %v2287
  %2787 = vmatpush1.bf16.msra.mxu0 %v2286
  %2788 = vmatprep.subr.bf16.mxu0 %v2291
  %2789 = vmatpush1.bf16.msra.mxu0 %v2290
  %2790 = vmatprep.subr.bf16.mxu0 %v2295
  %2791 = vmatpush1.bf16.msra.mxu0 %v2294
  %2792 = vmatprep.subr.bf16.mxu0 %v2299
  %2793 = vmatpush1.bf16.msra.mxu0 %v2298
  %2794 = vmatprep.subr.bf16.mxu0 %v2303
  %2795 = vmatpush1.bf16.msra.mxu0 %v2302
  %2796 = vmatprep.subr.bf16.mxu0 %v2307
  %2797 = vmatpush1.bf16.msra.mxu0 %v2306
  %2798 = vmatprep.subr.bf16.mxu0 %v2311
  %2799 = vmatpush1.bf16.msra.mxu0 %v2310
  %2800 = vmatprep.subr.bf16.mxu0 %v2315
  %2801 = vmatpush1.bf16.msra.mxu0 %v2314
  %2802 = vmatprep.subr.bf16.mxu0 %v2319
  %2803 = vmatpush1.bf16.msra.mxu0 %v2318
  %2804 = vmatprep.subr.bf16.mxu0 %v2323
  %2805 = vmatpush1.bf16.msra.mxu0 %v2322
  %2806 = vmatprep.mubr.bf16.mxu0 %v1153
  %2807 = vmatmul.mubr.bf16.gmra.mrb[0].mxu0 %v1152
  %v2808 = vpop.f32.mrb[0].mxu0
  %v2809 = vadd.f32 %v1477, %v2808
  %v2810 = vpop.f32.mrb[0].mxu0
  %v2811 = vadd.f32 %v1481, %v2810
  %v2812 = vpop.f32.mrb[0].mxu0
  %v2813 = vadd.f32 %v1477, %v2812
  %v2814 = vpop.f32.mrb[0].mxu0
  %v2815 = vadd.f32 %v1481, %v2814
  %2816 = vmatprep.mubr.bf16.mxu0 %v1161
  %2817 = vmatmul.mubr.bf16.gmra.mrb[0].mxu0 %v1160
  %v2818 = vpop.f32.mrb[0].mxu0
  %v2819 = vadd.f32 %v1477, %v2818
  %v2820 = vpop.f32.mrb[0].mxu0
  %v2821 = vadd.f32 %v1481, %v2820
  %v2822 = vpop.f32.mrb[0].mxu0
  %v2823 = vadd.f32 %v1477, %v2822
  %v2824 = vpop.f32.mrb[0].mxu0
  %v2825 = vadd.f32 %v1481, %v2824
  %2826 = vmatprep.mubr.bf16.mxu0 %v1169
  %2827 = vmatmul.mubr.bf16.gmra.mrb[0].mxu0 %v1168
  %v2828 = vpop.f32.mrb[0].mxu0
  %v2829 = vadd.f32 %v1477, %v2828
  %v2830 = vpop.f32.mrb[0].mxu0
  %v2831 = vadd.f32 %v1481, %v2830
  %v2832 = vpop.f32.mrb[0].mxu0
  %v2833 = vadd.f32 %v1477, %v2832
  %v2834 = vpop.f32.mrb[0].mxu0
  %v2835 = vadd.f32 %v1481, %v2834
  %2836 = vmatprep.mubr.bf16.mxu0 %v1177
  %2837 = vmatmul.mubr.bf16.gmra.mrb[0].mxu0 %v1176
  %v2838 = vpop.f32.mrb[0].mxu0
  %v2839 = vadd.f32 %v1477, %v2838
  %v2840 = vpop.f32.mrb[0].mxu0
  %v2841 = vadd.f32 %v1481, %v2840
  %v2842 = vpop.f32.mrb[0].mxu0
  %v2843 = vadd.f32 %v1477, %v2842
  %v2844 = vpop.f32.mrb[0].mxu0
  %v2845 = vadd.f32 %v1481, %v2844
  %2846 = vmatprep.mubr.bf16.mxu0 %v1185
  %2847 = vmatmul.mubr.bf16.gmra.mrb[0].mxu0 %v1184
  %v2848 = vpop.f32.mrb[0].mxu0
  %v2849 = vadd.f32 %v1477, %v2848
  %v2850 = vpop.f32.mrb[0].mxu0
  %v2851 = vadd.f32 %v1481, %v2850
  %v2852 = vpop.f32.mrb[0].mxu0
  %v2853 = vadd.f32 %v1477, %v2852
  %v2854 = vpop.f32.mrb[0].mxu0
  %v2855 = vadd.f32 %v1481, %v2854
  %2856 = vmatprep.mubr.bf16.mxu0 %v1193
  %2857 = vmatmul.mubr.bf16.gmra.mrb[0].mxu0 %v1192
  %v2858 = vpop.f32.mrb[0].mxu0
  %v2859 = vadd.f32 %v1477, %v2858
  %v2860 = vpop.f32.mrb[0].mxu0
  %v2861 = vadd.f32 %v1481, %v2860
  %v2862 = vpop.f32.mrb[0].mxu0
  %v2863 = vadd.f32 %v1477, %v2862
  %v2864 = vpop.f32.mrb[0].mxu0
  %v2865 = vadd.f32 %v1481, %v2864
  %2866 = vmatprep.mubr.bf16.mxu0 %v1201
  %2867 = vmatmul.mubr.bf16.gmra.mrb[0].mxu0 %v1200
  %v2868 = vpop.f32.mrb[0].mxu0
  %v2869 = vadd.f32 %v1477, %v2868
  %v2870 = vpop.f32.mrb[0].mxu0
  %v2871 = vadd.f32 %v1481, %v2870
  %v2872 = vpop.f32.mrb[0].mxu0
  %v2873 = vadd.f32 %v1477, %v2872
  %v2874 = vpop.f32.mrb[0].mxu0
  %v2875 = vadd.f32 %v1481, %v2874
  %2876 = vmatprep.mubr.bf16.mxu0 %v1209
  %2877 = vmatmul.mubr.bf16.gmra.mrb[0].mxu0 %v1208
  %v2878 = vpop.f32.mrb[0].mxu0
  %v2879 = vadd.f32 %v1477, %v2878
  %v2880 = vpop.f32.mrb[0].mxu0
  %v2881 = vadd.f32 %v1481, %v2880
  %v2882 = vpop.f32.mrb[0].mxu0
  %v2883 = vadd.f32 %v1477, %v2882
  %v2884 = vpop.f32.mrb[0].mxu0
  %v2885 = vadd.f32 %v1481, %v2884
  %2886 = vdwg.mxu0
  %2887 = vmatprep.subr.bf16.mxu0 %v2327
  %2888 = vmatpush1.bf16.msra.mxu0 %v2326
  %2889 = vmatprep.subr.bf16.mxu0 %v2331
  %2890 = vmatpush1.bf16.msra.mxu0 %v2330
  %2891 = vmatprep.subr.bf16.mxu0 %v2335
  %2892 = vmatpush1.bf16.msra.mxu0 %v2334
  %2893 = vmatprep.subr.bf16.mxu0 %v2339
  %2894 = vmatpush1.bf16.msra.mxu0 %v2338
  %2895 = vmatprep.subr.bf16.mxu0 %v2343
  %2896 = vmatpush1.bf16.msra.mxu0 %v2342
  %2897 = vmatprep.subr.bf16.mxu0 %v2347
  %2898 = vmatpush1.bf16.msra.mxu0 %v2346
  %2899 = vmatprep.subr.bf16.mxu0 %v2351
  %2900 = vmatpush1.bf16.msra.mxu0 %v2350
  %2901 = vmatprep.subr.bf16.mxu0 %v2355
  %2902 = vmatpush1.bf16.msra.mxu0 %v2354
  %2903 = vmatprep.subr.bf16.mxu0 %v2359
  %2904 = vmatpush1.bf16.msra.mxu0 %v2358
  %2905 = vmatprep.subr.bf16.mxu0 %v2363
  %2906 = vmatpush1.bf16.msra.mxu0 %v2362
  %2907 = vmatprep.subr.bf16.mxu0 %v2367
  %2908 = vmatpush1.bf16.msra.mxu0 %v2366
  %2909 = vmatprep.subr.bf16.mxu0 %v2371
  %2910 = vmatpush1.bf16.msra.mxu0 %v2370
  %2911 = vmatprep.subr.bf16.mxu0 %v2375
  %2912 = vmatpush1.bf16.msra.mxu0 %v2374
  %2913 = vmatprep.subr.bf16.mxu0 %v2379
  %2914 = vmatpush1.bf16.msra.mxu0 %v2378
  %2915 = vmatprep.subr.bf16.mxu0 %v2383
  %2916 = vmatpush1.bf16.msra.mxu0 %v2382
  %2917 = vmatprep.subr.bf16.mxu0 %v2387
  %2918 = vmatpush1.bf16.msra.mxu0 %v2386
  %2919 = vmatprep.mubr.bf16.mxu0 %v1155
  %2920 = vmatmul.mubr.bf16.gmra.mrb[0].mxu0 %v1154
  %v2921 = vpop.f32.mrb[0].mxu0
  %v2922 = vadd.f32 %v2809, %v2921
  %v2923 = vpop.f32.mrb[0].mxu0
  %v2924 = vadd.f32 %v2811, %v2923
  %v2925 = vpop.f32.mrb[0].mxu0
  %v2926 = vadd.f32 %v2813, %v2925
  %v2927 = vpop.f32.mrb[0].mxu0
  %v2928 = vadd.f32 %v2815, %v2927
  %2929 = vmatprep.mubr.bf16.mxu0 %v1163
  %2930 = vmatmul.mubr.bf16.gmra.mrb[0].mxu0 %v1162
  %v2931 = vpop.f32.mrb[0].mxu0
  %v2932 = vadd.f32 %v2819, %v2931
  %v2933 = vpop.f32.mrb[0].mxu0
  %v2934 = vadd.f32 %v2821, %v2933
  %v2935 = vpop.f32.mrb[0].mxu0
  %v2936 = vadd.f32 %v2823, %v2935
  %v2937 = vpop.f32.mrb[0].mxu0
  %v2938 = vadd.f32 %v2825, %v2937
  %2939 = vmatprep.mubr.bf16.mxu0 %v1171
  %2940 = vmatmul.mubr.bf16.gmra.mrb[0].mxu0 %v1170
  %v2941 = vpop.f32.mrb[0].mxu0
  %v2942 = vadd.f32 %v2829, %v2941
  %v2943 = vpop.f32.mrb[0].mxu0
  %v2944 = vadd.f32 %v2831, %v2943
  %v2945 = vpop.f32.mrb[0].mxu0
  %v2946 = vadd.f32 %v2833, %v2945
  %v2947 = vpop.f32.mrb[0].mxu0
  %v2948 = vadd.f32 %v2835, %v2947
  %2949 = vmatprep.mubr.bf16.mxu0 %v1179
  %2950 = vmatmul.mubr.bf16.gmra.mrb[0].mxu0 %v1178
  %v2951 = vpop.f32.mrb[0].mxu0
  %v2952 = vadd.f32 %v2839, %v2951
  %v2953 = vpop.f32.mrb[0].mxu0
  %v2954 = vadd.f32 %v2841, %v2953
  %v2955 = vpop.f32.mrb[0].mxu0
  %v2956 = vadd.f32 %v2843, %v2955
  %v2957 = vpop.f32.mrb[0].mxu0
  %v2958 = vadd.f32 %v2845, %v2957
  %2959 = vmatprep.mubr.bf16.mxu0 %v1187
  %2960 = vmatmul.mubr.bf16.gmra.mrb[0].mxu0 %v1186
  %v2961 = vpop.f32.mrb[0].mxu0
  %v2962 = vadd.f32 %v2849, %v2961
  %v2963 = vpop.f32.mrb[0].mxu0
  %v2964 = vadd.f32 %v2851, %v2963
  %v2965 = vpop.f32.mrb[0].mxu0
  %v2966 = vadd.f32 %v2853, %v2965
  %v2967 = vpop.f32.mrb[0].mxu0
  %v2968 = vadd.f32 %v2855, %v2967
  %2969 = vmatprep.mubr.bf16.mxu0 %v1195
  %2970 = vmatmul.mubr.bf16.gmra.mrb[0].mxu0 %v1194
  %v2971 = vpop.f32.mrb[0].mxu0
  %v2972 = vadd.f32 %v2859, %v2971
  %v2973 = vpop.f32.mrb[0].mxu0
  %v2974 = vadd.f32 %v2861, %v2973
  %v2975 = vpop.f32.mrb[0].mxu0
  %v2976 = vadd.f32 %v2863, %v2975
  %v2977 = vpop.f32.mrb[0].mxu0
  %v2978 = vadd.f32 %v2865, %v2977
  %2979 = vmatprep.mubr.bf16.mxu0 %v1203
  %2980 = vmatmul.mubr.bf16.gmra.mrb[0].mxu0 %v1202
  %v2981 = vpop.f32.mrb[0].mxu0
  %v2982 = vadd.f32 %v2869, %v2981
  %v2983 = vpop.f32.mrb[0].mxu0
  %v2984 = vadd.f32 %v2871, %v2983
  %v2985 = vpop.f32.mrb[0].mxu0
  %v2986 = vadd.f32 %v2873, %v2985
  %v2987 = vpop.f32.mrb[0].mxu0
  %v2988 = vadd.f32 %v2875, %v2987
  %2989 = vmatprep.mubr.bf16.mxu0 %v1211
  %2990 = vmatmul.mubr.bf16.gmra.mrb[0].mxu0 %v1210
  %v2991 = vpop.f32.mrb[0].mxu0
  %v2992 = vadd.f32 %v2879, %v2991
  %v2993 = vpop.f32.mrb[0].mxu0
  %v2994 = vadd.f32 %v2881, %v2993
  %v2995 = vpop.f32.mrb[0].mxu0
  %v2996 = vadd.f32 %v2883, %v2995
  %v2997 = vpop.f32.mrb[0].mxu0
  %v2998 = vadd.f32 %v2885, %v2997
  %2999 = vdwg.mxu0
  %3000 = vmatprep.subr.bf16.mxu0 %v2391
  %3001 = vmatpush1.bf16.msra.mxu0 %v2390
  %3002 = vmatprep.subr.bf16.mxu0 %v2395
  %3003 = vmatpush1.bf16.msra.mxu0 %v2394
  %3004 = vmatprep.subr.bf16.mxu0 %v2399
  %3005 = vmatpush1.bf16.msra.mxu0 %v2398
  %3006 = vmatprep.subr.bf16.mxu0 %v2403
  %3007 = vmatpush1.bf16.msra.mxu0 %v2402
  %3008 = vmatprep.subr.bf16.mxu0 %v2407
  %3009 = vmatpush1.bf16.msra.mxu0 %v2406
  %3010 = vmatprep.subr.bf16.mxu0 %v2411
  %3011 = vmatpush1.bf16.msra.mxu0 %v2410
  %3012 = vmatprep.subr.bf16.mxu0 %v2415
  %3013 = vmatpush1.bf16.msra.mxu0 %v2414
  %3014 = vmatprep.subr.bf16.mxu0 %v2419
  %3015 = vmatpush1.bf16.msra.mxu0 %v2418
  %3016 = vmatprep.subr.bf16.mxu0 %v2423
  %3017 = vmatpush1.bf16.msra.mxu0 %v2422
  %3018 = vmatprep.subr.bf16.mxu0 %v2427
  %3019 = vmatpush1.bf16.msra.mxu0 %v2426
  %3020 = vmatprep.subr.bf16.mxu0 %v2431
  %3021 = vmatpush1.bf16.msra.mxu0 %v2430
  %3022 = vmatprep.subr.bf16.mxu0 %v2435
  %3023 = vmatpush1.bf16.msra.mxu0 %v2434
  %3024 = vmatprep.subr.bf16.mxu0 %v2439
  %3025 = vmatpush1.bf16.msra.mxu0 %v2438
  %3026 = vmatprep.subr.bf16.mxu0 %v2443
  %3027 = vmatpush1.bf16.msra.mxu0 %v2442
  %3028 = vmatprep.subr.bf16.mxu0 %v2447
  %3029 = vmatpush1.bf16.msra.mxu0 %v2446
  %3030 = vmatprep.subr.bf16.mxu0 %v2451
  %3031 = vmatpush1.bf16.msra.mxu0 %v2450
  %3032 = vmatprep.mubr.bf16.mxu0 %v1157
  %3033 = vmatmul.mubr.bf16.gmra.mrb[0].mxu0 %v1156
  %v3034 = vpop.f32.mrb[0].mxu0
  %v3035 = vadd.f32 %v2922, %v3034
  %v3036 = vpop.f32.mrb[0].mxu0
  %v3037 = vadd.f32 %v2924, %v3036
  %v3038 = vpop.f32.mrb[0].mxu0
  %v3039 = vadd.f32 %v2926, %v3038
  %v3040 = vpop.f32.mrb[0].mxu0
  %v3041 = vadd.f32 %v2928, %v3040
  %3042 = vmatprep.mubr.bf16.mxu0 %v1165
  %3043 = vmatmul.mubr.bf16.gmra.mrb[0].mxu0 %v1164
  %v3044 = vpop.f32.mrb[0].mxu0
  %v3045 = vadd.f32 %v2932, %v3044
  %v3046 = vpop.f32.mrb[0].mxu0
  %v3047 = vadd.f32 %v2934, %v3046
  %v3048 = vpop.f32.mrb[0].mxu0
  %v3049 = vadd.f32 %v2936, %v3048
  %v3050 = vpop.f32.mrb[0].mxu0
  %v3051 = vadd.f32 %v2938, %v3050
  %3052 = vmatprep.mubr.bf16.mxu0 %v1173
  %3053 = vmatmul.mubr.bf16.gmra.mrb[0].mxu0 %v1172
  %v3054 = vpop.f32.mrb[0].mxu0
  %v3055 = vadd.f32 %v2942, %v3054
  %v3056 = vpop.f32.mrb[0].mxu0
  %v3057 = vadd.f32 %v2944, %v3056
  %v3058 = vpop.f32.mrb[0].mxu0
  %v3059 = vadd.f32 %v2946, %v3058
  %v3060 = vpop.f32.mrb[0].mxu0
  %v3061 = vadd.f32 %v2948, %v3060
  %3062 = vmatprep.mubr.bf16.mxu0 %v1181
  %3063 = vmatmul.mubr.bf16.gmra.mrb[0].mxu0 %v1180
  %v3064 = vpop.f32.mrb[0].mxu0
  %v3065 = vadd.f32 %v2952, %v3064
  %v3066 = vpop.f32.mrb[0].mxu0
  %v3067 = vadd.f32 %v2954, %v3066
  %v3068 = vpop.f32.mrb[0].mxu0
  %v3069 = vadd.f32 %v2956, %v3068
  %v3070 = vpop.f32.mrb[0].mxu0
  %v3071 = vadd.f32 %v2958, %v3070
  %3072 = vmatprep.mubr.bf16.mxu0 %v1189
  %3073 = vmatmul.mubr.bf16.gmra.mrb[0].mxu0 %v1188
  %v3074 = vpop.f32.mrb[0].mxu0
  %v3075 = vadd.f32 %v2962, %v3074
  %v3076 = vpop.f32.mrb[0].mxu0
  %v3077 = vadd.f32 %v2964, %v3076
  %v3078 = vpop.f32.mrb[0].mxu0
  %v3079 = vadd.f32 %v2966, %v3078
  %v3080 = vpop.f32.mrb[0].mxu0
  %v3081 = vadd.f32 %v2968, %v3080
  %3082 = vmatprep.mubr.bf16.mxu0 %v1197
  %3083 = vmatmul.mubr.bf16.gmra.mrb[0].mxu0 %v1196
  %v3084 = vpop.f32.mrb[0].mxu0
  %v3085 = vadd.f32 %v2972, %v3084
  %v3086 = vpop.f32.mrb[0].mxu0
  %v3087 = vadd.f32 %v2974, %v3086
  %v3088 = vpop.f32.mrb[0].mxu0
  %v3089 = vadd.f32 %v2976, %v3088
  %v3090 = vpop.f32.mrb[0].mxu0
  %v3091 = vadd.f32 %v2978, %v3090
  %3092 = vmatprep.mubr.bf16.mxu0 %v1205
  %3093 = vmatmul.mubr.bf16.gmra.mrb[0].mxu0 %v1204
  %v3094 = vpop.f32.mrb[0].mxu0
  %v3095 = vadd.f32 %v2982, %v3094
  %v3096 = vpop.f32.mrb[0].mxu0
  %v3097 = vadd.f32 %v2984, %v3096
  %v3098 = vpop.f32.mrb[0].mxu0
  %v3099 = vadd.f32 %v2986, %v3098
  %v3100 = vpop.f32.mrb[0].mxu0
  %v3101 = vadd.f32 %v2988, %v3100
  %3102 = vmatprep.mubr.bf16.mxu0 %v1213
  %3103 = vmatmul.mubr.bf16.gmra.mrb[0].mxu0 %v1212
  %v3104 = vpop.f32.mrb[0].mxu0
  %v3105 = vadd.f32 %v2992, %v3104
  %v3106 = vpop.f32.mrb[0].mxu0
  %v3107 = vadd.f32 %v2994, %v3106
  %v3108 = vpop.f32.mrb[0].mxu0
  %v3109 = vadd.f32 %v2996, %v3108
  %v3110 = vpop.f32.mrb[0].mxu0
  %v3111 = vadd.f32 %v2998, %v3110
  %3112 = vdwg.mxu0
  %3113 = vmatprep.subr.bf16.mxu0 %v2455
  %3114 = vmatpush1.bf16.msra.mxu0 %v2454
  %3115 = vmatprep.subr.bf16.mxu0 %v2459
  %3116 = vmatpush1.bf16.msra.mxu0 %v2458
  %3117 = vmatprep.subr.bf16.mxu0 %v2463
  %3118 = vmatpush1.bf16.msra.mxu0 %v2462
  %3119 = vmatprep.subr.bf16.mxu0 %v2467
  %3120 = vmatpush1.bf16.msra.mxu0 %v2466
  %3121 = vmatprep.subr.bf16.mxu0 %v2471
  %3122 = vmatpush1.bf16.msra.mxu0 %v2470
  %3123 = vmatprep.subr.bf16.mxu0 %v2475
  %3124 = vmatpush1.bf16.msra.mxu0 %v2474
  %3125 = vmatprep.subr.bf16.mxu0 %v2479
  %3126 = vmatpush1.bf16.msra.mxu0 %v2478
  %3127 = vmatprep.subr.bf16.mxu0 %v2483
  %3128 = vmatpush1.bf16.msra.mxu0 %v2482
  %3129 = vmatprep.subr.bf16.mxu0 %v2487
  %3130 = vmatpush1.bf16.msra.mxu0 %v2486
  %3131 = vmatprep.subr.bf16.mxu0 %v2491
  %3132 = vmatpush1.bf16.msra.mxu0 %v2490
  %3133 = vmatprep.subr.bf16.mxu0 %v2495
  %3134 = vmatpush1.bf16.msra.mxu0 %v2494
  %3135 = vmatprep.subr.bf16.mxu0 %v2499
  %3136 = vmatpush1.bf16.msra.mxu0 %v2498
  %3137 = vmatprep.subr.bf16.mxu0 %v2503
  %3138 = vmatpush1.bf16.msra.mxu0 %v2502
  %3139 = vmatprep.subr.bf16.mxu0 %v2507
  %3140 = vmatpush1.bf16.msra.mxu0 %v2506
  %3141 = vmatprep.subr.bf16.mxu0 %v2511
  %3142 = vmatpush1.bf16.msra.mxu0 %v2510
  %3143 = vmatprep.subr.bf16.mxu0 %v2515
  %3144 = vmatpush1.bf16.msra.mxu0 %v2514
  %3145 = vmatprep.mubr.bf16.mxu0 %v1159
  %3146 = vmatmul.mubr.bf16.gmra.mrb[0].mxu0 %v1158
  %v3147 = vpop.f32.mrb[0].mxu0
  %v3148 = vadd.f32 %v3035, %v3147
  %v3149 = vpop.f32.mrb[0].mxu0
  %v3150 = vadd.f32 %v3037, %v3149
  %v3151 = vpop.f32.mrb[0].mxu0
  %v3152 = vadd.f32 %v3039, %v3151
  %v3153 = vpop.f32.mrb[0].mxu0
  %v3154 = vadd.f32 %v3041, %v3153
  %3155 = vmatprep.mubr.bf16.mxu0 %v1167
  %3156 = vmatmul.mubr.bf16.gmra.mrb[0].mxu0 %v1166
  %v3157 = vpop.f32.mrb[0].mxu0
  %v3158 = vadd.f32 %v3045, %v3157
  %v3159 = vpop.f32.mrb[0].mxu0
  %v3160 = vadd.f32 %v3047, %v3159
  %v3161 = vpop.f32.mrb[0].mxu0
  %v3162 = vadd.f32 %v3049, %v3161
  %v3163 = vpop.f32.mrb[0].mxu0
  %v3164 = vadd.f32 %v3051, %v3163
  %3165 = vmatprep.mubr.bf16.mxu0 %v1175
  %3166 = vmatmul.mubr.bf16.gmra.mrb[0].mxu0 %v1174
  %v3167 = vpop.f32.mrb[0].mxu0
  %v3168 = vadd.f32 %v3055, %v3167
  %v3169 = vpop.f32.mrb[0].mxu0
  %v3170 = vadd.f32 %v3057, %v3169
  %v3171 = vpop.f32.mrb[0].mxu0
  %v3172 = vadd.f32 %v3059, %v3171
  %v3173 = vpop.f32.mrb[0].mxu0
  %v3174 = vadd.f32 %v3061, %v3173
  %3175 = vmatprep.mubr.bf16.mxu0 %v1183
  %3176 = vmatmul.mubr.bf16.gmra.mrb[0].mxu0 %v1182
  %v3177 = vpop.f32.mrb[0].mxu0
  %v3178 = vadd.f32 %v3065, %v3177
  %v3179 = vpop.f32.mrb[0].mxu0
  %v3180 = vadd.f32 %v3067, %v3179
  %v3181 = vpop.f32.mrb[0].mxu0
  %v3182 = vadd.f32 %v3069, %v3181
  %v3183 = vpop.f32.mrb[0].mxu0
  %v3184 = vadd.f32 %v3071, %v3183
  %3185 = vmatprep.mubr.bf16.mxu0 %v1191
  %3186 = vmatmul.mubr.bf16.gmra.mrb[0].mxu0 %v1190
  %v3187 = vpop.f32.mrb[0].mxu0
  %v3188 = vadd.f32 %v3075, %v3187
  %v3189 = vpop.f32.mrb[0].mxu0
  %v3190 = vadd.f32 %v3077, %v3189
  %v3191 = vpop.f32.mrb[0].mxu0
  %v3192 = vadd.f32 %v3079, %v3191
  %v3193 = vpop.f32.mrb[0].mxu0
  %v3194 = vadd.f32 %v3081, %v3193
  %3195 = vmatprep.mubr.bf16.mxu0 %v1199
  %3196 = vmatmul.mubr.bf16.gmra.mrb[0].mxu0 %v1198
  %v3197 = vpop.f32.mrb[0].mxu0
  %v3198 = vadd.f32 %v3085, %v3197
  %v3199 = vpop.f32.mrb[0].mxu0
  %v3200 = vadd.f32 %v3087, %v3199
  %v3201 = vpop.f32.mrb[0].mxu0
  %v3202 = vadd.f32 %v3089, %v3201
  %v3203 = vpop.f32.mrb[0].mxu0
  %v3204 = vadd.f32 %v3091, %v3203
  %3205 = vmatprep.mubr.bf16.mxu0 %v1207
  %3206 = vmatmul.mubr.bf16.gmra.mrb[0].mxu0 %v1206
  %v3207 = vpop.f32.mrb[0].mxu0
  %v3208 = vadd.f32 %v3095, %v3207
  %v3209 = vpop.f32.mrb[0].mxu0
  %v3210 = vadd.f32 %v3097, %v3209
  %v3211 = vpop.f32.mrb[0].mxu0
  %v3212 = vadd.f32 %v3099, %v3211
  %v3213 = vpop.f32.mrb[0].mxu0
  %v3214 = vadd.f32 %v3101, %v3213
  %3215 = vmatprep.mubr.bf16.mxu0 %v1215
  %3216 = vmatmul.mubr.bf16.gmra.mrb[0].mxu0 %v1214
  %v3217 = vpop.f32.mrb[0].mxu0
  %v3218 = vadd.f32 %v3105, %v3217
  %v3219 = vpop.f32.mrb[0].mxu0
  %v3220 = vadd.f32 %v3107, %v3219
  %v3221 = vpop.f32.mrb[0].mxu0
  %v3222 = vadd.f32 %v3109, %v3221
  %v3223 = vpop.f32.mrb[0].mxu0
  %v3224 = vadd.f32 %v3111, %v3223
  %3225 = vdwg.mxu0
  %3226 = vmatprep.subr.bf16.mxu0 %v2265
  %3227 = vmatpush1.bf16.msra.mxu0 %v2264
  %3228 = vmatprep.subr.bf16.mxu0 %v2269
  %3229 = vmatpush1.bf16.msra.mxu0 %v2268
  %3230 = vmatprep.subr.bf16.mxu0 %v2273
  %3231 = vmatpush1.bf16.msra.mxu0 %v2272
  %3232 = vmatprep.subr.bf16.mxu0 %v2277
  %3233 = vmatpush1.bf16.msra.mxu0 %v2276
  %3234 = vmatprep.subr.bf16.mxu0 %v2281
  %3235 = vmatpush1.bf16.msra.mxu0 %v2280
  %3236 = vmatprep.subr.bf16.mxu0 %v2285
  %3237 = vmatpush1.bf16.msra.mxu0 %v2284
  %3238 = vmatprep.subr.bf16.mxu0 %v2289
  %3239 = vmatpush1.bf16.msra.mxu0 %v2288
  %3240 = vmatprep.subr.bf16.mxu0 %v2293
  %3241 = vmatpush1.bf16.msra.mxu0 %v2292
  %3242 = vmatprep.subr.bf16.mxu0 %v2297
  %3243 = vmatpush1.bf16.msra.mxu0 %v2296
  %3244 = vmatprep.subr.bf16.mxu0 %v2301
  %3245 = vmatpush1.bf16.msra.mxu0 %v2300
  %3246 = vmatprep.subr.bf16.mxu0 %v2305
  %3247 = vmatpush1.bf16.msra.mxu0 %v2304
  %3248 = vmatprep.subr.bf16.mxu0 %v2309
  %3249 = vmatpush1.bf16.msra.mxu0 %v2308
  %3250 = vmatprep.subr.bf16.mxu0 %v2313
  %3251 = vmatpush1.bf16.msra.mxu0 %v2312
  %3252 = vmatprep.subr.bf16.mxu0 %v2317
  %3253 = vmatpush1.bf16.msra.mxu0 %v2316
  %3254 = vmatprep.subr.bf16.mxu0 %v2321
  %3255 = vmatpush1.bf16.msra.mxu0 %v2320
  %3256 = vmatprep.subr.bf16.mxu0 %v2325
  %3257 = vmatpush1.bf16.msra.mxu0 %v2324
  %3258 = vmatprep.mubr.bf16.mxu0 %v1153
  %3259 = vmatmul.mubr.bf16.gmra.mrb[0].mxu0 %v1152
  %v3260 = vpop.f32.mrb[0].mxu0
  %v3261 = vadd.f32 %v1485, %v3260
  %v3262 = vpop.f32.mrb[0].mxu0
  %v3263 = vadd.f32 %v1489, %v3262
  %v3264 = vpop.f32.mrb[0].mxu0
  %v3265 = vadd.f32 %v1485, %v3264
  %v3266 = vpop.f32.mrb[0].mxu0
  %v3267 = vadd.f32 %v1489, %v3266
  %3268 = vmatprep.mubr.bf16.mxu0 %v1161
  %3269 = vmatmul.mubr.bf16.gmra.mrb[0].mxu0 %v1160
  %v3270 = vpop.f32.mrb[0].mxu0
  %v3271 = vadd.f32 %v1485, %v3270
  %v3272 = vpop.f32.mrb[0].mxu0
  %v3273 = vadd.f32 %v1489, %v3272
  %v3274 = vpop.f32.mrb[0].mxu0
  %v3275 = vadd.f32 %v1485, %v3274
  %v3276 = vpop.f32.mrb[0].mxu0
  %v3277 = vadd.f32 %v1489, %v3276
  %3278 = vmatprep.mubr.bf16.mxu0 %v1169
  %3279 = vmatmul.mubr.bf16.gmra.mrb[0].mxu0 %v1168
  %v3280 = vpop.f32.mrb[0].mxu0
  %v3281 = vadd.f32 %v1485, %v3280
  %v3282 = vpop.f32.mrb[0].mxu0
  %v3283 = vadd.f32 %v1489, %v3282
  %v3284 = vpop.f32.mrb[0].mxu0
  %v3285 = vadd.f32 %v1485, %v3284
  %v3286 = vpop.f32.mrb[0].mxu0
  %v3287 = vadd.f32 %v1489, %v3286
  %3288 = vmatprep.mubr.bf16.mxu0 %v1177
  %3289 = vmatmul.mubr.bf16.gmra.mrb[0].mxu0 %v1176
  %v3290 = vpop.f32.mrb[0].mxu0
  %v3291 = vadd.f32 %v1485, %v3290
  %v3292 = vpop.f32.mrb[0].mxu0
  %v3293 = vadd.f32 %v1489, %v3292
  %v3294 = vpop.f32.mrb[0].mxu0
  %v3295 = vadd.f32 %v1485, %v3294
  %v3296 = vpop.f32.mrb[0].mxu0
  %v3297 = vadd.f32 %v1489, %v3296
  %3298 = vmatprep.mubr.bf16.mxu0 %v1185
  %3299 = vmatmul.mubr.bf16.gmra.mrb[0].mxu0 %v1184
  %v3300 = vpop.f32.mrb[0].mxu0
  %v3301 = vadd.f32 %v1485, %v3300
  %v3302 = vpop.f32.mrb[0].mxu0
  %v3303 = vadd.f32 %v1489, %v3302
  %v3304 = vpop.f32.mrb[0].mxu0
  %v3305 = vadd.f32 %v1485, %v3304
  %v3306 = vpop.f32.mrb[0].mxu0
  %v3307 = vadd.f32 %v1489, %v3306
  %3308 = vmatprep.mubr.bf16.mxu0 %v1193
  %3309 = vmatmul.mubr.bf16.gmra.mrb[0].mxu0 %v1192
  %v3310 = vpop.f32.mrb[0].mxu0
  %v3311 = vadd.f32 %v1485, %v3310
  %v3312 = vpop.f32.mrb[0].mxu0
  %v3313 = vadd.f32 %v1489, %v3312
  %v3314 = vpop.f32.mrb[0].mxu0
  %v3315 = vadd.f32 %v1485, %v3314
  %v3316 = vpop.f32.mrb[0].mxu0
  %v3317 = vadd.f32 %v1489, %v3316
  %3318 = vmatprep.mubr.bf16.mxu0 %v1201
  %3319 = vmatmul.mubr.bf16.gmra.mrb[0].mxu0 %v1200
  %v3320 = vpop.f32.mrb[0].mxu0
  %v3321 = vadd.f32 %v1485, %v3320
  %v3322 = vpop.f32.mrb[0].mxu0
  %v3323 = vadd.f32 %v1489, %v3322
  %v3324 = vpop.f32.mrb[0].mxu0
  %v3325 = vadd.f32 %v1485, %v3324
  %v3326 = vpop.f32.mrb[0].mxu0
  %v3327 = vadd.f32 %v1489, %v3326
  %3328 = vmatprep.mubr.bf16.mxu0 %v1209
  %3329 = vmatmul.mubr.bf16.gmra.mrb[0].mxu0 %v1208
  %v3330 = vpop.f32.mrb[0].mxu0
  %v3331 = vadd.f32 %v1485, %v3330
  %v3332 = vpop.f32.mrb[0].mxu0
  %v3333 = vadd.f32 %v1489, %v3332
  %v3334 = vpop.f32.mrb[0].mxu0
  %v3335 = vadd.f32 %v1485, %v3334
  %v3336 = vpop.f32.mrb[0].mxu0
  %v3337 = vadd.f32 %v1489, %v3336
  %3338 = vdwg.mxu0
  %3339 = vmatprep.subr.bf16.mxu0 %v2329
  %3340 = vmatpush1.bf16.msra.mxu0 %v2328
  %3341 = vmatprep.subr.bf16.mxu0 %v2333
  %3342 = vmatpush1.bf16.msra.mxu0 %v2332
  %3343 = vmatprep.subr.bf16.mxu0 %v2337
  %3344 = vmatpush1.bf16.msra.mxu0 %v2336
  %3345 = vmatprep.subr.bf16.mxu0 %v2341
  %3346 = vmatpush1.bf16.msra.mxu0 %v2340
  %3347 = vmatprep.subr.bf16.mxu0 %v2345
  %3348 = vmatpush1.bf16.msra.mxu0 %v2344
  %3349 = vmatprep.subr.bf16.mxu0 %v2349
  %3350 = vmatpush1.bf16.msra.mxu0 %v2348
  %3351 = vmatprep.subr.bf16.mxu0 %v2353
  %3352 = vmatpush1.bf16.msra.mxu0 %v2352
  %3353 = vmatprep.subr.bf16.mxu0 %v2357
  %3354 = vmatpush1.bf16.msra.mxu0 %v2356
  %3355 = vmatprep.subr.bf16.mxu0 %v2361
  %3356 = vmatpush1.bf16.msra.mxu0 %v2360
  %3357 = vmatprep.subr.bf16.mxu0 %v2365
  %3358 = vmatpush1.bf16.msra.mxu0 %v2364
  %3359 = vmatprep.subr.bf16.mxu0 %v2369
  %3360 = vmatpush1.bf16.msra.mxu0 %v2368
  %3361 = vmatprep.subr.bf16.mxu0 %v2373
  %3362 = vmatpush1.bf16.msra.mxu0 %v2372
  %3363 = vmatprep.subr.bf16.mxu0 %v2377
  %3364 = vmatpush1.bf16.msra.mxu0 %v2376
  %3365 = vmatprep.subr.bf16.mxu0 %v2381
  %3366 = vmatpush1.bf16.msra.mxu0 %v2380
  %3367 = vmatprep.subr.bf16.mxu0 %v2385
  %3368 = vmatpush1.bf16.msra.mxu0 %v2384
  %3369 = vmatprep.subr.bf16.mxu0 %v2389
  %3370 = vmatpush1.bf16.msra.mxu0 %v2388
  %3371 = vmatprep.mubr.bf16.mxu0 %v1155
  %3372 = vmatmul.mubr.bf16.gmra.mrb[0].mxu0 %v1154
  %v3373 = vpop.f32.mrb[0].mxu0
  %v3374 = vadd.f32 %v3261, %v3373
  %v3375 = vpop.f32.mrb[0].mxu0
  %v3376 = vadd.f32 %v3263, %v3375
  %v3377 = vpop.f32.mrb[0].mxu0
  %v3378 = vadd.f32 %v3265, %v3377
  %v3379 = vpop.f32.mrb[0].mxu0
  %v3380 = vadd.f32 %v3267, %v3379
  %3381 = vmatprep.mubr.bf16.mxu0 %v1163
  %3382 = vmatmul.mubr.bf16.gmra.mrb[0].mxu0 %v1162
  %v3383 = vpop.f32.mrb[0].mxu0
  %v3384 = vadd.f32 %v3271, %v3383
  %v3385 = vpop.f32.mrb[0].mxu0
  %v3386 = vadd.f32 %v3273, %v3385
  %v3387 = vpop.f32.mrb[0].mxu0
  %v3388 = vadd.f32 %v3275, %v3387
  %v3389 = vpop.f32.mrb[0].mxu0
  %v3390 = vadd.f32 %v3277, %v3389
  %3391 = vmatprep.mubr.bf16.mxu0 %v1171
  %3392 = vmatmul.mubr.bf16.gmra.mrb[0].mxu0 %v1170
  %v3393 = vpop.f32.mrb[0].mxu0
  %v3394 = vadd.f32 %v3281, %v3393
  %v3395 = vpop.f32.mrb[0].mxu0
  %v3396 = vadd.f32 %v3283, %v3395
  %v3397 = vpop.f32.mrb[0].mxu0
  %v3398 = vadd.f32 %v3285, %v3397
  %v3399 = vpop.f32.mrb[0].mxu0
  %v3400 = vadd.f32 %v3287, %v3399
  %3401 = vmatprep.mubr.bf16.mxu0 %v1179
  %3402 = vmatmul.mubr.bf16.gmra.mrb[0].mxu0 %v1178
  %v3403 = vpop.f32.mrb[0].mxu0
  %v3404 = vadd.f32 %v3291, %v3403
  %v3405 = vpop.f32.mrb[0].mxu0
  %v3406 = vadd.f32 %v3293, %v3405
  %v3407 = vpop.f32.mrb[0].mxu0
  %v3408 = vadd.f32 %v3295, %v3407
  %v3409 = vpop.f32.mrb[0].mxu0
  %v3410 = vadd.f32 %v3297, %v3409
  %3411 = vmatprep.mubr.bf16.mxu0 %v1187
  %3412 = vmatmul.mubr.bf16.gmra.mrb[0].mxu0 %v1186
  %v3413 = vpop.f32.mrb[0].mxu0
  %v3414 = vadd.f32 %v3301, %v3413
  %v3415 = vpop.f32.mrb[0].mxu0
  %v3416 = vadd.f32 %v3303, %v3415
  %v3417 = vpop.f32.mrb[0].mxu0
  %v3418 = vadd.f32 %v3305, %v3417
  %v3419 = vpop.f32.mrb[0].mxu0
  %v3420 = vadd.f32 %v3307, %v3419
  %3421 = vmatprep.mubr.bf16.mxu0 %v1195
  %3422 = vmatmul.mubr.bf16.gmra.mrb[0].mxu0 %v1194
  %v3423 = vpop.f32.mrb[0].mxu0
  %v3424 = vadd.f32 %v3311, %v3423
  %v3425 = vpop.f32.mrb[0].mxu0
  %v3426 = vadd.f32 %v3313, %v3425
  %v3427 = vpop.f32.mrb[0].mxu0
  %v3428 = vadd.f32 %v3315, %v3427
  %v3429 = vpop.f32.mrb[0].mxu0
  %v3430 = vadd.f32 %v3317, %v3429
  %3431 = vmatprep.mubr.bf16.mxu0 %v1203
  %3432 = vmatmul.mubr.bf16.gmra.mrb[0].mxu0 %v1202
  %v3433 = vpop.f32.mrb[0].mxu0
  %v3434 = vadd.f32 %v3321, %v3433
  %v3435 = vpop.f32.mrb[0].mxu0
  %v3436 = vadd.f32 %v3323, %v3435
  %v3437 = vpop.f32.mrb[0].mxu0
  %v3438 = vadd.f32 %v3325, %v3437
  %v3439 = vpop.f32.mrb[0].mxu0
  %v3440 = vadd.f32 %v3327, %v3439
  %3441 = vmatprep.mubr.bf16.mxu0 %v1211
  %3442 = vmatmul.mubr.bf16.gmra.mrb[0].mxu0 %v1210
  %v3443 = vpop.f32.mrb[0].mxu0
  %v3444 = vadd.f32 %v3331, %v3443
  %v3445 = vpop.f32.mrb[0].mxu0
  %v3446 = vadd.f32 %v3333, %v3445
  %v3447 = vpop.f32.mrb[0].mxu0
  %v3448 = vadd.f32 %v3335, %v3447
  %v3449 = vpop.f32.mrb[0].mxu0
  %v3450 = vadd.f32 %v3337, %v3449
  %3451 = vdwg.mxu0
  %3452 = vmatprep.subr.bf16.mxu0 %v2393
  %3453 = vmatpush1.bf16.msra.mxu0 %v2392
  %3454 = vmatprep.subr.bf16.mxu0 %v2397
  %3455 = vmatpush1.bf16.msra.mxu0 %v2396
  %3456 = vmatprep.subr.bf16.mxu0 %v2401
  %3457 = vmatpush1.bf16.msra.mxu0 %v2400
  %3458 = vmatprep.subr.bf16.mxu0 %v2405
  %3459 = vmatpush1.bf16.msra.mxu0 %v2404
  %3460 = vmatprep.subr.bf16.mxu0 %v2409
  %3461 = vmatpush1.bf16.msra.mxu0 %v2408
  %3462 = vmatprep.subr.bf16.mxu0 %v2413
  %3463 = vmatpush1.bf16.msra.mxu0 %v2412
  %3464 = vmatprep.subr.bf16.mxu0 %v2417
  %3465 = vmatpush1.bf16.msra.mxu0 %v2416
  %3466 = vmatprep.subr.bf16.mxu0 %v2421
  %3467 = vmatpush1.bf16.msra.mxu0 %v2420
  %3468 = vmatprep.subr.bf16.mxu0 %v2425
  %3469 = vmatpush1.bf16.msra.mxu0 %v2424
  %3470 = vmatprep.subr.bf16.mxu0 %v2429
  %3471 = vmatpush1.bf16.msra.mxu0 %v2428
  %3472 = vmatprep.subr.bf16.mxu0 %v2433
  %3473 = vmatpush1.bf16.msra.mxu0 %v2432
  %3474 = vmatprep.subr.bf16.mxu0 %v2437
  %3475 = vmatpush1.bf16.msra.mxu0 %v2436
  %3476 = vmatprep.subr.bf16.mxu0 %v2441
  %3477 = vmatpush1.bf16.msra.mxu0 %v2440
  %3478 = vmatprep.subr.bf16.mxu0 %v2445
  %3479 = vmatpush1.bf16.msra.mxu0 %v2444
  %3480 = vmatprep.subr.bf16.mxu0 %v2449
  %3481 = vmatpush1.bf16.msra.mxu0 %v2448
  %3482 = vmatprep.subr.bf16.mxu0 %v2453
  %3483 = vmatpush1.bf16.msra.mxu0 %v2452
  %3484 = vmatprep.mubr.bf16.mxu0 %v1157
  %3485 = vmatmul.mubr.bf16.gmra.mrb[0].mxu0 %v1156
  %v3486 = vpop.f32.mrb[0].mxu0
  %v3487 = vadd.f32 %v3374, %v3486
  %v3488 = vpop.f32.mrb[0].mxu0
  %v3489 = vadd.f32 %v3376, %v3488
  %v3490 = vpop.f32.mrb[0].mxu0
  %v3491 = vadd.f32 %v3378, %v3490
  %v3492 = vpop.f32.mrb[0].mxu0
  %v3493 = vadd.f32 %v3380, %v3492
  %3494 = vmatprep.mubr.bf16.mxu0 %v1165
  %3495 = vmatmul.mubr.bf16.gmra.mrb[0].mxu0 %v1164
  %v3496 = vpop.f32.mrb[0].mxu0
  %v3497 = vadd.f32 %v3384, %v3496
  %v3498 = vpop.f32.mrb[0].mxu0
  %v3499 = vadd.f32 %v3386, %v3498
  %v3500 = vpop.f32.mrb[0].mxu0
  %v3501 = vadd.f32 %v3388, %v3500
  %v3502 = vpop.f32.mrb[0].mxu0
  %v3503 = vadd.f32 %v3390, %v3502
  %3504 = vmatprep.mubr.bf16.mxu0 %v1173
  %3505 = vmatmul.mubr.bf16.gmra.mrb[0].mxu0 %v1172
  %v3506 = vpop.f32.mrb[0].mxu0
  %v3507 = vadd.f32 %v3394, %v3506
  %v3508 = vpop.f32.mrb[0].mxu0
  %v3509 = vadd.f32 %v3396, %v3508
  %v3510 = vpop.f32.mrb[0].mxu0
  %v3511 = vadd.f32 %v3398, %v3510
  %v3512 = vpop.f32.mrb[0].mxu0
  %v3513 = vadd.f32 %v3400, %v3512
  %3514 = vmatprep.mubr.bf16.mxu0 %v1181
  %3515 = vmatmul.mubr.bf16.gmra.mrb[0].mxu0 %v1180
  %v3516 = vpop.f32.mrb[0].mxu0
  %v3517 = vadd.f32 %v3404, %v3516
  %v3518 = vpop.f32.mrb[0].mxu0
  %v3519 = vadd.f32 %v3406, %v3518
  %v3520 = vpop.f32.mrb[0].mxu0
  %v3521 = vadd.f32 %v3408, %v3520
  %v3522 = vpop.f32.mrb[0].mxu0
  %v3523 = vadd.f32 %v3410, %v3522
  %3524 = vmatprep.mubr.bf16.mxu0 %v1189
  %3525 = vmatmul.mubr.bf16.gmra.mrb[0].mxu0 %v1188
  %v3526 = vpop.f32.mrb[0].mxu0
  %v3527 = vadd.f32 %v3414, %v3526
  %v3528 = vpop.f32.mrb[0].mxu0
  %v3529 = vadd.f32 %v3416, %v3528
  %v3530 = vpop.f32.mrb[0].mxu0
  %v3531 = vadd.f32 %v3418, %v3530
  %v3532 = vpop.f32.mrb[0].mxu0
  %v3533 = vadd.f32 %v3420, %v3532
  %3534 = vmatprep.mubr.bf16.mxu0 %v1197
  %3535 = vmatmul.mubr.bf16.gmra.mrb[0].mxu0 %v1196
  %v3536 = vpop.f32.mrb[0].mxu0
  %v3537 = vadd.f32 %v3424, %v3536
  %v3538 = vpop.f32.mrb[0].mxu0
  %v3539 = vadd.f32 %v3426, %v3538
  %v3540 = vpop.f32.mrb[0].mxu0
  %v3541 = vadd.f32 %v3428, %v3540
  %v3542 = vpop.f32.mrb[0].mxu0
  %v3543 = vadd.f32 %v3430, %v3542
  %3544 = vmatprep.mubr.bf16.mxu0 %v1205
  %3545 = vmatmul.mubr.bf16.gmra.mrb[0].mxu0 %v1204
  %v3546 = vpop.f32.mrb[0].mxu0
  %v3547 = vadd.f32 %v3434, %v3546
  %v3548 = vpop.f32.mrb[0].mxu0
  %v3549 = vadd.f32 %v3436, %v3548
  %v3550 = vpop.f32.mrb[0].mxu0
  %v3551 = vadd.f32 %v3438, %v3550
  %v3552 = vpop.f32.mrb[0].mxu0
  %v3553 = vadd.f32 %v3440, %v3552
  %3554 = vmatprep.mubr.bf16.mxu0 %v1213
  %3555 = vmatmul.mubr.bf16.gmra.mrb[0].mxu0 %v1212
  %v3556 = vpop.f32.mrb[0].mxu0
  %v3557 = vadd.f32 %v3444, %v3556
  %v3558 = vpop.f32.mrb[0].mxu0
  %v3559 = vadd.f32 %v3446, %v3558
  %v3560 = vpop.f32.mrb[0].mxu0
  %v3561 = vadd.f32 %v3448, %v3560
  %v3562 = vpop.f32.mrb[0].mxu0
  %v3563 = vadd.f32 %v3450, %v3562
  %3564 = vdwg.mxu0
  %3565 = vmatprep.subr.bf16.mxu0 %v2457
  %3566 = vmatpush1.bf16.msra.mxu0 %v2456
  %3567 = vmatprep.subr.bf16.mxu0 %v2461
  %3568 = vmatpush1.bf16.msra.mxu0 %v2460
  %3569 = vmatprep.subr.bf16.mxu0 %v2465
  %3570 = vmatpush1.bf16.msra.mxu0 %v2464
  %3571 = vmatprep.subr.bf16.mxu0 %v2469
  %3572 = vmatpush1.bf16.msra.mxu0 %v2468
  %3573 = vmatprep.subr.bf16.mxu0 %v2473
  %3574 = vmatpush1.bf16.msra.mxu0 %v2472
  %3575 = vmatprep.subr.bf16.mxu0 %v2477
  %3576 = vmatpush1.bf16.msra.mxu0 %v2476
  %3577 = vmatprep.subr.bf16.mxu0 %v2481
  %3578 = vmatpush1.bf16.msra.mxu0 %v2480
  %3579 = vmatprep.subr.bf16.mxu0 %v2485
  %3580 = vmatpush1.bf16.msra.mxu0 %v2484
  %3581 = vmatprep.subr.bf16.mxu0 %v2489
  %3582 = vmatpush1.bf16.msra.mxu0 %v2488
  %3583 = vmatprep.subr.bf16.mxu0 %v2493
  %3584 = vmatpush1.bf16.msra.mxu0 %v2492
  %3585 = vmatprep.subr.bf16.mxu0 %v2497
  %3586 = vmatpush1.bf16.msra.mxu0 %v2496
  %3587 = vmatprep.subr.bf16.mxu0 %v2501
  %3588 = vmatpush1.bf16.msra.mxu0 %v2500
  %3589 = vmatprep.subr.bf16.mxu0 %v2505
  %3590 = vmatpush1.bf16.msra.mxu0 %v2504
  %3591 = vmatprep.subr.bf16.mxu0 %v2509
  %3592 = vmatpush1.bf16.msra.mxu0 %v2508
  %3593 = vmatprep.subr.bf16.mxu0 %v2513
  %3594 = vmatpush1.bf16.msra.mxu0 %v2512
  %3595 = vmatprep.subr.bf16.mxu0 %v2517
  %3596 = vmatpush1.bf16.msra.mxu0 %v2516
  %3597 = vmatprep.mubr.bf16.mxu0 %v1159
  %3598 = vmatmul.mubr.bf16.gmra.mrb[0].mxu0 %v1158
  %v3599 = vpop.f32.mrb[0].mxu0
  %v3600 = vadd.f32 %v3487, %v3599
  %v3601 = vpop.f32.mrb[0].mxu0
  %v3602 = vadd.f32 %v3489, %v3601
  %v3603 = vpop.f32.mrb[0].mxu0
  %v3604 = vadd.f32 %v3491, %v3603
  %v3605 = vpop.f32.mrb[0].mxu0
  %v3606 = vadd.f32 %v3493, %v3605
  %3607 = vmatprep.mubr.bf16.mxu0 %v1167
  %3608 = vmatmul.mubr.bf16.gmra.mrb[0].mxu0 %v1166
  %v3609 = vpop.f32.mrb[0].mxu0
  %v3610 = vadd.f32 %v3497, %v3609
  %v3611 = vpop.f32.mrb[0].mxu0
  %v3612 = vadd.f32 %v3499, %v3611
  %v3613 = vpop.f32.mrb[0].mxu0
  %v3614 = vadd.f32 %v3501, %v3613
  %v3615 = vpop.f32.mrb[0].mxu0
  %v3616 = vadd.f32 %v3503, %v3615
  %3617 = vmatprep.mubr.bf16.mxu0 %v1175
  %3618 = vmatmul.mubr.bf16.gmra.mrb[0].mxu0 %v1174
  %v3619 = vpop.f32.mrb[0].mxu0
  %v3620 = vadd.f32 %v3507, %v3619
  %v3621 = vpop.f32.mrb[0].mxu0
  %v3622 = vadd.f32 %v3509, %v3621
  %v3623 = vpop.f32.mrb[0].mxu0
  %v3624 = vadd.f32 %v3511, %v3623
  %v3625 = vpop.f32.mrb[0].mxu0
  %v3626 = vadd.f32 %v3513, %v3625
  %3627 = vmatprep.mubr.bf16.mxu0 %v1183
  %3628 = vmatmul.mubr.bf16.gmra.mrb[0].mxu0 %v1182
  %v3629 = vpop.f32.mrb[0].mxu0
  %v3630 = vadd.f32 %v3517, %v3629
  %v3631 = vpop.f32.mrb[0].mxu0
  %v3632 = vadd.f32 %v3519, %v3631
  %v3633 = vpop.f32.mrb[0].mxu0
  %v3634 = vadd.f32 %v3521, %v3633
  %v3635 = vpop.f32.mrb[0].mxu0
  %v3636 = vadd.f32 %v3523, %v3635
  %3637 = vmatprep.mubr.bf16.mxu0 %v1191
  %3638 = vmatmul.mubr.bf16.gmra.mrb[0].mxu0 %v1190
  %v3639 = vpop.f32.mrb[0].mxu0
  %v3640 = vadd.f32 %v3527, %v3639
  %v3641 = vpop.f32.mrb[0].mxu0
  %v3642 = vadd.f32 %v3529, %v3641
  %v3643 = vpop.f32.mrb[0].mxu0
  %v3644 = vadd.f32 %v3531, %v3643
  %v3645 = vpop.f32.mrb[0].mxu0
  %v3646 = vadd.f32 %v3533, %v3645
  %3647 = vmatprep.mubr.bf16.mxu0 %v1199
  %3648 = vmatmul.mubr.bf16.gmra.mrb[0].mxu0 %v1198
  %v3649 = vpop.f32.mrb[0].mxu0
  %v3650 = vadd.f32 %v3537, %v3649
  %v3651 = vpop.f32.mrb[0].mxu0
  %v3652 = vadd.f32 %v3539, %v3651
  %v3653 = vpop.f32.mrb[0].mxu0
  %v3654 = vadd.f32 %v3541, %v3653
  %v3655 = vpop.f32.mrb[0].mxu0
  %v3656 = vadd.f32 %v3543, %v3655
  %3657 = vmatprep.mubr.bf16.mxu0 %v1207
  %3658 = vmatmul.mubr.bf16.gmra.mrb[0].mxu0 %v1206
  %v3659 = vpop.f32.mrb[0].mxu0
  %v3660 = vadd.f32 %v3547, %v3659
  %v3661 = vpop.f32.mrb[0].mxu0
  %v3662 = vadd.f32 %v3549, %v3661
  %v3663 = vpop.f32.mrb[0].mxu0
  %v3664 = vadd.f32 %v3551, %v3663
  %v3665 = vpop.f32.mrb[0].mxu0
  %v3666 = vadd.f32 %v3553, %v3665
  %3667 = vmatprep.mubr.bf16.mxu0 %v1215
  %3668 = vmatmul.mubr.bf16.gmra.mrb[0].mxu0 %v1214
  %v3669 = vpop.f32.mrb[0].mxu0
  %v3670 = vadd.f32 %v3557, %v3669
  %v3671 = vpop.f32.mrb[0].mxu0
  %v3672 = vadd.f32 %v3559, %v3671
  %v3673 = vpop.f32.mrb[0].mxu0
  %v3674 = vadd.f32 %v3561, %v3673
  %v3675 = vpop.f32.mrb[0].mxu0
  %v3676 = vadd.f32 %v3563, %v3675
  %3677 = vdwg.mxu0
  %vm3678 = vcmp.gt.f32.partialorder %v3148, 0.0
  %vm3679 = vcmp.gt.f32.partialorder %v3150, 0.0
  %vm3680 = vcmp.gt.f32.partialorder %v3600, 0.0
  %vm3681 = vcmp.gt.f32.partialorder %v3602, 0.0
  %vm3682 = vcmp.gt.f32.partialorder %v3152, 0.0
  %vm3683 = vcmp.gt.f32.partialorder %v3154, 0.0
  %vm3684 = vcmp.gt.f32.partialorder %v3604, 0.0
  %vm3685 = vcmp.gt.f32.partialorder %v3606, 0.0
  %vm3686 = vcmp.gt.f32.partialorder %v3158, 0.0
  %vm3687 = vcmp.gt.f32.partialorder %v3160, 0.0
  %vm3688 = vcmp.gt.f32.partialorder %v3610, 0.0
  %vm3689 = vcmp.gt.f32.partialorder %v3612, 0.0
  %vm3690 = vcmp.gt.f32.partialorder %v3162, 0.0
  %vm3691 = vcmp.gt.f32.partialorder %v3164, 0.0
  %vm3692 = vcmp.gt.f32.partialorder %v3614, 0.0
  %vm3693 = vcmp.gt.f32.partialorder %v3616, 0.0
  %vm3694 = vcmp.gt.f32.partialorder %v3168, 0.0
  %vm3695 = vcmp.gt.f32.partialorder %v3170, 0.0
  %vm3696 = vcmp.gt.f32.partialorder %v3620, 0.0
  %vm3697 = vcmp.gt.f32.partialorder %v3622, 0.0
  %vm3698 = vcmp.gt.f32.partialorder %v3172, 0.0
  %vm3699 = vcmp.gt.f32.partialorder %v3174, 0.0
  %vm3700 = vcmp.gt.f32.partialorder %v3624, 0.0
  %vm3701 = vcmp.gt.f32.partialorder %v3626, 0.0
  %vm3702 = vcmp.gt.f32.partialorder %v3178, 0.0
  %vm3703 = vcmp.gt.f32.partialorder %v3180, 0.0
  %vm3704 = vcmp.gt.f32.partialorder %v3630, 0.0
  %vm3705 = vcmp.gt.f32.partialorder %v3632, 0.0
  %vm3706 = vcmp.gt.f32.partialorder %v3182, 0.0
  %vm3707 = vcmp.gt.f32.partialorder %v3184, 0.0
  %vm3708 = vcmp.gt.f32.partialorder %v3634, 0.0
  %vm3709 = vcmp.gt.f32.partialorder %v3636, 0.0
  %vm3710 = vcmp.gt.f32.partialorder %v3188, 0.0
  %vm3711 = vcmp.gt.f32.partialorder %v3190, 0.0
  %vm3712 = vcmp.gt.f32.partialorder %v3640, 0.0
  %vm3713 = vcmp.gt.f32.partialorder %v3642, 0.0
  %vm3714 = vcmp.gt.f32.partialorder %v3192, 0.0
  %vm3715 = vcmp.gt.f32.partialorder %v3194, 0.0
  %vm3716 = vcmp.gt.f32.partialorder %v3644, 0.0
  %vm3717 = vcmp.gt.f32.partialorder %v3646, 0.0
  %vm3718 = vcmp.gt.f32.partialorder %v3198, 0.0
  %vm3719 = vcmp.gt.f32.partialorder %v3200, 0.0
  %vm3720 = vcmp.gt.f32.partialorder %v3650, 0.0
  %vm3721 = vcmp.gt.f32.partialorder %v3652, 0.0
  %vm3722 = vcmp.gt.f32.partialorder %v3202, 0.0
  %vm3723 = vcmp.gt.f32.partialorder %v3204, 0.0
  %vm3724 = vcmp.gt.f32.partialorder %v3654, 0.0
  %vm3725 = vcmp.gt.f32.partialorder %v3656, 0.0
  %vm3726 = vcmp.gt.f32.partialorder %v3208, 0.0
  %vm3727 = vcmp.gt.f32.partialorder %v3210, 0.0
  %vm3728 = vcmp.gt.f32.partialorder %v3660, 0.0
  %vm3729 = vcmp.gt.f32.partialorder %v3662, 0.0
  %vm3730 = vcmp.gt.f32.partialorder %v3212, 0.0
  %vm3731 = vcmp.gt.f32.partialorder %v3214, 0.0
  %vm3732 = vcmp.gt.f32.partialorder %v3664, 0.0
  %vm3733 = vcmp.gt.f32.partialorder %v3666, 0.0
  %vm3734 = vcmp.gt.f32.partialorder %v3218, 0.0
  %vm3735 = vcmp.gt.f32.partialorder %v3220, 0.0
  %vm3736 = vcmp.gt.f32.partialorder %v3670, 0.0
  %vm3737 = vcmp.gt.f32.partialorder %v3672, 0.0
  %vm3738 = vcmp.gt.f32.partialorder %v3222, 0.0
  %vm3739 = vcmp.gt.f32.partialorder %v3224, 0.0
  %vm3740 = vcmp.gt.f32.partialorder %v3674, 0.0
  %vm3741 = vcmp.gt.f32.partialorder %v3676, 0.0
  %v3742 = vmul.f32 %v3148, 0.2
  %v3743 = vmul.f32 %v3150, 0.2
  %v3744 = vmul.f32 %v3600, 0.2
  %v3745 = vmul.f32 %v3602, 0.2
  %v3746 = vmul.f32 %v3152, 0.2
  %v3747 = vmul.f32 %v3154, 0.2
  %v3748 = vmul.f32 %v3604, 0.2
  %v3749 = vmul.f32 %v3606, 0.2
  %v3750 = vmul.f32 %v3158, 0.2
  %v3751 = vmul.f32 %v3160, 0.2
  %v3752 = vmul.f32 %v3610, 0.2
  %v3753 = vmul.f32 %v3612, 0.2
  %v3754 = vmul.f32 %v3162, 0.2
  %v3755 = vmul.f32 %v3164, 0.2
  %v3756 = vmul.f32 %v3614, 0.2
  %v3757 = vmul.f32 %v3616, 0.2
  %v3758 = vmul.f32 %v3168, 0.2
  %v3759 = vmul.f32 %v3170, 0.2
  %v3760 = vmul.f32 %v3620, 0.2
  %v3761 = vmul.f32 %v3622, 0.2
  %v3762 = vmul.f32 %v3172, 0.2
  %v3763 = vmul.f32 %v3174, 0.2
  %v3764 = vmul.f32 %v3624, 0.2
  %v3765 = vmul.f32 %v3626, 0.2
  %v3766 = vmul.f32 %v3178, 0.2
  %v3767 = vmul.f32 %v3180, 0.2
  %v3768 = vmul.f32 %v3630, 0.2
  %v3769 = vmul.f32 %v3632, 0.2
  %v3770 = vmul.f32 %v3182, 0.2
  %v3771 = vmul.f32 %v3184, 0.2
  %v3772 = vmul.f32 %v3634, 0.2
  %v3773 = vmul.f32 %v3636, 0.2
  %v3774 = vmul.f32 %v3188, 0.2
  %v3775 = vmul.f32 %v3190, 0.2
  %v3776 = vmul.f32 %v3640, 0.2
  %v3777 = vmul.f32 %v3642, 0.2
  %v3778 = vmul.f32 %v3192, 0.2
  %v3779 = vmul.f32 %v3194, 0.2
  %v3780 = vmul.f32 %v3644, 0.2
  %v3781 = vmul.f32 %v3646, 0.2
  %v3782 = vmul.f32 %v3198, 0.2
  %v3783 = vmul.f32 %v3200, 0.2
  %v3784 = vmul.f32 %v3650, 0.2
  %v3785 = vmul.f32 %v3652, 0.2
  %v3786 = vmul.f32 %v3202, 0.2
  %v3787 = vmul.f32 %v3204, 0.2
  %v3788 = vmul.f32 %v3654, 0.2
  %v3789 = vmul.f32 %v3656, 0.2
  %v3790 = vmul.f32 %v3208, 0.2
  %v3791 = vmul.f32 %v3210, 0.2
  %v3792 = vmul.f32 %v3660, 0.2
  %v3793 = vmul.f32 %v3662, 0.2
  %v3794 = vmul.f32 %v3212, 0.2
  %v3795 = vmul.f32 %v3214, 0.2
  %v3796 = vmul.f32 %v3664, 0.2
  %v3797 = vmul.f32 %v3666, 0.2
  %v3798 = vmul.f32 %v3218, 0.2
  %v3799 = vmul.f32 %v3220, 0.2
  %v3800 = vmul.f32 %v3670, 0.2
  %v3801 = vmul.f32 %v3672, 0.2
  %v3802 = vmul.f32 %v3222, 0.2
  %v3803 = vmul.f32 %v3224, 0.2
  %v3804 = vmul.f32 %v3674, 0.2
  %v3805 = vmul.f32 %v3676, 0.2
  %v3806 = vsel %vm3678, %v3148, %v3742
  %v3807 = vsel %vm3679, %v3150, %v3743
  %v3808 = vsel %vm3680, %v3600, %v3744
  %v3809 = vsel %vm3681, %v3602, %v3745
  %v3810 = vsel %vm3682, %v3152, %v3746
  %v3811 = vsel %vm3683, %v3154, %v3747
  %v3812 = vsel %vm3684, %v3604, %v3748
  %v3813 = vsel %vm3685, %v3606, %v3749
  %v3814 = vsel %vm3686, %v3158, %v3750
  %v3815 = vsel %vm3687, %v3160, %v3751
  %v3816 = vsel %vm3688, %v3610, %v3752
  %v3817 = vsel %vm3689, %v3612, %v3753
  %v3818 = vsel %vm3690, %v3162, %v3754
  %v3819 = vsel %vm3691, %v3164, %v3755
  %v3820 = vsel %vm3692, %v3614, %v3756
  %v3821 = vsel %vm3693, %v3616, %v3757
  %v3822 = vsel %vm3694, %v3168, %v3758
  %v3823 = vsel %vm3695, %v3170, %v3759
  %v3824 = vsel %vm3696, %v3620, %v3760
  %v3825 = vsel %vm3697, %v3622, %v3761
  %v3826 = vsel %vm3698, %v3172, %v3762
  %v3827 = vsel %vm3699, %v3174, %v3763
  %v3828 = vsel %vm3700, %v3624, %v3764
  %v3829 = vsel %vm3701, %v3626, %v3765
  %v3830 = vsel %vm3702, %v3178, %v3766
  %v3831 = vsel %vm3703, %v3180, %v3767
  %v3832 = vsel %vm3704, %v3630, %v3768
  %v3833 = vsel %vm3705, %v3632, %v3769
  %v3834 = vsel %vm3706, %v3182, %v3770
  %v3835 = vsel %vm3707, %v3184, %v3771
  %v3836 = vsel %vm3708, %v3634, %v3772
  %v3837 = vsel %vm3709, %v3636, %v3773
  %v3838 = vsel %vm3710, %v3188, %v3774
  %v3839 = vsel %vm3711, %v3190, %v3775
  %v3840 = vsel %vm3712, %v3640, %v3776
  %v3841 = vsel %vm3713, %v3642, %v3777
  %v3842 = vsel %vm3714, %v3192, %v3778
  %v3843 = vsel %vm3715, %v3194, %v3779
  %v3844 = vsel %vm3716, %v3644, %v3780
  %v3845 = vsel %vm3717, %v3646, %v3781
  %v3846 = vsel %vm3718, %v3198, %v3782
  %v3847 = vsel %vm3719, %v3200, %v3783
  %v3848 = vsel %vm3720, %v3650, %v3784
  %v3849 = vsel %vm3721, %v3652, %v3785
  %v3850 = vsel %vm3722, %v3202, %v3786
  %v3851 = vsel %vm3723, %v3204, %v3787
  %v3852 = vsel %vm3724, %v3654, %v3788
  %v3853 = vsel %vm3725, %v3656, %v3789
  %v3854 = vsel %vm3726, %v3208, %v3790
  %v3855 = vsel %vm3727, %v3210, %v3791
  %v3856 = vsel %vm3728, %v3660, %v3792
  %v3857 = vsel %vm3729, %v3662, %v3793
  %v3858 = vsel %vm3730, %v3212, %v3794
  %v3859 = vsel %vm3731, %v3214, %v3795
  %v3860 = vsel %vm3732, %v3664, %v3796
  %v3861 = vsel %vm3733, %v3666, %v3797
  %v3862 = vsel %vm3734, %v3218, %v3798
  %v3863 = vsel %vm3735, %v3220, %v3799
  %v3864 = vsel %vm3736, %v3670, %v3800
  %v3865 = vsel %vm3737, %v3672, %v3801
  %v3866 = vsel %vm3738, %v3222, %v3802
  %v3867 = vsel %vm3739, %v3224, %v3803
  %v3868 = vsel %vm3740, %v3674, %v3804
  %v3869 = vsel %vm3741, %v3676, %v3805
  %v3870 = vpack.c.bf16 %v3810, %v3806
  %v3871 = vpack.c.bf16 %v3811, %v3807
  %v3872 = vpack.c.bf16 %v3812, %v3808
  %v3873 = vpack.c.bf16 %v3813, %v3809
  %v3874 = vpack.c.bf16 %v3818, %v3814
  %v3875 = vpack.c.bf16 %v3819, %v3815
  %v3876 = vpack.c.bf16 %v3820, %v3816
  %v3877 = vpack.c.bf16 %v3821, %v3817
  %v3878 = vpack.c.bf16 %v3826, %v3822
  %v3879 = vpack.c.bf16 %v3827, %v3823
  %v3880 = vpack.c.bf16 %v3828, %v3824
  %v3881 = vpack.c.bf16 %v3829, %v3825
  %v3882 = vpack.c.bf16 %v3834, %v3830
  %v3883 = vpack.c.bf16 %v3835, %v3831
  %v3884 = vpack.c.bf16 %v3836, %v3832
  %v3885 = vpack.c.bf16 %v3837, %v3833
  %v3886 = vpack.c.bf16 %v3842, %v3838
  %v3887 = vpack.c.bf16 %v3843, %v3839
  %v3888 = vpack.c.bf16 %v3844, %v3840
  %v3889 = vpack.c.bf16 %v3845, %v3841
  %v3890 = vpack.c.bf16 %v3850, %v3846
  %v3891 = vpack.c.bf16 %v3851, %v3847
  %v3892 = vpack.c.bf16 %v3852, %v3848
  %v3893 = vpack.c.bf16 %v3853, %v3849
  %v3894 = vpack.c.bf16 %v3858, %v3854
  %v3895 = vpack.c.bf16 %v3859, %v3855
  %v3896 = vpack.c.bf16 %v3860, %v3856
  %v3897 = vpack.c.bf16 %v3861, %v3857
  %v3898 = vpack.c.bf16 %v3866, %v3862
  %v3899 = vpack.c.bf16 %v3867, %v3863
  %v3900 = vpack.c.bf16 %v3868, %v3864
  %v3901 = vpack.c.bf16 %v3869, %v3865
  %v3902 = vld [vmem:[%s5] sm:$0xff]
  %v3903 = vld [vmem:[%s5 + $0x8] sm:$0xff]
  %v3904 = vld [vmem:[%s5 + $0x10] sm:$0xff]
  %v3905 = vld [vmem:[%s5 + $0x18] sm:$0xff]
  %v3906 = vld [vmem:[%s5 + $0x20] sm:$0xff]
  %v3907 = vld [vmem:[%s5 + $0x28] sm:$0xff]
  %v3908 = vld [vmem:[%s5 + $0x30] sm:$0xff]
  %v3909 = vld [vmem:[%s5 + $0x38] sm:$0xff]
  %v3910 = vld [vmem:[%s5 + $0x40] sm:$0xff]
  %v3911 = vld [vmem:[%s5 + $0x48] sm:$0xff]
  %v3912 = vld [vmem:[%s5 + $0x50] sm:$0xff]
  %v3913 = vld [vmem:[%s5 + $0x58] sm:$0xff]
  %v3914 = vld [vmem:[%s5 + $0x60] sm:$0xff]
  %v3915 = vld [vmem:[%s5 + $0x68] sm:$0xff]
  %v3916 = vld [vmem:[%s5 + $0x70] sm:$0xff]
  %v3917 = vld [vmem:[%s5 + $0x78] sm:$0xff]
  %v3918 = vld [vmem:[%s5 + $0x80] sm:$0xff]
  %v3919 = vld [vmem:[%s5 + $0x88] sm:$0xff]
  %v3920 = vld [vmem:[%s5 + $0x90] sm:$0xff]
  %v3921 = vld [vmem:[%s5 + $0x98] sm:$0xff]
  %v3922 = vld [vmem:[%s5 + $0xa0] sm:$0xff]
  %v3923 = vld [vmem:[%s5 + $0xa8] sm:$0xff]
  %v3924 = vld [vmem:[%s5 + $0xb0] sm:$0xff]
  %v3925 = vld [vmem:[%s5 + $0xb8] sm:$0xff]
  %v3926 = vld [vmem:[%s5 + $0xc0] sm:$0xff]
  %v3927 = vld [vmem:[%s5 + $0xc8] sm:$0xff]
  %v3928 = vld [vmem:[%s5 + $0xd0] sm:$0xff]
  %v3929 = vld [vmem:[%s5 + $0xd8] sm:$0xff]
  %v3930 = vld [vmem:[%s5 + $0xe0] sm:$0xff]
  %v3931 = vld [vmem:[%s5 + $0xe8] sm:$0xff]
  %v3932 = vld [vmem:[%s5 + $0xf0] sm:$0xff]
  %v3933 = vld [vmem:[%s5 + $0xf8] sm:$0xff]
  %v3934 = vld [vmem:[%s5 + $0x100] sm:$0xff]
  %v3935 = vld [vmem:[%s5 + $0x108] sm:$0xff]
  %v3936 = vld [vmem:[%s5 + $0x110] sm:$0xff]
  %v3937 = vld [vmem:[%s5 + $0x118] sm:$0xff]
  %v3938 = vld [vmem:[%s5 + $0x120] sm:$0xff]
  %v3939 = vld [vmem:[%s5 + $0x128] sm:$0xff]
  %v3940 = vld [vmem:[%s5 + $0x130] sm:$0xff]
  %v3941 = vld [vmem:[%s5 + $0x138] sm:$0xff]
  %v3942 = vld [vmem:[%s5 + $0x140] sm:$0xff]
  %v3943 = vld [vmem:[%s5 + $0x148] sm:$0xff]
  %v3944 = vld [vmem:[%s5 + $0x150] sm:$0xff]
  %v3945 = vld [vmem:[%s5 + $0x158] sm:$0xff]
  %v3946 = vld [vmem:[%s5 + $0x160] sm:$0xff]
  %v3947 = vld [vmem:[%s5 + $0x168] sm:$0xff]
  %v3948 = vld [vmem:[%s5 + $0x170] sm:$0xff]
  %v3949 = vld [vmem:[%s5 + $0x178] sm:$0xff]
  %v3950 = vld [vmem:[%s5 + $0x180] sm:$0xff]
  %v3951 = vld [vmem:[%s5 + $0x188] sm:$0xff]
  %v3952 = vld [vmem:[%s5 + $0x190] sm:$0xff]
  %v3953 = vld [vmem:[%s5 + $0x198] sm:$0xff]
  %v3954 = vld [vmem:[%s5 + $0x1a0] sm:$0xff]
  %v3955 = vld [vmem:[%s5 + $0x1a8] sm:$0xff]
  %v3956 = vld [vmem:[%s5 + $0x1b0] sm:$0xff]
  %v3957 = vld [vmem:[%s5 + $0x1b8] sm:$0xff]
  %v3958 = vld [vmem:[%s5 + $0x1c0] sm:$0xff]
  %v3959 = vld [vmem:[%s5 + $0x1c8] sm:$0xff]
  %v3960 = vld [vmem:[%s5 + $0x1d0] sm:$0xff]
  %v3961 = vld [vmem:[%s5 + $0x1d8] sm:$0xff]
  %v3962 = vld [vmem:[%s5 + $0x1e0] sm:$0xff]
  %v3963 = vld [vmem:[%s5 + $0x1e8] sm:$0xff]
  %v3964 = vld [vmem:[%s5 + $0x1f0] sm:$0xff]
  %v3965 = vld [vmem:[%s5 + $0x1f8] sm:$0xff]
  %v3966 = vld [vmem:[%s6] sm:$0x3]
  %v3968 = vlaneseq
  %v3969 = vshrl.u32 %v3968, 7
  %v3970 = vsub.s32 0, %v3969
  %v3971 = vrot.slane %v3966, %v3970
  %v3972 = vlaneseq
  %v3973 = vshrl.u32 %v3972, 7
  %v3974 = vsub.s32 1, %v3973
  %v3975 = vrot.slane %v3966, %v3974
  %v4042 = vunpack.c.l.b16 %v3902
  %v4043 = vunpack.c.h.b16 %v3902
  %v4044 = vunpack.c.l.b16 %v3903
  %v4045 = vunpack.c.h.b16 %v3903
  %v4046 = vunpack.c.l.b16 %v3904
  %v4047 = vunpack.c.h.b16 %v3904
  %v4048 = vunpack.c.l.b16 %v3905
  %v4049 = vunpack.c.h.b16 %v3905
  %v4050 = vunpack.c.l.b16 %v3906
  %v4051 = vunpack.c.h.b16 %v3906
  %v4052 = vunpack.c.l.b16 %v3907
  %v4053 = vunpack.c.h.b16 %v3907
  %v4054 = vunpack.c.l.b16 %v3908
  %v4055 = vunpack.c.h.b16 %v3908
  %v4056 = vunpack.c.l.b16 %v3909
  %v4057 = vunpack.c.h.b16 %v3909
  %v4058 = vunpack.c.l.b16 %v3910
  %v4059 = vunpack.c.h.b16 %v3910
  %v4060 = vunpack.c.l.b16 %v3911
  %v4061 = vunpack.c.h.b16 %v3911
  %v4062 = vunpack.c.l.b16 %v3912
  %v4063 = vunpack.c.h.b16 %v3912
  %v4064 = vunpack.c.l.b16 %v3913
  %v4065 = vunpack.c.h.b16 %v3913
  %v4066 = vunpack.c.l.b16 %v3914
  %v4067 = vunpack.c.h.b16 %v3914
  %v4068 = vunpack.c.l.b16 %v3915
  %v4069 = vunpack.c.h.b16 %v3915
  %v4070 = vunpack.c.l.b16 %v3916
  %v4071 = vunpack.c.h.b16 %v3916
  %v4072 = vunpack.c.l.b16 %v3917
  %v4073 = vunpack.c.h.b16 %v3917
  %v4074 = vunpack.c.l.b16 %v3918
  %v4075 = vunpack.c.h.b16 %v3918
  %v4076 = vunpack.c.l.b16 %v3919
  %v4077 = vunpack.c.h.b16 %v3919
  %v4078 = vunpack.c.l.b16 %v3920
  %v4079 = vunpack.c.h.b16 %v3920
  %v4080 = vunpack.c.l.b16 %v3921
  %v4081 = vunpack.c.h.b16 %v3921
  %v4082 = vunpack.c.l.b16 %v3922
  %v4083 = vunpack.c.h.b16 %v3922
  %v4084 = vunpack.c.l.b16 %v3923
  %v4085 = vunpack.c.h.b16 %v3923
  %v4086 = vunpack.c.l.b16 %v3924
  %v4087 = vunpack.c.h.b16 %v3924
  %v4088 = vunpack.c.l.b16 %v3925
  %v4089 = vunpack.c.h.b16 %v3925
  %v4090 = vunpack.c.l.b16 %v3926
  %v4091 = vunpack.c.h.b16 %v3926
  %v4092 = vunpack.c.l.b16 %v3927
  %v4093 = vunpack.c.h.b16 %v3927
  %v4094 = vunpack.c.l.b16 %v3928
  %v4095 = vunpack.c.h.b16 %v3928
  %v4096 = vunpack.c.l.b16 %v3929
  %v4097 = vunpack.c.h.b16 %v3929
  %v4098 = vunpack.c.l.b16 %v3930
  %v4099 = vunpack.c.h.b16 %v3930
  %v4100 = vunpack.c.l.b16 %v3931
  %v4101 = vunpack.c.h.b16 %v3931
  %v4102 = vunpack.c.l.b16 %v3932
  %v4103 = vunpack.c.h.b16 %v3932
  %v4104 = vunpack.c.l.b16 %v3933
  %v4105 = vunpack.c.h.b16 %v3933
  %v4106 = vunpack.c.l.b16 %v3934
  %v4107 = vunpack.c.h.b16 %v3934
  %v4108 = vunpack.c.l.b16 %v3935
  %v4109 = vunpack.c.h.b16 %v3935
  %v4110 = vunpack.c.l.b16 %v3936
  %v4111 = vunpack.c.h.b16 %v3936
  %v4112 = vunpack.c.l.b16 %v3937
  %v4113 = vunpack.c.h.b16 %v3937
  %v4114 = vunpack.c.l.b16 %v3938
  %v4115 = vunpack.c.h.b16 %v3938
  %v4116 = vunpack.c.l.b16 %v3939
  %v4117 = vunpack.c.h.b16 %v3939
  %v4118 = vunpack.c.l.b16 %v3940
  %v4119 = vunpack.c.h.b16 %v3940
  %v4120 = vunpack.c.l.b16 %v3941
  %v4121 = vunpack.c.h.b16 %v3941
  %v4122 = vunpack.c.l.b16 %v3942
  %v4123 = vunpack.c.h.b16 %v3942
  %v4124 = vunpack.c.l.b16 %v3943
  %v4125 = vunpack.c.h.b16 %v3943
  %v4126 = vunpack.c.l.b16 %v3944
  %v4127 = vunpack.c.h.b16 %v3944
  %v4128 = vunpack.c.l.b16 %v3945
  %v4129 = vunpack.c.h.b16 %v3945
  %v4130 = vunpack.c.l.b16 %v3946
  %v4131 = vunpack.c.h.b16 %v3946
  %v4132 = vunpack.c.l.b16 %v3947
  %v4133 = vunpack.c.h.b16 %v3947
  %v4134 = vunpack.c.l.b16 %v3948
  %v4135 = vunpack.c.h.b16 %v3948
  %v4136 = vunpack.c.l.b16 %v3949
  %v4137 = vunpack.c.h.b16 %v3949
  %v4138 = vunpack.c.l.b16 %v3950
  %v4139 = vunpack.c.h.b16 %v3950
  %v4140 = vunpack.c.l.b16 %v3951
  %v4141 = vunpack.c.h.b16 %v3951
  %v4142 = vunpack.c.l.b16 %v3952
  %v4143 = vunpack.c.h.b16 %v3952
  %v4144 = vunpack.c.l.b16 %v3953
  %v4145 = vunpack.c.h.b16 %v3953
  %v4146 = vunpack.c.l.b16 %v3954
  %v4147 = vunpack.c.h.b16 %v3954
  %v4148 = vunpack.c.l.b16 %v3955
  %v4149 = vunpack.c.h.b16 %v3955
  %v4150 = vunpack.c.l.b16 %v3956
  %v4151 = vunpack.c.h.b16 %v3956
  %v4152 = vunpack.c.l.b16 %v3957
  %v4153 = vunpack.c.h.b16 %v3957
  %v4154 = vunpack.c.l.b16 %v3958
  %v4155 = vunpack.c.h.b16 %v3958
  %v4156 = vunpack.c.l.b16 %v3959
  %v4157 = vunpack.c.h.b16 %v3959
  %v4158 = vunpack.c.l.b16 %v3960
  %v4159 = vunpack.c.h.b16 %v3960
  %v4160 = vunpack.c.l.b16 %v3961
  %v4161 = vunpack.c.h.b16 %v3961
  %v4162 = vunpack.c.l.b16 %v3962
  %v4163 = vunpack.c.h.b16 %v3962
  %v4164 = vunpack.c.l.b16 %v3963
  %v4165 = vunpack.c.h.b16 %v3963
  %v4166 = vunpack.c.l.b16 %v3964
  %v4167 = vunpack.c.h.b16 %v3964
  %v4168 = vunpack.c.l.b16 %v3965
  %v4169 = vunpack.c.h.b16 %v3965
  %v4170 = vpack.c.b16 %v4044, %v4042
  %v4171 = vpack.c.b16 %v4045, %v4043
  %v4172 = vpack.c.b16 %v4048, %v4046
  %v4173 = vpack.c.b16 %v4049, %v4047
  %v4174 = vpack.c.b16 %v4052, %v4050
  %v4175 = vpack.c.b16 %v4053, %v4051
  %v4176 = vpack.c.b16 %v4056, %v4054
  %v4177 = vpack.c.b16 %v4057, %v4055
  %v4178 = vpack.c.b16 %v4060, %v4058
  %v4179 = vpack.c.b16 %v4061, %v4059
  %v4180 = vpack.c.b16 %v4064, %v4062
  %v4181 = vpack.c.b16 %v4065, %v4063
  %v4182 = vpack.c.b16 %v4068, %v4066
  %v4183 = vpack.c.b16 %v4069, %v4067
  %v4184 = vpack.c.b16 %v4072, %v4070
  %v4185 = vpack.c.b16 %v4073, %v4071
  %v4186 = vpack.c.b16 %v4076, %v4074
  %v4187 = vpack.c.b16 %v4077, %v4075
  %v4188 = vpack.c.b16 %v4080, %v4078
  %v4189 = vpack.c.b16 %v4081, %v4079
  %v4190 = vpack.c.b16 %v4084, %v4082
  %v4191 = vpack.c.b16 %v4085, %v4083
  %v4192 = vpack.c.b16 %v4088, %v4086
  %v4193 = vpack.c.b16 %v4089, %v4087
  %v4194 = vpack.c.b16 %v4092, %v4090
  %v4195 = vpack.c.b16 %v4093, %v4091
  %v4196 = vpack.c.b16 %v4096, %v4094
  %v4197 = vpack.c.b16 %v4097, %v4095
  %v4198 = vpack.c.b16 %v4100, %v4098
  %v4199 = vpack.c.b16 %v4101, %v4099
  %v4200 = vpack.c.b16 %v4104, %v4102
  %v4201 = vpack.c.b16 %v4105, %v4103
  %v4202 = vpack.c.b16 %v4108, %v4106
  %v4203 = vpack.c.b16 %v4109, %v4107
  %v4204 = vpack.c.b16 %v4112, %v4110
  %v4205 = vpack.c.b16 %v4113, %v4111
  %v4206 = vpack.c.b16 %v4116, %v4114
  %v4207 = vpack.c.b16 %v4117, %v4115
  %v4208 = vpack.c.b16 %v4120, %v4118
  %v4209 = vpack.c.b16 %v4121, %v4119
  %v4210 = vpack.c.b16 %v4124, %v4122
  %v4211 = vpack.c.b16 %v4125, %v4123
  %v4212 = vpack.c.b16 %v4128, %v4126
  %v4213 = vpack.c.b16 %v4129, %v4127
  %v4214 = vpack.c.b16 %v4132, %v4130
  %v4215 = vpack.c.b16 %v4133, %v4131
  %v4216 = vpack.c.b16 %v4136, %v4134
  %v4217 = vpack.c.b16 %v4137, %v4135
  %v4218 = vpack.c.b16 %v4140, %v4138
  %v4219 = vpack.c.b16 %v4141, %v4139
  %v4220 = vpack.c.b16 %v4144, %v4142
  %v4221 = vpack.c.b16 %v4145, %v4143
  %v4222 = vpack.c.b16 %v4148, %v4146
  %v4223 = vpack.c.b16 %v4149, %v4147
  %v4224 = vpack.c.b16 %v4152, %v4150
  %v4225 = vpack.c.b16 %v4153, %v4151
  %v4226 = vpack.c.b16 %v4156, %v4154
  %v4227 = vpack.c.b16 %v4157, %v4155
  %v4228 = vpack.c.b16 %v4160, %v4158
  %v4229 = vpack.c.b16 %v4161, %v4159
  %v4230 = vpack.c.b16 %v4164, %v4162
  %v4231 = vpack.c.b16 %v4165, %v4163
  %v4232 = vpack.c.b16 %v4168, %v4166
  %v4233 = vpack.c.b16 %v4169, %v4167
  %4298 = vmatprep.subr.bf16.mxu0 %v4171
  %4299 = vmatpush1.bf16.msra.mxu0 %v4170
  %4300 = vmatprep.subr.bf16.mxu0 %v4173
  %4301 = vmatpush1.bf16.msra.mxu0 %v4172
  %4302 = vmatprep.subr.bf16.mxu0 %v4175
  %4303 = vmatpush1.bf16.msra.mxu0 %v4174
  %4304 = vmatprep.subr.bf16.mxu0 %v4177
  %4305 = vmatpush1.bf16.msra.mxu0 %v4176
  %4306 = vmatprep.subr.bf16.mxu0 %v4179
  %4307 = vmatpush1.bf16.msra.mxu0 %v4178
  %4308 = vmatprep.subr.bf16.mxu0 %v4181
  %4309 = vmatpush1.bf16.msra.mxu0 %v4180
  %4310 = vmatprep.subr.bf16.mxu0 %v4183
  %4311 = vmatpush1.bf16.msra.mxu0 %v4182
  %4312 = vmatprep.subr.bf16.mxu0 %v4185
  %4313 = vmatpush1.bf16.msra.mxu0 %v4184
  %4314 = vmatprep.subr.bf16.mxu0 %v4187
  %4315 = vmatpush1.bf16.msra.mxu0 %v4186
  %4316 = vmatprep.subr.bf16.mxu0 %v4189
  %4317 = vmatpush1.bf16.msra.mxu0 %v4188
  %4318 = vmatprep.subr.bf16.mxu0 %v4191
  %4319 = vmatpush1.bf16.msra.mxu0 %v4190
  %4320 = vmatprep.subr.bf16.mxu0 %v4193
  %4321 = vmatpush1.bf16.msra.mxu0 %v4192
  %4322 = vmatprep.subr.bf16.mxu0 %v4195
  %4323 = vmatpush1.bf16.msra.mxu0 %v4194
  %4324 = vmatprep.subr.bf16.mxu0 %v4197
  %4325 = vmatpush1.bf16.msra.mxu0 %v4196
  %4326 = vmatprep.subr.bf16.mxu0 %v4199
  %4327 = vmatpush1.bf16.msra.mxu0 %v4198
  %4328 = vmatprep.subr.bf16.mxu0 %v4201
  %4329 = vmatpush1.bf16.msra.mxu0 %v4200
  %4330 = vmatprep.mubr.bf16.mxu0 %v3871
  %4331 = vmatmul.mubr.bf16.gmra.mrb[0].mxu0 %v3870
  %v4332 = vpop.f32.mrb[0].mxu0
  %v4333 = vadd.f32 %v3971, %v4332
  %v4334 = vpop.f32.mrb[0].mxu0
  %v4335 = vadd.f32 %v3975, %v4334
  %v4336 = vpop.f32.mrb[0].mxu0
  %v4337 = vadd.f32 %v3971, %v4336
  %v4338 = vpop.f32.mrb[0].mxu0
  %v4339 = vadd.f32 %v3975, %v4338
  %4340 = vmatprep.mubr.bf16.mxu0 %v3875
  %4341 = vmatmul.mubr.bf16.gmra.mrb[0].mxu0 %v3874
  %v4342 = vpop.f32.mrb[0].mxu0
  %v4343 = vadd.f32 %v3971, %v4342
  %v4344 = vpop.f32.mrb[0].mxu0
  %v4345 = vadd.f32 %v3975, %v4344
  %v4346 = vpop.f32.mrb[0].mxu0
  %v4347 = vadd.f32 %v3971, %v4346
  %v4348 = vpop.f32.mrb[0].mxu0
  %v4349 = vadd.f32 %v3975, %v4348
  %4350 = vmatprep.mubr.bf16.mxu0 %v3879
  %4351 = vmatmul.mubr.bf16.gmra.mrb[0].mxu0 %v3878
  %v4352 = vpop.f32.mrb[0].mxu0
  %v4353 = vadd.f32 %v3971, %v4352
  %v4354 = vpop.f32.mrb[0].mxu0
  %v4355 = vadd.f32 %v3975, %v4354
  %v4356 = vpop.f32.mrb[0].mxu0
  %v4357 = vadd.f32 %v3971, %v4356
  %v4358 = vpop.f32.mrb[0].mxu0
  %v4359 = vadd.f32 %v3975, %v4358
  %4360 = vmatprep.mubr.bf16.mxu0 %v3883
  %4361 = vmatmul.mubr.bf16.gmra.mrb[0].mxu0 %v3882
  %v4362 = vpop.f32.mrb[0].mxu0
  %v4363 = vadd.f32 %v3971, %v4362
  %v4364 = vpop.f32.mrb[0].mxu0
  %v4365 = vadd.f32 %v3975, %v4364
  %v4366 = vpop.f32.mrb[0].mxu0
  %v4367 = vadd.f32 %v3971, %v4366
  %v4368 = vpop.f32.mrb[0].mxu0
  %v4369 = vadd.f32 %v3975, %v4368
  %4370 = vmatprep.mubr.bf16.mxu0 %v3887
  %4371 = vmatmul.mubr.bf16.gmra.mrb[0].mxu0 %v3886
  %v4372 = vpop.f32.mrb[0].mxu0
  %v4373 = vadd.f32 %v3971, %v4372
  %v4374 = vpop.f32.mrb[0].mxu0
  %v4375 = vadd.f32 %v3975, %v4374
  %v4376 = vpop.f32.mrb[0].mxu0
  %v4377 = vadd.f32 %v3971, %v4376
  %v4378 = vpop.f32.mrb[0].mxu0
  %v4379 = vadd.f32 %v3975, %v4378
  %4380 = vmatprep.mubr.bf16.mxu0 %v3891
  %4381 = vmatmul.mubr.bf16.gmra.mrb[0].mxu0 %v3890
  %v4382 = vpop.f32.mrb[0].mxu0
  %v4383 = vadd.f32 %v3971, %v4382
  %v4384 = vpop.f32.mrb[0].mxu0
  %v4385 = vadd.f32 %v3975, %v4384
  %v4386 = vpop.f32.mrb[0].mxu0
  %v4387 = vadd.f32 %v3971, %v4386
  %v4388 = vpop.f32.mrb[0].mxu0
  %v4389 = vadd.f32 %v3975, %v4388
  %4390 = vmatprep.mubr.bf16.mxu0 %v3895
  %4391 = vmatmul.mubr.bf16.gmra.mrb[0].mxu0 %v3894
  %v4392 = vpop.f32.mrb[0].mxu0
  %v4393 = vadd.f32 %v3971, %v4392
  %v4394 = vpop.f32.mrb[0].mxu0
  %v4395 = vadd.f32 %v3975, %v4394
  %v4396 = vpop.f32.mrb[0].mxu0
  %v4397 = vadd.f32 %v3971, %v4396
  %v4398 = vpop.f32.mrb[0].mxu0
  %v4399 = vadd.f32 %v3975, %v4398
  %4400 = vmatprep.mubr.bf16.mxu0 %v3899
  %4401 = vmatmul.mubr.bf16.gmra.mrb[0].mxu0 %v3898
  %v4402 = vpop.f32.mrb[0].mxu0
  %v4403 = vadd.f32 %v3971, %v4402
  %v4404 = vpop.f32.mrb[0].mxu0
  %v4405 = vadd.f32 %v3975, %v4404
  %v4406 = vpop.f32.mrb[0].mxu0
  %v4407 = vadd.f32 %v3971, %v4406
  %v4408 = vpop.f32.mrb[0].mxu0
  %v4409 = vadd.f32 %v3975, %v4408
  %4410 = vdwg.mxu0
  %4411 = vmatprep.subr.bf16.mxu0 %v4203
  %4412 = vmatpush1.bf16.msra.mxu0 %v4202
  %4413 = vmatprep.subr.bf16.mxu0 %v4205
  %4414 = vmatpush1.bf16.msra.mxu0 %v4204
  %4415 = vmatprep.subr.bf16.mxu0 %v4207
  %4416 = vmatpush1.bf16.msra.mxu0 %v4206
  %4417 = vmatprep.subr.bf16.mxu0 %v4209
  %4418 = vmatpush1.bf16.msra.mxu0 %v4208
  %4419 = vmatprep.subr.bf16.mxu0 %v4211
  %4420 = vmatpush1.bf16.msra.mxu0 %v4210
  %4421 = vmatprep.subr.bf16.mxu0 %v4213
  %4422 = vmatpush1.bf16.msra.mxu0 %v4212
  %4423 = vmatprep.subr.bf16.mxu0 %v4215
  %4424 = vmatpush1.bf16.msra.mxu0 %v4214
  %4425 = vmatprep.subr.bf16.mxu0 %v4217
  %4426 = vmatpush1.bf16.msra.mxu0 %v4216
  %4427 = vmatprep.subr.bf16.mxu0 %v4219
  %4428 = vmatpush1.bf16.msra.mxu0 %v4218
  %4429 = vmatprep.subr.bf16.mxu0 %v4221
  %4430 = vmatpush1.bf16.msra.mxu0 %v4220
  %4431 = vmatprep.subr.bf16.mxu0 %v4223
  %4432 = vmatpush1.bf16.msra.mxu0 %v4222
  %4433 = vmatprep.subr.bf16.mxu0 %v4225
  %4434 = vmatpush1.bf16.msra.mxu0 %v4224
  %4435 = vmatprep.subr.bf16.mxu0 %v4227
  %4436 = vmatpush1.bf16.msra.mxu0 %v4226
  %4437 = vmatprep.subr.bf16.mxu0 %v4229
  %4438 = vmatpush1.bf16.msra.mxu0 %v4228
  %4439 = vmatprep.subr.bf16.mxu0 %v4231
  %4440 = vmatpush1.bf16.msra.mxu0 %v4230
  %4441 = vmatprep.subr.bf16.mxu0 %v4233
  %4442 = vmatpush1.bf16.msra.mxu0 %v4232
  %4443 = vmatprep.mubr.bf16.mxu0 %v3873
  %4444 = vmatmul.mubr.bf16.gmra.mrb[0].mxu0 %v3872
  %v4445 = vpop.f32.mrb[0].mxu0
  %v4446 = vadd.f32 %v4333, %v4445
  %v4447 = vpop.f32.mrb[0].mxu0
  %v4448 = vadd.f32 %v4335, %v4447
  %v4449 = vpop.f32.mrb[0].mxu0
  %v4450 = vadd.f32 %v4337, %v4449
  %v4451 = vpop.f32.mrb[0].mxu0
  %v4452 = vadd.f32 %v4339, %v4451
  %4453 = vmatprep.mubr.bf16.mxu0 %v3877
  %4454 = vmatmul.mubr.bf16.gmra.mrb[0].mxu0 %v3876
  %v4455 = vpop.f32.mrb[0].mxu0
  %v4456 = vadd.f32 %v4343, %v4455
  %v4457 = vpop.f32.mrb[0].mxu0
  %v4458 = vadd.f32 %v4345, %v4457
  %v4459 = vpop.f32.mrb[0].mxu0
  %v4460 = vadd.f32 %v4347, %v4459
  %v4461 = vpop.f32.mrb[0].mxu0
  %v4462 = vadd.f32 %v4349, %v4461
  %4463 = vmatprep.mubr.bf16.mxu0 %v3881
  %4464 = vmatmul.mubr.bf16.gmra.mrb[0].mxu0 %v3880
  %v4465 = vpop.f32.mrb[0].mxu0
  %v4466 = vadd.f32 %v4353, %v4465
  %v4467 = vpop.f32.mrb[0].mxu0
  %v4468 = vadd.f32 %v4355, %v4467
  %v4469 = vpop.f32.mrb[0].mxu0
  %v4470 = vadd.f32 %v4357, %v4469
  %v4471 = vpop.f32.mrb[0].mxu0
  %v4472 = vadd.f32 %v4359, %v4471
  %4473 = vmatprep.mubr.bf16.mxu0 %v3885
  %4474 = vmatmul.mubr.bf16.gmra.mrb[0].mxu0 %v3884
  %v4475 = vpop.f32.mrb[0].mxu0
  %v4476 = vadd.f32 %v4363, %v4475
  %v4477 = vpop.f32.mrb[0].mxu0
  %v4478 = vadd.f32 %v4365, %v4477
  %v4479 = vpop.f32.mrb[0].mxu0
  %v4480 = vadd.f32 %v4367, %v4479
  %v4481 = vpop.f32.mrb[0].mxu0
  %v4482 = vadd.f32 %v4369, %v4481
  %4483 = vmatprep.mubr.bf16.mxu0 %v3889
  %4484 = vmatmul.mubr.bf16.gmra.mrb[0].mxu0 %v3888
  %v4485 = vpop.f32.mrb[0].mxu0
  %v4486 = vadd.f32 %v4373, %v4485
  %v4487 = vpop.f32.mrb[0].mxu0
  %v4488 = vadd.f32 %v4375, %v4487
  %v4489 = vpop.f32.mrb[0].mxu0
  %v4490 = vadd.f32 %v4377, %v4489
  %v4491 = vpop.f32.mrb[0].mxu0
  %v4492 = vadd.f32 %v4379, %v4491
  %4493 = vmatprep.mubr.bf16.mxu0 %v3893
  %4494 = vmatmul.mubr.bf16.gmra.mrb[0].mxu0 %v3892
  %v4495 = vpop.f32.mrb[0].mxu0
  %v4496 = vadd.f32 %v4383, %v4495
  %v4497 = vpop.f32.mrb[0].mxu0
  %v4498 = vadd.f32 %v4385, %v4497
  %v4499 = vpop.f32.mrb[0].mxu0
  %v4500 = vadd.f32 %v4387, %v4499
  %v4501 = vpop.f32.mrb[0].mxu0
  %v4502 = vadd.f32 %v4389, %v4501
  %4503 = vmatprep.mubr.bf16.mxu0 %v3897
  %4504 = vmatmul.mubr.bf16.gmra.mrb[0].mxu0 %v3896
  %v4505 = vpop.f32.mrb[0].mxu0
  %v4506 = vadd.f32 %v4393, %v4505
  %v4507 = vpop.f32.mrb[0].mxu0
  %v4508 = vadd.f32 %v4395, %v4507
  %v4509 = vpop.f32.mrb[0].mxu0
  %v4510 = vadd.f32 %v4397, %v4509
  %v4511 = vpop.f32.mrb[0].mxu0
  %v4512 = vadd.f32 %v4399, %v4511
  %4513 = vmatprep.mubr.bf16.mxu0 %v3901
  %4514 = vmatmul.mubr.bf16.gmra.mrb[0].mxu0 %v3900
  %v4515 = vpop.f32.mrb[0].mxu0
  %v4516 = vadd.f32 %v4403, %v4515
  %v4517 = vpop.f32.mrb[0].mxu0
  %v4518 = vadd.f32 %v4405, %v4517
  %v4519 = vpop.f32.mrb[0].mxu0
  %v4520 = vadd.f32 %v4407, %v4519
  %v4521 = vpop.f32.mrb[0].mxu0
  %v4522 = vadd.f32 %v4409, %v4521
  %4523 = vdwg.mxu0
  %vm4524 = vcmp.gt.f32.partialorder %v4446, 0.0
  %vm4525 = vcmp.gt.f32.partialorder %v4448, 0.0
  %vm4526 = vcmp.gt.f32.partialorder %v4450, 0.0
  %vm4527 = vcmp.gt.f32.partialorder %v4452, 0.0
  %vm4528 = vcmp.gt.f32.partialorder %v4456, 0.0
  %vm4529 = vcmp.gt.f32.partialorder %v4458, 0.0
  %vm4530 = vcmp.gt.f32.partialorder %v4460, 0.0
  %vm4531 = vcmp.gt.f32.partialorder %v4462, 0.0
  %vm4532 = vcmp.gt.f32.partialorder %v4466, 0.0
  %vm4533 = vcmp.gt.f32.partialorder %v4468, 0.0
  %vm4534 = vcmp.gt.f32.partialorder %v4470, 0.0
  %vm4535 = vcmp.gt.f32.partialorder %v4472, 0.0
  %vm4536 = vcmp.gt.f32.partialorder %v4476, 0.0
  %vm4537 = vcmp.gt.f32.partialorder %v4478, 0.0
  %vm4538 = vcmp.gt.f32.partialorder %v4480, 0.0
  %vm4539 = vcmp.gt.f32.partialorder %v4482, 0.0
  %vm4540 = vcmp.gt.f32.partialorder %v4486, 0.0
  %vm4541 = vcmp.gt.f32.partialorder %v4488, 0.0
  %vm4542 = vcmp.gt.f32.partialorder %v4490, 0.0
  %vm4543 = vcmp.gt.f32.partialorder %v4492, 0.0
  %vm4544 = vcmp.gt.f32.partialorder %v4496, 0.0
  %vm4545 = vcmp.gt.f32.partialorder %v4498, 0.0
  %vm4546 = vcmp.gt.f32.partialorder %v4500, 0.0
  %vm4547 = vcmp.gt.f32.partialorder %v4502, 0.0
  %vm4548 = vcmp.gt.f32.partialorder %v4506, 0.0
  %vm4549 = vcmp.gt.f32.partialorder %v4508, 0.0
  %vm4550 = vcmp.gt.f32.partialorder %v4510, 0.0
  %vm4551 = vcmp.gt.f32.partialorder %v4512, 0.0
  %vm4552 = vcmp.gt.f32.partialorder %v4516, 0.0
  %vm4553 = vcmp.gt.f32.partialorder %v4518, 0.0
  %vm4554 = vcmp.gt.f32.partialorder %v4520, 0.0
  %vm4555 = vcmp.gt.f32.partialorder %v4522, 0.0
  %v4556 = vmul.f32 %v4446, 0.2
  %v4557 = vmul.f32 %v4448, 0.2
  %v4558 = vmul.f32 %v4450, 0.2
  %v4559 = vmul.f32 %v4452, 0.2
  %v4560 = vmul.f32 %v4456, 0.2
  %v4561 = vmul.f32 %v4458, 0.2
  %v4562 = vmul.f32 %v4460, 0.2
  %v4563 = vmul.f32 %v4462, 0.2
  %v4564 = vmul.f32 %v4466, 0.2
  %v4565 = vmul.f32 %v4468, 0.2
  %v4566 = vmul.f32 %v4470, 0.2
  %v4567 = vmul.f32 %v4472, 0.2
  %v4568 = vmul.f32 %v4476, 0.2
  %v4569 = vmul.f32 %v4478, 0.2
  %v4570 = vmul.f32 %v4480, 0.2
  %v4571 = vmul.f32 %v4482, 0.2
  %v4572 = vmul.f32 %v4486, 0.2
  %v4573 = vmul.f32 %v4488, 0.2
  %v4574 = vmul.f32 %v4490, 0.2
  %v4575 = vmul.f32 %v4492, 0.2
  %v4576 = vmul.f32 %v4496, 0.2
  %v4577 = vmul.f32 %v4498, 0.2
  %v4578 = vmul.f32 %v4500, 0.2
  %v4579 = vmul.f32 %v4502, 0.2
  %v4580 = vmul.f32 %v4506, 0.2
  %v4581 = vmul.f32 %v4508, 0.2
  %v4582 = vmul.f32 %v4510, 0.2
  %v4583 = vmul.f32 %v4512, 0.2
  %v4584 = vmul.f32 %v4516, 0.2
  %v4585 = vmul.f32 %v4518, 0.2
  %v4586 = vmul.f32 %v4520, 0.2
  %v4587 = vmul.f32 %v4522, 0.2
  %v4588 = vsel %vm4524, %v4446, %v4556
  %v4589 = vsel %vm4525, %v4448, %v4557
  %v4590 = vsel %vm4526, %v4450, %v4558
  %v4591 = vsel %vm4527, %v4452, %v4559
  %v4592 = vsel %vm4528, %v4456, %v4560
  %v4593 = vsel %vm4529, %v4458, %v4561
  %v4594 = vsel %vm4530, %v4460, %v4562
  %v4595 = vsel %vm4531, %v4462, %v4563
  %v4596 = vsel %vm4532, %v4466, %v4564
  %v4597 = vsel %vm4533, %v4468, %v4565
  %v4598 = vsel %vm4534, %v4470, %v4566
  %v4599 = vsel %vm4535, %v4472, %v4567
  %v4600 = vsel %vm4536, %v4476, %v4568
  %v4601 = vsel %vm4537, %v4478, %v4569
  %v4602 = vsel %vm4538, %v4480, %v4570
  %v4603 = vsel %vm4539, %v4482, %v4571
  %v4604 = vsel %vm4540, %v4486, %v4572
  %v4605 = vsel %vm4541, %v4488, %v4573
  %v4606 = vsel %vm4542, %v4490, %v4574
  %v4607 = vsel %vm4543, %v4492, %v4575
  %v4608 = vsel %vm4544, %v4496, %v4576
  %v4609 = vsel %vm4545, %v4498, %v4577
  %v4610 = vsel %vm4546, %v4500, %v4578
  %v4611 = vsel %vm4547, %v4502, %v4579
  %v4612 = vsel %vm4548, %v4506, %v4580
  %v4613 = vsel %vm4549, %v4508, %v4581
  %v4614 = vsel %vm4550, %v4510, %v4582
  %v4615 = vsel %vm4551, %v4512, %v4583
  %v4616 = vsel %vm4552, %v4516, %v4584
  %v4617 = vsel %vm4553, %v4518, %v4585
  %v4618 = vsel %vm4554, %v4520, %v4586
  %v4619 = vsel %vm4555, %v4522, %v4587
  %v4620 = vpack.c.bf16 %v4590, %v4588
  %v4621 = vpack.c.bf16 %v4591, %v4589
  %v4622 = vpack.c.bf16 %v4594, %v4592
  %v4623 = vpack.c.bf16 %v4595, %v4593
  %v4624 = vpack.c.bf16 %v4598, %v4596
  %v4625 = vpack.c.bf16 %v4599, %v4597
  %v4626 = vpack.c.bf16 %v4602, %v4600
  %v4627 = vpack.c.bf16 %v4603, %v4601
  %v4628 = vpack.c.bf16 %v4606, %v4604
  %v4629 = vpack.c.bf16 %v4607, %v4605
  %v4630 = vpack.c.bf16 %v4610, %v4608
  %v4631 = vpack.c.bf16 %v4611, %v4609
  %v4632 = vpack.c.bf16 %v4614, %v4612
  %v4633 = vpack.c.bf16 %v4615, %v4613
  %v4634 = vpack.c.bf16 %v4618, %v4616
  %v4635 = vpack.c.bf16 %v4619, %v4617
  %v4636 = vld [vmem:[%s7] sm:$0xf]
  %v4637 = vld [vmem:[%s7 + $0x4] sm:$0xf]
  %v4638 = vld [vmem:[%s7 + $0x8] sm:$0xf]
  %v4639 = vld [vmem:[%s7 + $0xc] sm:$0xf]
  %v4640 = vld [vmem:[%s7 + $0x10] sm:$0xf]
  %v4641 = vld [vmem:[%s7 + $0x14] sm:$0xf]
  %v4642 = vld [vmem:[%s7 + $0x18] sm:$0xf]
  %v4643 = vld [vmem:[%s7 + $0x1c] sm:$0xf]
  %v4644 = vld [vmem:[%s7 + $0x20] sm:$0xf]
  %v4645 = vld [vmem:[%s7 + $0x24] sm:$0xf]
  %v4646 = vld [vmem:[%s7 + $0x28] sm:$0xf]
  %v4647 = vld [vmem:[%s7 + $0x2c] sm:$0xf]
  %v4648 = vld [vmem:[%s7 + $0x30] sm:$0xf]
  %v4649 = vld [vmem:[%s7 + $0x34] sm:$0xf]
  %v4650 = vld [vmem:[%s7 + $0x38] sm:$0xf]
  %v4651 = vld [vmem:[%s7 + $0x3c] sm:$0xf]
  %v4652 = vld [vmem:[%s7 + $0x40] sm:$0xf]
  %v4653 = vld [vmem:[%s7 + $0x44] sm:$0xf]
  %v4654 = vld [vmem:[%s7 + $0x48] sm:$0xf]
  %v4655 = vld [vmem:[%s7 + $0x4c] sm:$0xf]
  %v4656 = vld [vmem:[%s7 + $0x50] sm:$0xf]
  %v4657 = vld [vmem:[%s7 + $0x54] sm:$0xf]
  %v4658 = vld [vmem:[%s7 + $0x58] sm:$0xf]
  %v4659 = vld [vmem:[%s7 + $0x5c] sm:$0xf]
  %v4660 = vld [vmem:[%s7 + $0x60] sm:$0xf]
  %v4661 = vld [vmem:[%s7 + $0x64] sm:$0xf]
  %v4662 = vld [vmem:[%s7 + $0x68] sm:$0xf]
  %v4663 = vld [vmem:[%s7 + $0x6c] sm:$0xf]
  %v4664 = vld [vmem:[%s7 + $0x70] sm:$0xf]
  %v4665 = vld [vmem:[%s7 + $0x74] sm:$0xf]
  %v4666 = vld [vmem:[%s7 + $0x78] sm:$0xf]
  %v4667 = vld [vmem:[%s7 + $0x7c] sm:$0xf]
  %v4668 = vld [vmem:[%s8] sm:$0x1]
  %v4670 = vlaneseq
  %v4671 = vshrl.u32 %v4670, 7
  %v4672 = vsub.s32 0, %v4671
  %v4673 = vrot.slane %v4668, %v4672
  %v4707 = vunpack.c.l.b16 %v4636
  %v4708 = vunpack.c.l.b16 %v4637
  %v4709 = vunpack.c.l.b16 %v4638
  %v4710 = vunpack.c.l.b16 %v4639
  %v4711 = vunpack.c.l.b16 %v4640
  %v4712 = vunpack.c.l.b16 %v4641
  %v4713 = vunpack.c.l.b16 %v4642
  %v4714 = vunpack.c.l.b16 %v4643
  %v4715 = vunpack.c.l.b16 %v4644
  %v4716 = vunpack.c.l.b16 %v4645
  %v4717 = vunpack.c.l.b16 %v4646
  %v4718 = vunpack.c.l.b16 %v4647
  %v4719 = vunpack.c.l.b16 %v4648
  %v4720 = vunpack.c.l.b16 %v4649
  %v4721 = vunpack.c.l.b16 %v4650
  %v4722 = vunpack.c.l.b16 %v4651
  %v4723 = vunpack.c.l.b16 %v4652
  %v4724 = vunpack.c.l.b16 %v4653
  %v4725 = vunpack.c.l.b16 %v4654
  %v4726 = vunpack.c.l.b16 %v4655
  %v4727 = vunpack.c.l.b16 %v4656
  %v4728 = vunpack.c.l.b16 %v4657
  %v4729 = vunpack.c.l.b16 %v4658
  %v4730 = vunpack.c.l.b16 %v4659
  %v4731 = vunpack.c.l.b16 %v4660
  %v4732 = vunpack.c.l.b16 %v4661
  %v4733 = vunpack.c.l.b16 %v4662
  %v4734 = vunpack.c.l.b16 %v4663
  %v4735 = vunpack.c.l.b16 %v4664
  %v4736 = vunpack.c.l.b16 %v4665
  %v4737 = vunpack.c.l.b16 %v4666
  %v4738 = vunpack.c.l.b16 %v4667
  %v4739 = vpack.c.b16 %v4708, %v4707
  %v4740 = vpack.c.b16 %v4710, %v4709
  %v4741 = vpack.c.b16 %v4712, %v4711
  %v4742 = vpack.c.b16 %v4714, %v4713
  %v4743 = vpack.c.b16 %v4716, %v4715
  %v4744 = vpack.c.b16 %v4718, %v4717
  %v4745 = vpack.c.b16 %v4720, %v4719
  %v4746 = vpack.c.b16 %v4722, %v4721
  %v4747 = vpack.c.b16 %v4724, %v4723
  %v4748 = vpack.c.b16 %v4726, %v4725
  %v4749 = vpack.c.b16 %v4728, %v4727
  %v4750 = vpack.c.b16 %v4730, %v4729
  %v4751 = vpack.c.b16 %v4732, %v4731
  %v4752 = vpack.c.b16 %v4734, %v4733
  %v4753 = vpack.c.b16 %v4736, %v4735
  %v4754 = vpack.c.b16 %v4738, %v4737
  %4771 = vmatprep.subr.bf16.mxu0 0
  %4772 = vmatpush1.bf16.msra.mxu0 %v4739
  %4773 = vmatprep.subr.bf16.mxu0 0
  %4774 = vmatpush1.bf16.msra.mxu0 %v4740
  %4775 = vmatprep.subr.bf16.mxu0 0
  %4776 = vmatpush1.bf16.msra.mxu0 %v4741
  %4777 = vmatprep.subr.bf16.mxu0 0
  %4778 = vmatpush1.bf16.msra.mxu0 %v4742
  %4779 = vmatprep.subr.bf16.mxu0 0
  %4780 = vmatpush1.bf16.msra.mxu0 %v4743
  %4781 = vmatprep.subr.bf16.mxu0 0
  %4782 = vmatpush1.bf16.msra.mxu0 %v4744
  %4783 = vmatprep.subr.bf16.mxu0 0
  %4784 = vmatpush1.bf16.msra.mxu0 %v4745
  %4785 = vmatprep.subr.bf16.mxu0 0
  %4786 = vmatpush1.bf16.msra.mxu0 %v4746
  %4787 = vmatprep.subr.bf16.mxu0 0
  %4788 = vmatpush1.bf16.msra.mxu0 %v4747
  %4789 = vmatprep.subr.bf16.mxu0 0
  %4790 = vmatpush1.bf16.msra.mxu0 %v4748
  %4791 = vmatprep.subr.bf16.mxu0 0
  %4792 = vmatpush1.bf16.msra.mxu0 %v4749
  %4793 = vmatprep.subr.bf16.mxu0 0
  %4794 = vmatpush1.bf16.msra.mxu0 %v4750
  %4795 = vmatprep.subr.bf16.mxu0 0
  %4796 = vmatpush1.bf16.msra.mxu0 %v4751
  %4797 = vmatprep.subr.bf16.mxu0 0
  %4798 = vmatpush1.bf16.msra.mxu0 %v4752
  %4799 = vmatprep.subr.bf16.mxu0 0
  %4800 = vmatpush1.bf16.msra.mxu0 %v4753
  %4801 = vmatprep.subr.bf16.mxu0 0
  %4802 = vmatpush1.bf16.msra.mxu0 %v4754
  %4803 = vmatprep.mubr.bf16.mxu0 %v4621
  %4804 = vmatmul.mubr.bf16.gmra.mrb[0].mxu0 %v4620
  %v4805 = vpop.f32.mrb[0].mxu0
  %v4806 = vadd.f32 %v4673, %v4805
  %v4807 = vpop.f32.mrb[0].mxu0
  %v4808 = vpop.f32.mrb[0].mxu0
  %v4809 = vadd.f32 %v4673, %v4808
  %v4810 = vpop.f32.mrb[0].mxu0
  %4811 = vmatprep.mubr.bf16.mxu0 %v4623
  %4812 = vmatmul.mubr.bf16.gmra.mrb[0].mxu0 %v4622
  %v4813 = vpop.f32.mrb[0].mxu0
  %v4814 = vadd.f32 %v4673, %v4813
  %v4815 = vpop.f32.mrb[0].mxu0
  %v4816 = vpop.f32.mrb[0].mxu0
  %v4817 = vadd.f32 %v4673, %v4816
  %v4818 = vpop.f32.mrb[0].mxu0
  %4819 = vmatprep.mubr.bf16.mxu0 %v4625
  %4820 = vmatmul.mubr.bf16.gmra.mrb[0].mxu0 %v4624
  %v4821 = vpop.f32.mrb[0].mxu0
  %v4822 = vadd.f32 %v4673, %v4821
  %v4823 = vpop.f32.mrb[0].mxu0
  %v4824 = vpop.f32.mrb[0].mxu0
  %v4825 = vadd.f32 %v4673, %v4824
  %v4826 = vpop.f32.mrb[0].mxu0
  %4827 = vmatprep.mubr.bf16.mxu0 %v4627
  %4828 = vmatmul.mubr.bf16.gmra.mrb[0].mxu0 %v4626
  %v4829 = vpop.f32.mrb[0].mxu0
  %v4830 = vadd.f32 %v4673, %v4829
  %v4831 = vpop.f32.mrb[0].mxu0
  %v4832 = vpop.f32.mrb[0].mxu0
  %v4833 = vadd.f32 %v4673, %v4832
  %v4834 = vpop.f32.mrb[0].mxu0
  %4835 = vmatprep.mubr.bf16.mxu0 %v4629
  %4836 = vmatmul.mubr.bf16.gmra.mrb[0].mxu0 %v4628
  %v4837 = vpop.f32.mrb[0].mxu0
  %v4838 = vadd.f32 %v4673, %v4837
  %v4839 = vpop.f32.mrb[0].mxu0
  %v4840 = vpop.f32.mrb[0].mxu0
  %v4841 = vadd.f32 %v4673, %v4840
  %v4842 = vpop.f32.mrb[0].mxu0
  %4843 = vmatprep.mubr.bf16.mxu0 %v4631
  %4844 = vmatmul.mubr.bf16.gmra.mrb[0].mxu0 %v4630
  %v4845 = vpop.f32.mrb[0].mxu0
  %v4846 = vadd.f32 %v4673, %v4845
  %v4847 = vpop.f32.mrb[0].mxu0
  %v4848 = vpop.f32.mrb[0].mxu0
  %v4849 = vadd.f32 %v4673, %v4848
  %v4850 = vpop.f32.mrb[0].mxu0
  %4851 = vmatprep.mubr.bf16.mxu0 %v4633
  %4852 = vmatmul.mubr.bf16.gmra.mrb[0].mxu0 %v4632
  %v4853 = vpop.f32.mrb[0].mxu0
  %v4854 = vadd.f32 %v4673, %v4853
  %v4855 = vpop.f32.mrb[0].mxu0
  %v4856 = vpop.f32.mrb[0].mxu0
  %v4857 = vadd.f32 %v4673, %v4856
  %v4858 = vpop.f32.mrb[0].mxu0
  %4859 = vmatprep.mubr.bf16.mxu0 %v4635
  %4860 = vmatmul.mubr.bf16.gmra.mrb[0].mxu0 %v4634
  %v4861 = vpop.f32.mrb[0].mxu0
  %v4862 = vadd.f32 %v4673, %v4861
  %v4863 = vpop.f32.mrb[0].mxu0
  %v4864 = vpop.f32.mrb[0].mxu0
  %v4865 = vadd.f32 %v4673, %v4864
  %v4866 = vpop.f32.mrb[0].mxu0
  %4867 = vdwg.mxu0
  %vm4868 = vcmp.gt.f32.partialorder %v4806, 0.0
  %vm4869 = vcmp.gt.f32.partialorder %v4809, 0.0
  %vm4870 = vcmp.gt.f32.partialorder %v4814, 0.0
  %vm4871 = vcmp.gt.f32.partialorder %v4817, 0.0
  %vm4872 = vcmp.gt.f32.partialorder %v4822, 0.0
  %vm4873 = vcmp.gt.f32.partialorder %v4825, 0.0
  %vm4874 = vcmp.gt.f32.partialorder %v4830, 0.0
  %vm4875 = vcmp.gt.f32.partialorder %v4833, 0.0
  %vm4876 = vcmp.gt.f32.partialorder %v4838, 0.0
  %vm4877 = vcmp.gt.f32.partialorder %v4841, 0.0
  %vm4878 = vcmp.gt.f32.partialorder %v4846, 0.0
  %vm4879 = vcmp.gt.f32.partialorder %v4849, 0.0
  %vm4880 = vcmp.gt.f32.partialorder %v4854, 0.0
  %vm4881 = vcmp.gt.f32.partialorder %v4857, 0.0
  %vm4882 = vcmp.gt.f32.partialorder %v4862, 0.0
  %vm4883 = vcmp.gt.f32.partialorder %v4865, 0.0
  %v4884 = vmul.f32 %v4806, 0.2
  %v4885 = vmul.f32 %v4809, 0.2
  %v4886 = vmul.f32 %v4814, 0.2
  %v4887 = vmul.f32 %v4817, 0.2
  %v4888 = vmul.f32 %v4822, 0.2
  %v4889 = vmul.f32 %v4825, 0.2
  %v4890 = vmul.f32 %v4830, 0.2
  %v4891 = vmul.f32 %v4833, 0.2
  %v4892 = vmul.f32 %v4838, 0.2
  %v4893 = vmul.f32 %v4841, 0.2
  %v4894 = vmul.f32 %v4846, 0.2
  %v4895 = vmul.f32 %v4849, 0.2
  %v4896 = vmul.f32 %v4854, 0.2
  %v4897 = vmul.f32 %v4857, 0.2
  %v4898 = vmul.f32 %v4862, 0.2
  %v4899 = vmul.f32 %v4865, 0.2
  %v4900 = vsel %vm4868, %v4806, %v4884
  %v4901 = vsel %vm4869, %v4809, %v4885
  %v4902 = vsel %vm4870, %v4814, %v4886
  %v4903 = vsel %vm4871, %v4817, %v4887
  %v4904 = vsel %vm4872, %v4822, %v4888
  %v4905 = vsel %vm4873, %v4825, %v4889
  %v4906 = vsel %vm4874, %v4830, %v4890
  %v4907 = vsel %vm4875, %v4833, %v4891
  %v4908 = vsel %vm4876, %v4838, %v4892
  %v4909 = vsel %vm4877, %v4841, %v4893
  %v4910 = vsel %vm4878, %v4846, %v4894
  %v4911 = vsel %vm4879, %v4849, %v4895
  %v4912 = vsel %vm4880, %v4854, %v4896
  %v4913 = vsel %vm4881, %v4857, %v4897
  %v4914 = vsel %vm4882, %v4862, %v4898
  %v4915 = vsel %vm4883, %v4865, %v4899
  %4916 = vst [vmem:[%s9] sm:$0xff] %v4900
  %4917 = vst [vmem:[%s9 + $0x8] sm:$0xff] %v4901
  %4918 = vst [vmem:[%s9 + $0x10] sm:$0xff] %v4902
  %4919 = vst [vmem:[%s9 + $0x18] sm:$0xff] %v4903
  %4920 = vst [vmem:[%s9 + $0x20] sm:$0xff] %v4904
  %4921 = vst [vmem:[%s9 + $0x28] sm:$0xff] %v4905
  %4922 = vst [vmem:[%s9 + $0x30] sm:$0xff] %v4906
  %4923 = vst [vmem:[%s9 + $0x38] sm:$0xff] %v4907
  %4924 = vst [vmem:[%s9 + $0x40] sm:$0xff] %v4908
  %4925 = vst [vmem:[%s9 + $0x48] sm:$0xff] %v4909
  %4926 = vst [vmem:[%s9 + $0x50] sm:$0xff] %v4910
  %4927 = vst [vmem:[%s9 + $0x58] sm:$0xff] %v4911
  %4928 = vst [vmem:[%s9 + $0x60] sm:$0xff] %v4912
  %4929 = vst [vmem:[%s9 + $0x68] sm:$0xff] %v4913
  %4930 = vst [vmem:[%s9 + $0x70] sm:$0xff] %v4914
  %4931 = vst [vmem:[%s9 + $0x78] sm:$0xff] %v4915
  // Predicated region
  $region38: #{wdiscriminator_forward.1} parent=0 // pred_check
    _
  $region39: #{wdiscriminator_forward.1} parent=0 // pred_check_branch
    %4933 = sbr.rel (0) target = $region41
  $region40: #{wdiscriminator_forward.1} parent=0 // pred_region
    _
  $region41: #{wdiscriminator_forward.1} parent=0 // pred_fallthru
    _
  // Predicated region
  $region42: #{wdiscriminator_forward.1} parent=0 // pred_check
    _
  $region43: #{wdiscriminator_forward.1} parent=0 // pred_check_branch
    %4935 = sbr.rel (0) target = $region45
  $region44: #{wdiscriminator_forward.1} parent=0 // pred_region
    _
  $region45: #{wdiscriminator_forward.1} parent=0 // pred_fallthru
    _

</llo_original>
